<compile_context>
chip_gen: v6e
topology: v6e:2x2x1
jax: 0.10.0
libtpu: 0.0.40
codegen_flags: <defaults>
</compile_context>

<pallas_src>
import functools

import jax
import jax.numpy as jnp
from jax import lax
from jax.experimental import pallas as pl
from jax.experimental.pallas import tpu as pltpu

SUBLANE = 8        # f32 sublane tile
LANE = 128         # lane tile
T_CHUNK = 8        # LSTM steps per grid iteration
MAX_B_TILE = 64    # upper bound on batch rows per grid tile


def _round_up(x, m):
    return ((x + m - 1) // m) * m


def _pick_batch_tiling(b, max_tile=MAX_B_TILE):
    """Pad batch to a sublane multiple and pick the tile from the real batch.

    Keeps at least two batch tiles whenever the padded batch allows it (so the
    leading "parallel" grid axis can be sharded across v7x's two TensorCores);
    otherwise uses one tile as large as possible (up to max_tile) so the MXU
    sees a tall M instead of M=8.
    """
    bp = _round_up(b, SUBLANE)
    bt = min(max_tile, bp)
    if bp > SUBLANE and bp // bt < 2:
        bt = _round_up((bp + 1) // 2, SUBLANE)
    bp = _round_up(bp, bt)
    return bp, bt


def _nbytes(shape, dtype):
    n = 1
    for d in shape:
        n *= int(d)
    return n * jnp.dtype(dtype).itemsize


def _pick_vmem_limit(block_bytes, scratch_bytes):
    """Generation-aware scoped-VMEM limit (v5e/v6e: 128 MiB phys, v7x: 64)."""
    cap = 64 * 1024 * 1024
    try:
        cap = int(getattr(pltpu.get_tpu_info(), "vmem_capacity_bytes", cap))
    except Exception:
        pass
    want = 2 * block_bytes + scratch_bytes + (8 << 20)   # double-buffered blocks
    want = max(want, 32 << 20)
    return int(min(want, (cap * 7) // 8))


# ----------------------------------------------------------------------------
# Encoder kernel: grid = (batch_tiles, time_chunks); h/c carried in VMEM.
# Emits context (and W_a-projected context) in (S, B, H) block layout so every
# per-step store is a full-tile store.
# ----------------------------------------------------------------------------
def _encoder_kernel(emb_ref, wih_ref, whh_ref, b_ref, wact_ref,
                    ctx_ref, ctxp_ref, hN_ref, cN_ref,
                    xg_sc, h_sc, c_sc, *, src_len, t_chunk):
    t_idx = pl.program_id(1)

    @pl.when(t_idx == 0)
    def _():
        h_sc[...] = jnp.zeros_like(h_sc)
        c_sc[...] = jnp.zeros_like(c_sc)

    cd = wih_ref.dtype
    Bt, Hp = h_sc.shape
    Ep = emb_ref.shape[-1]

    # Chunk-level input projection (+ bias) hoisted off the serial recurrence:
    # one (t_chunk*Bt, Ep) @ (Ep, 4Hp) matmul per grid step instead of t_chunk
    # tiny M=Bt matmuls on the critical path.
    x_all = emb_ref[...].reshape(t_chunk * Bt, Ep).astype(cd)
    xg_sc[...] = (jnp.dot(x_all, wih_ref[...],
                          preferred_element_type=jnp.float32)
                  + b_ref[...]).reshape(t_chunk, Bt, 4 * Hp)

    whh = whh_ref[...]                          # loop-invariant recurrent weight

    h = h_sc[...]
    c = c_sc[...]
    t0 = t_idx * t_chunk
    for s in range(t_chunk):                    # static unroll, static indices
        gates = xg_sc[s] + jnp.dot(h.astype(cd), whh,
                                   preferred_element_type=jnp.float32)
        i = jax.nn.sigmoid(gates[:, 0 * Hp:1 * Hp])
        f = jax.nn.sigmoid(gates[:, 1 * Hp:2 * Hp])
        g = jnp.tanh(gates[:, 2 * Hp:3 * Hp])
        o = jax.nn.sigmoid(gates[:, 3 * Hp:4 * Hp])
        c_new = f * c + i * g
        h_new = o * jnp.tanh(c_new)
        # freeze the recurrent state on padded time steps so hN/cN hold the
        # state after exactly src_len steps (scalar mask, branch free)
        m = ((t0 + s) < src_len).astype(jnp.float32)
        h = m * h_new + (1.0 - m) * h
        c = m * c_new + (1.0 - m) * c
        # (S, B, H) block layout -> full-vreg (unmasked) store each step
        ctx_ref[s] = h.astype(ctx_ref.dtype)
    h_sc[...] = h
    c_sc[...] = c
    hN_ref[...] = h                             # resident -> final hidden
    cN_ref[...] = c

    # W_a folded into the context once per chunk (off the recurrence critical
    # path, batched to M = t_chunk*Bt): ctx_proj = ctx @ W_a^T.
    ctx_chunk = ctx_ref[...].reshape(t_chunk * Bt, Hp).astype(cd)
    ctxp_ref[...] = jnp.dot(ctx_chunk, wact_ref[...],
                            preferred_element_type=jnp.float32
                            ).reshape(t_chunk, Bt, Hp).astype(ctxp_ref.dtype)


def _run_encoder(emb, wih, whh, b, wa_ct, *, src_len, t_chunk, batch_tile,
                 ctx_dtype):
    Sp, Bp, Ep = emb.shape
    Hp = whh.shape[0]
    grid = (Bp // batch_tile, Sp // t_chunk)
    kernel = functools.partial(_encoder_kernel, src_len=src_len,
                               t_chunk=t_chunk)

    block_bytes = (_nbytes((t_chunk, batch_tile, Ep), emb.dtype)
                   + _nbytes(wih.shape, wih.dtype)
                   + _nbytes(whh.shape, whh.dtype)
                   + _nbytes(b.shape, b.dtype)
                   + _nbytes(wa_ct.shape, wa_ct.dtype)
                   + 2 * _nbytes((t_chunk, batch_tile, Hp), ctx_dtype)
                   + 2 * _nbytes((batch_tile, Hp), jnp.float32))
    scratch_bytes = (_nbytes((t_chunk, batch_tile, 4 * Hp), jnp.float32)
                     + 2 * _nbytes((batch_tile, Hp), jnp.float32))

    # TODO(synk): once pipeline_mode=pl.Buffered(1) is validated on the target
    # jax build, tag the constant-index weight operands with it to drop their
    # redundant second pipeline buffer (matters at real H on v7x's 64 MiB VMEM).
    grid_spec = pltpu.PrefetchScalarGridSpec(
        num_scalar_prefetch=0,
        grid=grid,
        in_specs=[
            pl.BlockSpec((t_chunk, batch_tile, Ep), lambda bi, ti: (ti, bi, 0)),
            pl.BlockSpec((Ep, 4 * Hp), lambda bi, ti: (0, 0)),
            pl.BlockSpec((Hp, 4 * Hp), lambda bi, ti: (0, 0)),
            pl.BlockSpec((1, 4 * Hp), lambda bi, ti: (0, 0)),
            pl.BlockSpec((Hp, Hp), lambda bi, ti: (0, 0)),
        ],
        out_specs=(
            pl.BlockSpec((t_chunk, batch_tile, Hp), lambda bi, ti: (ti, bi, 0)),
            pl.BlockSpec((t_chunk, batch_tile, Hp), lambda bi, ti: (ti, bi, 0)),
            pl.BlockSpec((batch_tile, Hp), lambda bi, ti: (bi, 0)),
            pl.BlockSpec((batch_tile, Hp), lambda bi, ti: (bi, 0)),
        ),
        scratch_shapes=[pltpu.VMEM((t_chunk, batch_tile, 4 * Hp), jnp.float32),
                        pltpu.VMEM((batch_tile, Hp), jnp.float32),
                        pltpu.VMEM((batch_tile, Hp), jnp.float32)],
    )
    return pl.pallas_call(
        kernel,
        out_shape=(jax.ShapeDtypeStruct((Sp, Bp, Hp), ctx_dtype),
                   jax.ShapeDtypeStruct((Sp, Bp, Hp), ctx_dtype),
                   jax.ShapeDtypeStruct((Bp, Hp), jnp.float32),
                   jax.ShapeDtypeStruct((Bp, Hp), jnp.float32)),
        grid_spec=grid_spec,
        compiler_params=pltpu.CompilerParams(
            dimension_semantics=("parallel", "arbitrary"),
            vmem_limit_bytes=_pick_vmem_limit(block_bytes, scratch_bytes)),
    )(emb, wih, whh, b, wa_ct)


# ----------------------------------------------------------------------------
# Decoder kernel: input-feed LSTM + Luong general attention, t_chunk steps per
# grid iteration; h/c/input_feed carried in VMEM scratch; ctx in (S, B, H).
# ----------------------------------------------------------------------------
def _decoder_kernel(emb_ref, ctx_ref, ctxp_ref, h0_ref, c0_ref,
                    wemb_ref, wrec_ref, b_ref, wco_ref,
                    out_ref,
                    xg_sc, h_sc, c_sc, feed_sc, *, src_len, t_chunk):
    t_idx = pl.program_id(1)

    @pl.when(t_idx == 0)
    def _():
        h_sc[...] = h0_ref[...]                  # _fix_enc_hidden == identity
        c_sc[...] = c0_ref[...]
        feed_sc[...] = jnp.zeros_like(feed_sc)   # make_init_decoder_output

    cd = wemb_ref.dtype
    Bt, Hp = h_sc.shape
    Sp = ctx_ref.shape[0]
    Ep = emb_ref.shape[-1]

    # Chunk-level embedding projection (+ bias), off the serial path.
    x_all = emb_ref[...].reshape(t_chunk * Bt, Ep).astype(cd)
    xg_sc[...] = (jnp.dot(x_all, wemb_ref[...],
                          preferred_element_type=jnp.float32)
                  + b_ref[...]).reshape(t_chunk, Bt, 4 * Hp)

    wrec = wrec_ref[...]        # fused [W_feed ; W_hh]  -> K = 2*Hp per push
    wco = wco_ref[...]          # fused linear_out [W_c ; W_h]

    # source-length mask over the (padded) source axis; stays f32 (never bf16)
    pos = lax.broadcasted_iota(jnp.int32, (Sp, 1), 0)
    score_bias = jnp.where(pos < src_len, 0.0, -1e30)

    h = h_sc[...]
    c = c_sc[...]
    feed = feed_sc[...]
    for s in range(t_chunk):                     # static unroll
        # concat([emb, input_feed]) @ W_ih: the emb half was hoisted into
        # xg_sc; feed/h share one fused matmul (lane concat of two aligned
        # 128-lane operands is layout-cheap).
        rec_in = jnp.concatenate([feed, h], axis=-1).astype(cd)   # (Bt, 2Hp)
        gates = xg_sc[s] + jnp.dot(rec_in, wrec,
                                   preferred_element_type=jnp.float32)
        i = jax.nn.sigmoid(gates[:, 0 * Hp:1 * Hp])
        f = jax.nn.sigmoid(gates[:, 1 * Hp:2 * Hp])
        g = jnp.tanh(gates[:, 2 * Hp:3 * Hp])
        o = jax.nn.sigmoid(gates[:, 3 * Hp:4 * Hp])
        c = f * c + i * g
        h = o * jnp.tanh(c)

        # Luong "general" attention (W_a already folded into ctxp).  Batched
        # per-row dot products are a bad MXU shape (M=1), so use VPU multiply
        # + XLU reduce, streaming ctx/ctxp from VMEM (no hoisted copies);
        # bf16-at-rest context promotes to f32 in the products.
        scores = jnp.sum(h[None, :, :] * ctxp_ref[...], axis=-1) + score_bias
        m = jnp.max(scores, axis=0, keepdims=True)
        e = jnp.exp(scores - m)
        denom = jnp.sum(e, axis=0, keepdims=True)
        attn = e * pl.reciprocal(denom, approx=True)       # EUP slot, ~free
        c_t = jnp.sum(attn[:, :, None] * ctx_ref[...], axis=0)   # (Bt, Hp) f32

        # linear_out on concat([c_t, h]) as one fused K = 2*Hp matmul.
        h_tilde = jnp.tanh(
            jnp.dot(jnp.concatenate([c_t, h], axis=-1).astype(cd), wco,
                    preferred_element_type=jnp.float32))
        feed = h_tilde                      # input feed for the next step
        out_ref[s] = h_tilde
    h_sc[...] = h
    c_sc[...] = c
    feed_sc[...] = feed


def _run_decoder(emb, ctx, ctxp, h0, c0, wemb, wrec, b, wco,
                 *, src_len, t_chunk, batch_tile):
    Tp, Bp, Ep = emb.shape
    Sp, _, Hp = ctx.shape
    grid = (Bp // batch_tile, Tp // t_chunk)
    kernel = functools.partial(_decoder_kernel, src_len=src_len,
                               t_chunk=t_chunk)

    block_bytes = (_nbytes((t_chunk, batch_tile, Ep), emb.dtype)
                   + 2 * _nbytes((Sp, batch_tile, Hp), ctx.dtype)
                   + 2 * _nbytes((batch_tile, Hp), jnp.float32)
                   + _nbytes(wemb.shape, wemb.dtype)
                   + _nbytes(wrec.shape, wrec.dtype)
                   + _nbytes(b.shape, b.dtype)
                   + _nbytes(wco.shape, wco.dtype)
                   + _nbytes((t_chunk, batch_tile, Hp), jnp.float32))
    scratch_bytes = (_nbytes((t_chunk, batch_tile, 4 * Hp), jnp.float32)
                     + 3 * _nbytes((batch_tile, Hp), jnp.float32))

    grid_spec = pltpu.PrefetchScalarGridSpec(
        num_scalar_prefetch=0,
        grid=grid,
        in_specs=[
            pl.BlockSpec((t_chunk, batch_tile, Ep), lambda bi, ti: (ti, bi, 0)),
            pl.BlockSpec((Sp, batch_tile, Hp), lambda bi, ti: (0, bi, 0)),
            pl.BlockSpec((Sp, batch_tile, Hp), lambda bi, ti: (0, bi, 0)),
            pl.BlockSpec((batch_tile, Hp), lambda bi, ti: (bi, 0)),
            pl.BlockSpec((batch_tile, Hp), lambda bi, ti: (bi, 0)),
            pl.BlockSpec((Ep, 4 * Hp), lambda bi, ti: (0, 0)),
            pl.BlockSpec((2 * Hp, 4 * Hp), lambda bi, ti: (0, 0)),
            pl.BlockSpec((1, 4 * Hp), lambda bi, ti: (0, 0)),
            pl.BlockSpec((2 * Hp, Hp), lambda bi, ti: (0, 0)),
        ],
        out_specs=pl.BlockSpec((t_chunk, batch_tile, Hp),
                               lambda bi, ti: (ti, bi, 0)),
        scratch_shapes=[pltpu.VMEM((t_chunk, batch_tile, 4 * Hp), jnp.float32),
                        pltpu.VMEM((batch_tile, Hp), jnp.float32),
                        pltpu.VMEM((batch_tile, Hp), jnp.float32),
                        pltpu.VMEM((batch_tile, Hp), jnp.float32)],
    )
    return pl.pallas_call(
        kernel,
        out_shape=jax.ShapeDtypeStruct((Tp, Bp, Hp), jnp.float32),
        grid_spec=grid_spec,
        compiler_params=pltpu.CompilerParams(
            dimension_semantics=("parallel", "arbitrary"),
            vmem_limit_bytes=_pick_vmem_limit(block_bytes, scratch_bytes)),
    )(emb, ctx, ctxp, h0, c0, wemb, wrec, b, wco)


# ----------------------------------------------------------------------------
# Parameter padding / re-layout helpers (setup-time, exact: zero padding)
# ----------------------------------------------------------------------------
def _pad_rows(w, rows):
    out = jnp.zeros((rows,) + w.shape[1:], w.dtype)
    return out.at[: w.shape[0]].set(w)


def _pad2(w, r, c):
    out = jnp.zeros((r, c), w.dtype)
    return out.at[: w.shape[0], : w.shape[1]].set(w)


def _pad_gate_cols(w, h, h_pad):
    # (rows, 4h) -> (rows, 4*h_pad), keeping the [i|f|g|o] blocks lane-aligned.
    r = w.shape[0]
    w4 = w.reshape(r, 4, h)
    out = jnp.zeros((r, 4, h_pad), w.dtype).at[:, :, :h].set(w4)
    return out.reshape(r, 4 * h_pad)


# ----------------------------------------------------------------------------
# NMTModel.forward equivalent
# ----------------------------------------------------------------------------
def nmt_forward(params, src, tgt_full, compute_dtype=jnp.float32,
                t_chunk=T_CHUNK, max_batch_tile=MAX_B_TILE):
    """src: (src_len, B) int32 ; tgt_full: (tgt_len, B) int32 (like input[1])."""
    tgt = tgt_full[:-1]                                   # input[1][:-1]
    S, B = src.shape
    T = tgt.shape[0]
    E = params['enc_emb'].shape[1]
    H = params['enc_whh'].shape[0]
    cd = compute_dtype
    ctx_dtype = cd           # context at rest follows the matmul-operand dtype

    Bp, batch_tile = _pick_batch_tiling(B, max_batch_tile)
    Ep = _round_up(E, LANE)
    Hp = _round_up(H, LANE)
    Sp = _round_up(S, t_chunk)
    Tp = _round_up(T, t_chunk)

    # --- weights: pad to (8,128)-friendly shapes, split/fuse concatenated mats
    enc_wih = _pad_gate_cols(_pad_rows(params['enc_wih'], Ep), H, Hp).astype(cd)
    enc_whh = _pad_gate_cols(_pad_rows(params['enc_whh'], Hp), H, Hp).astype(cd)
    enc_b = _pad_gate_cols(params['enc_b'], H, Hp).astype(jnp.float32)
    wa_ct = _pad2(params['dec_wa'].T, Hp, Hp).astype(cd)  # ctx_proj = ctx @ Wa^T

    dec_wih = params['dec_wih']
    dec_wemb = _pad_gate_cols(_pad_rows(dec_wih[:E], Ep), H, Hp).astype(cd)
    dec_wfeed = _pad_gate_cols(_pad_rows(dec_wih[E:], Hp), H, Hp)
    dec_whh = _pad_gate_cols(_pad_rows(params['dec_whh'], Hp), H, Hp)
    # fuse the two recurrent matmuls: [feed ; h] @ [W_feed ; W_hh]  (K = 2*Hp)
    dec_wrec = jnp.concatenate([dec_wfeed, dec_whh], axis=0).astype(cd)
    dec_b = _pad_gate_cols(params['dec_b'], H, Hp).astype(jnp.float32)
    dec_wc = params['dec_wc']
    # fuse linear_out on concat([c_t, h])  (K = 2*Hp)
    dec_wco = jnp.concatenate([_pad2(dec_wc[:H], Hp, Hp),
                               _pad2(dec_wc[H:], Hp, Hp)], axis=0).astype(cd)

    # --- embeddings (gather stays in XLA glue); fusible jnp.pad, not a scatter
    emb_src = jnp.pad(params['enc_emb'][src].astype(jnp.float32),
                      ((0, Sp - S), (0, Bp - B), (0, Ep - E)))
    emb_tgt = jnp.pad(params['dec_emb'][tgt].astype(jnp.float32),
                      ((0, Tp - T), (0, Bp - B), (0, Ep - E)))

    ctx, ctxp, h0, c0 = _run_encoder(
        emb_src, enc_wih, enc_whh, enc_b, wa_ct,
        src_len=S, t_chunk=t_chunk, batch_tile=batch_tile, ctx_dtype=ctx_dtype)

    out = _run_decoder(
        emb_tgt, ctx, ctxp, h0, c0,
        dec_wemb, dec_wrec, dec_b, dec_wco,
        src_len=S, t_chunk=t_chunk, batch_tile=batch_tile)

    return out[:T, :B, :H]                                # (tgt_len-1, B, H)


# ----------------------------------------------------------------------------
# Pure-JAX reference (sanity check of kernel semantics)
# ----------------------------------------------------------------------------
def _lstm_cell_ref(x, h, c, wih, whh, b):
    H = h.shape[-1]
    gates = x @ wih + h @ whh + b
    i = jax.nn.sigmoid(gates[:, 0 * H:1 * H])
    f = jax.nn.sigmoid(gates[:, 1 * H:2 * H])
    g = jnp.tanh(gates[:, 2 * H:3 * H])
    o = jax.nn.sigmoid(gates[:, 3 * H:4 * H])
    c_new = f * c + i * g
    return o * jnp.tanh(c_new), c_new


def nmt_forward_ref(params, src, tgt_full):
    tgt = tgt_full[:-1]
    emb_src = params['enc_emb'][src]
    S, B, E = emb_src.shape
    H = params['enc_whh'].shape[0]
    h = jnp.zeros((B, H), jnp.float32)
    c = jnp.zeros((B, H), jnp.float32)
    ctx = []
    for t in range(S):
        h, c = _lstm_cell_ref(emb_src[t], h, c,
                              params['enc_wih'], params['enc_whh'],
                              params['enc_b'])
        ctx.append(h)
    ctx_bsh = jnp.transpose(jnp.stack(ctx), (1, 0, 2))    # (B, S, H)

    emb_tgt = params['dec_emb'][tgt]
    feed = jnp.zeros((B, H), jnp.float32)
    outs = []
    for t in range(emb_tgt.shape[0]):
        x = jnp.concatenate([emb_tgt[t], feed], axis=-1)
        h, c = _lstm_cell_ref(x, h, c,
                              params['dec_wih'], params['dec_whh'],
                              params['dec_b'])
        q = h @ params['dec_wa']
        scores = jnp.einsum('bh,bsh->bs', q, ctx_bsh)
        attn = jax.nn.softmax(scores, axis=-1)
        c_t = jnp.einsum('bs,bsh->bh', attn, ctx_bsh)
        h_tilde = jnp.tanh(jnp.concatenate([c_t, h], -1) @ params['dec_wc'])
        feed = h_tilde
        outs.append(h_tilde)
    return jnp.stack(outs)


# ----------------------------------------------------------------------------
if __name__ == "__main__":
    VOCAB, EMB, HID = 50, 48, 40
    BATCH, SRC_LEN, TGT_LEN = 12, 27, 22

    key = jax.random.PRNGKey(0)
    ks = jax.random.split(key, 12)
    sc = 0.1
    params = {
        'enc_emb': sc * jax.random.normal(ks[0], (VOCAB, EMB), jnp.float32),
        'enc_wih': sc * jax.random.normal(ks[1], (EMB, 4 * HID), jnp.float32),
        'enc_whh': sc * jax.random.normal(ks[2], (HID, 4 * HID), jnp.float32),
        'enc_b':   sc * jax.random.normal(ks[3], (1, 4 * HID), jnp.float32),
        'dec_emb': sc * jax.random.normal(ks[4], (VOCAB, EMB), jnp.float32),
        'dec_wih': sc * jax.random.normal(ks[5], (EMB + HID, 4 * HID), jnp.float32),
        'dec_whh': sc * jax.random.normal(ks[6], (HID, 4 * HID), jnp.float32),
        'dec_b':   sc * jax.random.normal(ks[7], (1, 4 * HID), jnp.float32),
        'dec_wa':  sc * jax.random.normal(ks[8], (HID, HID), jnp.float32),
        'dec_wc':  sc * jax.random.normal(ks[9], (2 * HID, HID), jnp.float32),
    }

    src = jax.random.randint(ks[10], (SRC_LEN, BATCH), 0, VOCAB, jnp.int32)
    tgt = jax.random.randint(ks[11], (TGT_LEN, BATCH), 0, VOCAB, jnp.int32)

    # f32 path (only non-exact step vs. the reference is the EUP approximate
    # reciprocal in the softmax denominator)
    out = jax.block_until_ready(nmt_forward(params, src, tgt))
    ref = nmt_forward_ref(params, src, tgt)
    assert out.shape == (TGT_LEN - 1, BATCH, HID), out.shape
    assert bool(jnp.all(jnp.isfinite(out)))
    assert bool(jnp.allclose(out, ref, atol=1e-2, rtol=1e-2)), float(
        jnp.max(jnp.abs(out - ref)))

    # bf16 matmul-operand / bf16-context-at-rest path (MXU fast path); the
    # recurrent state, gate nonlinearities, softmax and accumulation stay f32.
    out_bf16 = jax.block_until_ready(
        nmt_forward(params, src, tgt, compute_dtype=jnp.bfloat16))
    assert out_bf16.shape == (TGT_LEN - 1, BATCH, HID)
    assert bool(jnp.all(jnp.isfinite(out_bf16)))
    assert bool(jnp.max(jnp.abs(out_bf16 - ref)) < 1e-1)

    # TODO(synk): get_rewards / roll_out (multinomial sampling rollouts against
    # a discriminator) are training-time utilities, not part of forward();
    # not lowered to Pallas.
    print("KERNEL_OK")
</pallas_src>

<mosaic_0001>
module attributes {stable_mosaic.version = 11 : i64} {
  func.func @_encoder_kernel(%arg0: i32, %arg1: i32, %arg2: memref<8x8x128xf32, #tpu.memory_space<vmem>>, %arg3: memref<128x512xf32, #tpu.memory_space<vmem>>, %arg4: memref<128x512xf32, #tpu.memory_space<vmem>>, %arg5: memref<1x512xf32, #tpu.memory_space<vmem>>, %arg6: memref<128x128xf32, #tpu.memory_space<vmem>>, %arg7: memref<8x8x128xf32, #tpu.memory_space<vmem>>, %arg8: memref<8x8x128xf32, #tpu.memory_space<vmem>>, %arg9: memref<8x128xf32, #tpu.memory_space<vmem>>, %arg10: memref<8x128xf32, #tpu.memory_space<vmem>>, %arg11: memref<8x8x512xf32, #tpu.memory_space<vmem>>, %arg12: memref<8x128xf32, #tpu.memory_space<vmem>>, %arg13: memref<8x128xf32, #tpu.memory_space<vmem>>) attributes {dimension_semantics = [#tpu.dimension_semantics<parallel>, #tpu.dimension_semantics<arbitrary>], iteration_bounds = array<i64: 2, 4>, scalar_prefetch = 0 : i64, scratch_operands = 3 : i64, tpu.core_type = #tpu.core_type<tc>, window_params = [{transform_indices = @transform_0, window_bounds = array<i64: 8, 8, 128>}, {pipeline_mode = #tpu.pipeline_mode<synchronous>, transform_indices = @transform_1, window_bounds = array<i64: 128, 512>}, {pipeline_mode = #tpu.pipeline_mode<synchronous>, transform_indices = @transform_2, window_bounds = array<i64: 128, 512>}, {pipeline_mode = #tpu.pipeline_mode<synchronous>, transform_indices = @transform_3, window_bounds = array<i64: 1, 512>}, {pipeline_mode = #tpu.pipeline_mode<synchronous>, transform_indices = @transform_4, window_bounds = array<i64: 128, 128>}, {transform_indices = @transform_5, window_bounds = array<i64: 8, 8, 128>}, {transform_indices = @transform_6, window_bounds = array<i64: 8, 8, 128>}, {transform_indices = @transform_7, window_bounds = array<i64: 8, 128>}, {transform_indices = @transform_8, window_bounds = array<i64: 8, 128>}]} {
    %c0_i32 = arith.constant 0 : i32
    %0 = arith.cmpi eq, %arg1, %c0_i32 : i32
    %1 = arith.extui %0 : i1 to i32
    %c0_i32_0 = arith.constant 0 : i32
    %2 = arith.cmpi ne, %1, %c0_i32_0 : i32
    scf.if %2 {
      %cst_130 = arith.constant 0.000000e+00 : f32
      %410 = vector.broadcast %cst_130 : f32 to vector<8x128xf32>
      %c0_131 = arith.constant 0 : index
      %c0_132 = arith.constant 0 : index
      %411 = vector.load %arg12[%c0_131, %c0_132] : memref<8x128xf32, #tpu.memory_space<vmem>>, vector<8x128xf32>
      tpu.vector_store %arg12[%c0_131, %c0_132], %410 {strides = array<i32>} : memref<8x128xf32, #tpu.memory_space<vmem>>, vector<8x128xf32>,
      %cst_133 = arith.constant 0.000000e+00 : f32
      %412 = vector.broadcast %cst_133 : f32 to vector<8x128xf32>
      %c0_134 = arith.constant 0 : index
      %c0_135 = arith.constant 0 : index
      %413 = vector.load %arg13[%c0_134, %c0_135] : memref<8x128xf32, #tpu.memory_space<vmem>>, vector<8x128xf32>
      tpu.vector_store %arg13[%c0_134, %c0_135], %412 {strides = array<i32>} : memref<8x128xf32, #tpu.memory_space<vmem>>, vector<8x128xf32>,
    } else {
    }
    %c0 = arith.constant 0 : index
    %c0_1 = arith.constant 0 : index
    %c0_2 = arith.constant 0 : index
    %3 = vector.load %arg2[%c0, %c0_1, %c0_2] : memref<8x8x128xf32, #tpu.memory_space<vmem>>, vector<8x8x128xf32>
    %4 = vector.shape_cast %3 : vector<8x8x128xf32> to vector<64x128xf32>
    %c0_3 = arith.constant 0 : index
    %c0_4 = arith.constant 0 : index
    %5 = vector.load %arg3[%c0_3, %c0_4] : memref<128x512xf32, #tpu.memory_space<vmem>>, vector<128x512xf32>
    %cst = arith.constant dense<0.000000e+00> : vector<64x512xf32>
    %6 = tpu.matmul %4, %5, %cst {dimension_numbers = #tpu.dot_dimension_numbers<[1], [0], [0], [1], [0, 0, 1, 1], [], []>} : vector<64x128xf32>, vector<128x512xf32>, vector<64x512xf32> -> vector<64x512xf32>
    %c0_5 = arith.constant 0 : index
    %c0_6 = arith.constant 0 : index
    %7 = vector.load %arg5[%c0_5, %c0_6] : memref<1x512xf32, #tpu.memory_space<vmem>>, vector<1x512xf32>
    %8 = vector.broadcast %7 : vector<1x512xf32> to vector<64x512xf32>
    %9 = arith.addf %6, %8 : vector<64x512xf32>
    %10 = vector.shape_cast %9 : vector<64x512xf32> to vector<8x8x512xf32>
    %c0_7 = arith.constant 0 : index
    %c0_8 = arith.constant 0 : index
    %c0_9 = arith.constant 0 : index
    %11 = vector.load %arg11[%c0_7, %c0_8, %c0_9] : memref<8x8x512xf32, #tpu.memory_space<vmem>>, vector<8x8x512xf32>
    tpu.vector_store %arg11[%c0_7, %c0_8, %c0_9], %10 {strides = array<i32>} : memref<8x8x512xf32, #tpu.memory_space<vmem>>, vector<8x8x512xf32>,
    %c0_10 = arith.constant 0 : index
    %c0_11 = arith.constant 0 : index
    %12 = vector.load %arg4[%c0_10, %c0_11] : memref<128x512xf32, #tpu.memory_space<vmem>>, vector<128x512xf32>
    %c0_12 = arith.constant 0 : index
    %c0_13 = arith.constant 0 : index
    %13 = vector.load %arg12[%c0_12, %c0_13] : memref<8x128xf32, #tpu.memory_space<vmem>>, vector<8x128xf32>
    %c0_14 = arith.constant 0 : index
    %c0_15 = arith.constant 0 : index
    %14 = vector.load %arg13[%c0_14, %c0_15] : memref<8x128xf32, #tpu.memory_space<vmem>>, vector<8x128xf32>
    %c8_i32 = arith.constant 8 : i32
    %15 = arith.muli %arg1, %c8_i32 : i32
    %c0_16 = arith.constant 0 : index
    %c0_17 = arith.constant 0 : index
    %c0_18 = arith.constant 0 : index
    %16 = vector.load %arg11[%c0_16, %c0_17, %c0_18] : memref<8x8x512xf32, #tpu.memory_space<vmem>>, vector<1x8x512xf32>
    %17 = vector.shape_cast %16 : vector<1x8x512xf32> to vector<8x512xf32>
    %cst_19 = arith.constant dense<0.000000e+00> : vector<8x512xf32>
    %18 = tpu.matmul %13, %12, %cst_19 {dimension_numbers = #tpu.dot_dimension_numbers<[1], [0], [0], [1], [0, 0, 1, 1], [], []>} : vector<8x128xf32>, vector<128x512xf32>, vector<8x512xf32> -> vector<8x512xf32>
    %19 = arith.addf %17, %18 : vector<8x512xf32>
    %20 = vector.extract_strided_slice %19 {offsets = [0, 0], sizes = [8, 128], strides = [1, 1]} : vector<8x512xf32> to vector<8x128xf32>
    %21 = arith.negf %20 : vector<8x128xf32>
    %22 = math.exp %21 : vector<8x128xf32>
    %cst_20 = arith.constant 1.000000e+00 : f32
    %23 = vector.broadcast %cst_20 : f32 to vector<8x128xf32>
    %24 = arith.addf %23, %22 : vector<8x128xf32>
    %25 = arith.divf %23, %24 : vector<8x128xf32>
    %26 = vector.extract_strided_slice %19 {offsets = [0, 128], sizes = [8, 128], strides = [1, 1]} : vector<8x512xf32> to vector<8x128xf32>
    %27 = arith.negf %26 : vector<8x128xf32>
    %28 = math.exp %27 : vector<8x128xf32>
    %cst_21 = arith.constant 1.000000e+00 : f32
    %29 = vector.broadcast %cst_21 : f32 to vector<8x128xf32>
    %30 = arith.addf %29, %28 : vector<8x128xf32>
    %31 = arith.divf %29, %30 : vector<8x128xf32>
    %32 = vector.extract_strided_slice %19 {offsets = [0, 256], sizes = [8, 128], strides = [1, 1]} : vector<8x512xf32> to vector<8x128xf32>
    %33 = math.tanh %32 : vector<8x128xf32>
    %34 = vector.extract_strided_slice %19 {offsets = [0, 384], sizes = [8, 128], strides = [1, 1]} : vector<8x512xf32> to vector<8x128xf32>
    %35 = arith.negf %34 : vector<8x128xf32>
    %36 = math.exp %35 : vector<8x128xf32>
    %cst_22 = arith.constant 1.000000e+00 : f32
    %37 = vector.broadcast %cst_22 : f32 to vector<8x128xf32>
    %38 = arith.addf %37, %36 : vector<8x128xf32>
    %39 = arith.divf %37, %38 : vector<8x128xf32>
    %40 = arith.mulf %31, %14 : vector<8x128xf32>
    %41 = arith.mulf %25, %33 : vector<8x128xf32>
    %42 = arith.addf %40, %41 : vector<8x128xf32>
    %43 = math.tanh %42 : vector<8x128xf32>
    %44 = arith.mulf %39, %43 : vector<8x128xf32>
    %c0_i32_23 = arith.constant 0 : i32
    %45 = arith.addi %15, %c0_i32_23 : i32
    %c27_i32 = arith.constant 27 : i32
    %46 = arith.cmpi slt, %45, %c27_i32 : i32
    %47 = arith.extui %46 : i1 to i32
    %48 = arith.sitofp %47 : i32 to f32
    %49 = vector.broadcast %48 : f32 to vector<8x128xf32>
    %50 = arith.mulf %49, %44 : vector<8x128xf32>
    %cst_24 = arith.constant 1.000000e+00 : f32
    %51 = arith.subf %cst_24, %48 : f32
    %52 = vector.broadcast %51 : f32 to vector<8x128xf32>
    %53 = arith.mulf %52, %13 : vector<8x128xf32>
    %54 = arith.addf %50, %53 : vector<8x128xf32>
    %55 = vector.broadcast %48 : f32 to vector<8x128xf32>
    %56 = arith.mulf %55, %42 : vector<8x128xf32>
    %cst_25 = arith.constant 1.000000e+00 : f32
    %57 = arith.subf %cst_25, %48 : f32
    %58 = vector.broadcast %57 : f32 to vector<8x128xf32>
    %59 = arith.mulf %58, %14 : vector<8x128xf32>
    %60 = arith.addf %56, %59 : vector<8x128xf32>
    %c0_26 = arith.constant 0 : index
    %c0_27 = arith.constant 0 : index
    %c0_28 = arith.constant 0 : index
    %61 = vector.load %arg7[%c0_26, %c0_27, %c0_28] : memref<8x8x128xf32, #tpu.memory_space<vmem>>, vector<1x8x128xf32>
    %62 = vector.shape_cast %61 : vector<1x8x128xf32> to vector<8x128xf32>
    %63 = vector.shape_cast %54 : vector<8x128xf32> to vector<1x8x128xf32>
    tpu.vector_store %arg7[%c0_26, %c0_27, %c0_28], %63 {strides = array<i32>} : memref<8x8x128xf32, #tpu.memory_space<vmem>>, vector<1x8x128xf32>,
    %c1 = arith.constant 1 : index
    %c0_29 = arith.constant 0 : index
    %c0_30 = arith.constant 0 : index
    %64 = vector.load %arg11[%c1, %c0_29, %c0_30] : memref<8x8x512xf32, #tpu.memory_space<vmem>>, vector<1x8x512xf32>
    %65 = vector.shape_cast %64 : vector<1x8x512xf32> to vector<8x512xf32>
    %cst_31 = arith.constant dense<0.000000e+00> : vector<8x512xf32>
    %66 = tpu.matmul %54, %12, %cst_31 {dimension_numbers = #tpu.dot_dimension_numbers<[1], [0], [0], [1], [0, 0, 1, 1], [], []>} : vector<8x128xf32>, vector<128x512xf32>, vector<8x512xf32> -> vector<8x512xf32>
    %67 = arith.addf %65, %66 : vector<8x512xf32>
    %68 = vector.extract_strided_slice %67 {offsets = [0, 0], sizes = [8, 128], strides = [1, 1]} : vector<8x512xf32> to vector<8x128xf32>
    %69 = arith.negf %68 : vector<8x128xf32>
    %70 = math.exp %69 : vector<8x128xf32>
    %cst_32 = arith.constant 1.000000e+00 : f32
    %71 = vector.broadcast %cst_32 : f32 to vector<8x128xf32>
    %72 = arith.addf %71, %70 : vector<8x128xf32>
    %73 = arith.divf %71, %72 : vector<8x128xf32>
    %74 = vector.extract_strided_slice %67 {offsets = [0, 128], sizes = [8, 128], strides = [1, 1]} : vector<8x512xf32> to vector<8x128xf32>
    %75 = arith.negf %74 : vector<8x128xf32>
    %76 = math.exp %75 : vector<8x128xf32>
    %cst_33 = arith.constant 1.000000e+00 : f32
    %77 = vector.broadcast %cst_33 : f32 to vector<8x128xf32>
    %78 = arith.addf %77, %76 : vector<8x128xf32>
    %79 = arith.divf %77, %78 : vector<8x128xf32>
    %80 = vector.extract_strided_slice %67 {offsets = [0, 256], sizes = [8, 128], strides = [1, 1]} : vector<8x512xf32> to vector<8x128xf32>
    %81 = math.tanh %80 : vector<8x128xf32>
    %82 = vector.extract_strided_slice %67 {offsets = [0, 384], sizes = [8, 128], strides = [1, 1]} : vector<8x512xf32> to vector<8x128xf32>
    %83 = arith.negf %82 : vector<8x128xf32>
    %84 = math.exp %83 : vector<8x128xf32>
    %cst_34 = arith.constant 1.000000e+00 : f32
    %85 = vector.broadcast %cst_34 : f32 to vector<8x128xf32>
    %86 = arith.addf %85, %84 : vector<8x128xf32>
    %87 = arith.divf %85, %86 : vector<8x128xf32>
    %88 = arith.mulf %79, %60 : vector<8x128xf32>
    %89 = arith.mulf %73, %81 : vector<8x128xf32>
    %90 = arith.addf %88, %89 : vector<8x128xf32>
    %91 = math.tanh %90 : vector<8x128xf32>
    %92 = arith.mulf %87, %91 : vector<8x128xf32>
    %c1_i32 = arith.constant 1 : i32
    %93 = arith.addi %15, %c1_i32 : i32
    %c27_i32_35 = arith.constant 27 : i32
    %94 = arith.cmpi slt, %93, %c27_i32_35 : i32
    %95 = arith.extui %94 : i1 to i32
    %96 = arith.sitofp %95 : i32 to f32
    %97 = vector.broadcast %96 : f32 to vector<8x128xf32>
    %98 = arith.mulf %97, %92 : vector<8x128xf32>
    %cst_36 = arith.constant 1.000000e+00 : f32
    %99 = arith.subf %cst_36, %96 : f32
    %100 = vector.broadcast %99 : f32 to vector<8x128xf32>
    %101 = arith.mulf %100, %54 : vector<8x128xf32>
    %102 = arith.addf %98, %101 : vector<8x128xf32>
    %103 = vector.broadcast %96 : f32 to vector<8x128xf32>
    %104 = arith.mulf %103, %90 : vector<8x128xf32>
    %cst_37 = arith.constant 1.000000e+00 : f32
    %105 = arith.subf %cst_37, %96 : f32
    %106 = vector.broadcast %105 : f32 to vector<8x128xf32>
    %107 = arith.mulf %106, %60 : vector<8x128xf32>
    %108 = arith.addf %104, %107 : vector<8x128xf32>
    %c1_38 = arith.constant 1 : index
    %c0_39 = arith.constant 0 : index
    %c0_40 = arith.constant 0 : index
    %109 = vector.load %arg7[%c1_38, %c0_39, %c0_40] : memref<8x8x128xf32, #tpu.memory_space<vmem>>, vector<1x8x128xf32>
    %110 = vector.shape_cast %109 : vector<1x8x128xf32> to vector<8x128xf32>
    %111 = vector.shape_cast %102 : vector<8x128xf32> to vector<1x8x128xf32>
    tpu.vector_store %arg7[%c1_38, %c0_39, %c0_40], %111 {strides = array<i32>} : memref<8x8x128xf32, #tpu.memory_space<vmem>>, vector<1x8x128xf32>,
    %c2 = arith.constant 2 : index
    %c0_41 = arith.constant 0 : index
    %c0_42 = arith.constant 0 : index
    %112 = vector.load %arg11[%c2, %c0_41, %c0_42] : memref<8x8x512xf32, #tpu.memory_space<vmem>>, vector<1x8x512xf32>
    %113 = vector.shape_cast %112 : vector<1x8x512xf32> to vector<8x512xf32>
    %cst_43 = arith.constant dense<0.000000e+00> : vector<8x512xf32>
    %114 = tpu.matmul %102, %12, %cst_43 {dimension_numbers = #tpu.dot_dimension_numbers<[1], [0], [0], [1], [0, 0, 1, 1], [], []>} : vector<8x128xf32>, vector<128x512xf32>, vector<8x512xf32> -> vector<8x512xf32>
    %115 = arith.addf %113, %114 : vector<8x512xf32>
    %116 = vector.extract_strided_slice %115 {offsets = [0, 0], sizes = [8, 128], strides = [1, 1]} : vector<8x512xf32> to vector<8x128xf32>
    %117 = arith.negf %116 : vector<8x128xf32>
    %118 = math.exp %117 : vector<8x128xf32>
    %cst_44 = arith.constant 1.000000e+00 : f32
    %119 = vector.broadcast %cst_44 : f32 to vector<8x128xf32>
    %120 = arith.addf %119, %118 : vector<8x128xf32>
    %121 = arith.divf %119, %120 : vector<8x128xf32>
    %122 = vector.extract_strided_slice %115 {offsets = [0, 128], sizes = [8, 128], strides = [1, 1]} : vector<8x512xf32> to vector<8x128xf32>
    %123 = arith.negf %122 : vector<8x128xf32>
    %124 = math.exp %123 : vector<8x128xf32>
    %cst_45 = arith.constant 1.000000e+00 : f32
    %125 = vector.broadcast %cst_45 : f32 to vector<8x128xf32>
    %126 = arith.addf %125, %124 : vector<8x128xf32>
    %127 = arith.divf %125, %126 : vector<8x128xf32>
    %128 = vector.extract_strided_slice %115 {offsets = [0, 256], sizes = [8, 128], strides = [1, 1]} : vector<8x512xf32> to vector<8x128xf32>
    %129 = math.tanh %128 : vector<8x128xf32>
    %130 = vector.extract_strided_slice %115 {offsets = [0, 384], sizes = [8, 128], strides = [1, 1]} : vector<8x512xf32> to vector<8x128xf32>
    %131 = arith.negf %130 : vector<8x128xf32>
    %132 = math.exp %131 : vector<8x128xf32>
    %cst_46 = arith.constant 1.000000e+00 : f32
    %133 = vector.broadcast %cst_46 : f32 to vector<8x128xf32>
    %134 = arith.addf %133, %132 : vector<8x128xf32>
    %135 = arith.divf %133, %134 : vector<8x128xf32>
    %136 = arith.mulf %127, %108 : vector<8x128xf32>
    %137 = arith.mulf %121, %129 : vector<8x128xf32>
    %138 = arith.addf %136, %137 : vector<8x128xf32>
    %139 = math.tanh %138 : vector<8x128xf32>
    %140 = arith.mulf %135, %139 : vector<8x128xf32>
    %c2_i32 = arith.constant 2 : i32
    %141 = arith.addi %15, %c2_i32 : i32
    %c27_i32_47 = arith.constant 27 : i32
    %142 = arith.cmpi slt, %141, %c27_i32_47 : i32
    %143 = arith.extui %142 : i1 to i32
    %144 = arith.sitofp %143 : i32 to f32
    %145 = vector.broadcast %144 : f32 to vector<8x128xf32>
    %146 = arith.mulf %145, %140 : vector<8x128xf32>
    %cst_48 = arith.constant 1.000000e+00 : f32
    %147 = arith.subf %cst_48, %144 : f32
    %148 = vector.broadcast %147 : f32 to vector<8x128xf32>
    %149 = arith.mulf %148, %102 : vector<8x128xf32>
    %150 = arith.addf %146, %149 : vector<8x128xf32>
    %151 = vector.broadcast %144 : f32 to vector<8x128xf32>
    %152 = arith.mulf %151, %138 : vector<8x128xf32>
    %cst_49 = arith.constant 1.000000e+00 : f32
    %153 = arith.subf %cst_49, %144 : f32
    %154 = vector.broadcast %153 : f32 to vector<8x128xf32>
    %155 = arith.mulf %154, %108 : vector<8x128xf32>
    %156 = arith.addf %152, %155 : vector<8x128xf32>
    %c2_50 = arith.constant 2 : index
    %c0_51 = arith.constant 0 : index
    %c0_52 = arith.constant 0 : index
    %157 = vector.load %arg7[%c2_50, %c0_51, %c0_52] : memref<8x8x128xf32, #tpu.memory_space<vmem>>, vector<1x8x128xf32>
    %158 = vector.shape_cast %157 : vector<1x8x128xf32> to vector<8x128xf32>
    %159 = vector.shape_cast %150 : vector<8x128xf32> to vector<1x8x128xf32>
    tpu.vector_store %arg7[%c2_50, %c0_51, %c0_52], %159 {strides = array<i32>} : memref<8x8x128xf32, #tpu.memory_space<vmem>>, vector<1x8x128xf32>,
    %c3 = arith.constant 3 : index
    %c0_53 = arith.constant 0 : index
    %c0_54 = arith.constant 0 : index
    %160 = vector.load %arg11[%c3, %c0_53, %c0_54] : memref<8x8x512xf32, #tpu.memory_space<vmem>>, vector<1x8x512xf32>
    %161 = vector.shape_cast %160 : vector<1x8x512xf32> to vector<8x512xf32>
    %cst_55 = arith.constant dense<0.000000e+00> : vector<8x512xf32>
    %162 = tpu.matmul %150, %12, %cst_55 {dimension_numbers = #tpu.dot_dimension_numbers<[1], [0], [0], [1], [0, 0, 1, 1], [], []>} : vector<8x128xf32>, vector<128x512xf32>, vector<8x512xf32> -> vector<8x512xf32>
    %163 = arith.addf %161, %162 : vector<8x512xf32>
    %164 = vector.extract_strided_slice %163 {offsets = [0, 0], sizes = [8, 128], strides = [1, 1]} : vector<8x512xf32> to vector<8x128xf32>
    %165 = arith.negf %164 : vector<8x128xf32>
    %166 = math.exp %165 : vector<8x128xf32>
    %cst_56 = arith.constant 1.000000e+00 : f32
    %167 = vector.broadcast %cst_56 : f32 to vector<8x128xf32>
    %168 = arith.addf %167, %166 : vector<8x128xf32>
    %169 = arith.divf %167, %168 : vector<8x128xf32>
    %170 = vector.extract_strided_slice %163 {offsets = [0, 128], sizes = [8, 128], strides = [1, 1]} : vector<8x512xf32> to vector<8x128xf32>
    %171 = arith.negf %170 : vector<8x128xf32>
    %172 = math.exp %171 : vector<8x128xf32>
    %cst_57 = arith.constant 1.000000e+00 : f32
    %173 = vector.broadcast %cst_57 : f32 to vector<8x128xf32>
    %174 = arith.addf %173, %172 : vector<8x128xf32>
    %175 = arith.divf %173, %174 : vector<8x128xf32>
    %176 = vector.extract_strided_slice %163 {offsets = [0, 256], sizes = [8, 128], strides = [1, 1]} : vector<8x512xf32> to vector<8x128xf32>
    %177 = math.tanh %176 : vector<8x128xf32>
    %178 = vector.extract_strided_slice %163 {offsets = [0, 384], sizes = [8, 128], strides = [1, 1]} : vector<8x512xf32> to vector<8x128xf32>
    %179 = arith.negf %178 : vector<8x128xf32>
    %180 = math.exp %179 : vector<8x128xf32>
    %cst_58 = arith.constant 1.000000e+00 : f32
    %181 = vector.broadcast %cst_58 : f32 to vector<8x128xf32>
    %182 = arith.addf %181, %180 : vector<8x128xf32>
    %183 = arith.divf %181, %182 : vector<8x128xf32>
    %184 = arith.mulf %175, %156 : vector<8x128xf32>
    %185 = arith.mulf %169, %177 : vector<8x128xf32>
    %186 = arith.addf %184, %185 : vector<8x128xf32>
    %187 = math.tanh %186 : vector<8x128xf32>
    %188 = arith.mulf %183, %187 : vector<8x128xf32>
    %c3_i32 = arith.constant 3 : i32
    %189 = arith.addi %15, %c3_i32 : i32
    %c27_i32_59 = arith.constant 27 : i32
    %190 = arith.cmpi slt, %189, %c27_i32_59 : i32
    %191 = arith.extui %190 : i1 to i32
    %192 = arith.sitofp %191 : i32 to f32
    %193 = vector.broadcast %192 : f32 to vector<8x128xf32>
    %194 = arith.mulf %193, %188 : vector<8x128xf32>
    %cst_60 = arith.constant 1.000000e+00 : f32
    %195 = arith.subf %cst_60, %192 : f32
    %196 = vector.broadcast %195 : f32 to vector<8x128xf32>
    %197 = arith.mulf %196, %150 : vector<8x128xf32>
    %198 = arith.addf %194, %197 : vector<8x128xf32>
    %199 = vector.broadcast %192 : f32 to vector<8x128xf32>
    %200 = arith.mulf %199, %186 : vector<8x128xf32>
    %cst_61 = arith.constant 1.000000e+00 : f32
    %201 = arith.subf %cst_61, %192 : f32
    %202 = vector.broadcast %201 : f32 to vector<8x128xf32>
    %203 = arith.mulf %202, %156 : vector<8x128xf32>
    %204 = arith.addf %200, %203 : vector<8x128xf32>
    %c3_62 = arith.constant 3 : index
    %c0_63 = arith.constant 0 : index
    %c0_64 = arith.constant 0 : index
    %205 = vector.load %arg7[%c3_62, %c0_63, %c0_64] : memref<8x8x128xf32, #tpu.memory_space<vmem>>, vector<1x8x128xf32>
    %206 = vector.shape_cast %205 : vector<1x8x128xf32> to vector<8x128xf32>
    %207 = vector.shape_cast %198 : vector<8x128xf32> to vector<1x8x128xf32>
    tpu.vector_store %arg7[%c3_62, %c0_63, %c0_64], %207 {strides = array<i32>} : memref<8x8x128xf32, #tpu.memory_space<vmem>>, vector<1x8x128xf32>,
    %c4 = arith.constant 4 : index
    %c0_65 = arith.constant 0 : index
    %c0_66 = arith.constant 0 : index
    %208 = vector.load %arg11[%c4, %c0_65, %c0_66] : memref<8x8x512xf32, #tpu.memory_space<vmem>>, vector<1x8x512xf32>
    %209 = vector.shape_cast %208 : vector<1x8x512xf32> to vector<8x512xf32>
    %cst_67 = arith.constant dense<0.000000e+00> : vector<8x512xf32>
    %210 = tpu.matmul %198, %12, %cst_67 {dimension_numbers = #tpu.dot_dimension_numbers<[1], [0], [0], [1], [0, 0, 1, 1], [], []>} : vector<8x128xf32>, vector<128x512xf32>, vector<8x512xf32> -> vector<8x512xf32>
    %211 = arith.addf %209, %210 : vector<8x512xf32>
    %212 = vector.extract_strided_slice %211 {offsets = [0, 0], sizes = [8, 128], strides = [1, 1]} : vector<8x512xf32> to vector<8x128xf32>
    %213 = arith.negf %212 : vector<8x128xf32>
    %214 = math.exp %213 : vector<8x128xf32>
    %cst_68 = arith.constant 1.000000e+00 : f32
    %215 = vector.broadcast %cst_68 : f32 to vector<8x128xf32>
    %216 = arith.addf %215, %214 : vector<8x128xf32>
    %217 = arith.divf %215, %216 : vector<8x128xf32>
    %218 = vector.extract_strided_slice %211 {offsets = [0, 128], sizes = [8, 128], strides = [1, 1]} : vector<8x512xf32> to vector<8x128xf32>
    %219 = arith.negf %218 : vector<8x128xf32>
    %220 = math.exp %219 : vector<8x128xf32>
    %cst_69 = arith.constant 1.000000e+00 : f32
    %221 = vector.broadcast %cst_69 : f32 to vector<8x128xf32>
    %222 = arith.addf %221, %220 : vector<8x128xf32>
    %223 = arith.divf %221, %222 : vector<8x128xf32>
    %224 = vector.extract_strided_slice %211 {offsets = [0, 256], sizes = [8, 128], strides = [1, 1]} : vector<8x512xf32> to vector<8x128xf32>
    %225 = math.tanh %224 : vector<8x128xf32>
    %226 = vector.extract_strided_slice %211 {offsets = [0, 384], sizes = [8, 128], strides = [1, 1]} : vector<8x512xf32> to vector<8x128xf32>
    %227 = arith.negf %226 : vector<8x128xf32>
    %228 = math.exp %227 : vector<8x128xf32>
    %cst_70 = arith.constant 1.000000e+00 : f32
    %229 = vector.broadcast %cst_70 : f32 to vector<8x128xf32>
    %230 = arith.addf %229, %228 : vector<8x128xf32>
    %231 = arith.divf %229, %230 : vector<8x128xf32>
    %232 = arith.mulf %223, %204 : vector<8x128xf32>
    %233 = arith.mulf %217, %225 : vector<8x128xf32>
    %234 = arith.addf %232, %233 : vector<8x128xf32>
    %235 = math.tanh %234 : vector<8x128xf32>
    %236 = arith.mulf %231, %235 : vector<8x128xf32>
    %c4_i32 = arith.constant 4 : i32
    %237 = arith.addi %15, %c4_i32 : i32
    %c27_i32_71 = arith.constant 27 : i32
    %238 = arith.cmpi slt, %237, %c27_i32_71 : i32
    %239 = arith.extui %238 : i1 to i32
    %240 = arith.sitofp %239 : i32 to f32
    %241 = vector.broadcast %240 : f32 to vector<8x128xf32>
    %242 = arith.mulf %241, %236 : vector<8x128xf32>
    %cst_72 = arith.constant 1.000000e+00 : f32
    %243 = arith.subf %cst_72, %240 : f32
    %244 = vector.broadcast %243 : f32 to vector<8x128xf32>
    %245 = arith.mulf %244, %198 : vector<8x128xf32>
    %246 = arith.addf %242, %245 : vector<8x128xf32>
    %247 = vector.broadcast %240 : f32 to vector<8x128xf32>
    %248 = arith.mulf %247, %234 : vector<8x128xf32>
    %cst_73 = arith.constant 1.000000e+00 : f32
    %249 = arith.subf %cst_73, %240 : f32
    %250 = vector.broadcast %249 : f32 to vector<8x128xf32>
    %251 = arith.mulf %250, %204 : vector<8x128xf32>
    %252 = arith.addf %248, %251 : vector<8x128xf32>
    %c4_74 = arith.constant 4 : index
    %c0_75 = arith.constant 0 : index
    %c0_76 = arith.constant 0 : index
    %253 = vector.load %arg7[%c4_74, %c0_75, %c0_76] : memref<8x8x128xf32, #tpu.memory_space<vmem>>, vector<1x8x128xf32>
    %254 = vector.shape_cast %253 : vector<1x8x128xf32> to vector<8x128xf32>
    %255 = vector.shape_cast %246 : vector<8x128xf32> to vector<1x8x128xf32>
    tpu.vector_store %arg7[%c4_74, %c0_75, %c0_76], %255 {strides = array<i32>} : memref<8x8x128xf32, #tpu.memory_space<vmem>>, vector<1x8x128xf32>,
    %c5 = arith.constant 5 : index
    %c0_77 = arith.constant 0 : index
    %c0_78 = arith.constant 0 : index
    %256 = vector.load %arg11[%c5, %c0_77, %c0_78] : memref<8x8x512xf32, #tpu.memory_space<vmem>>, vector<1x8x512xf32>
    %257 = vector.shape_cast %256 : vector<1x8x512xf32> to vector<8x512xf32>
    %cst_79 = arith.constant dense<0.000000e+00> : vector<8x512xf32>
    %258 = tpu.matmul %246, %12, %cst_79 {dimension_numbers = #tpu.dot_dimension_numbers<[1], [0], [0], [1], [0, 0, 1, 1], [], []>} : vector<8x128xf32>, vector<128x512xf32>, vector<8x512xf32> -> vector<8x512xf32>
    %259 = arith.addf %257, %258 : vector<8x512xf32>
    %260 = vector.extract_strided_slice %259 {offsets = [0, 0], sizes = [8, 128], strides = [1, 1]} : vector<8x512xf32> to vector<8x128xf32>
    %261 = arith.negf %260 : vector<8x128xf32>
    %262 = math.exp %261 : vector<8x128xf32>
    %cst_80 = arith.constant 1.000000e+00 : f32
    %263 = vector.broadcast %cst_80 : f32 to vector<8x128xf32>
    %264 = arith.addf %263, %262 : vector<8x128xf32>
    %265 = arith.divf %263, %264 : vector<8x128xf32>
    %266 = vector.extract_strided_slice %259 {offsets = [0, 128], sizes = [8, 128], strides = [1, 1]} : vector<8x512xf32> to vector<8x128xf32>
    %267 = arith.negf %266 : vector<8x128xf32>
    %268 = math.exp %267 : vector<8x128xf32>
    %cst_81 = arith.constant 1.000000e+00 : f32
    %269 = vector.broadcast %cst_81 : f32 to vector<8x128xf32>
    %270 = arith.addf %269, %268 : vector<8x128xf32>
    %271 = arith.divf %269, %270 : vector<8x128xf32>
    %272 = vector.extract_strided_slice %259 {offsets = [0, 256], sizes = [8, 128], strides = [1, 1]} : vector<8x512xf32> to vector<8x128xf32>
    %273 = math.tanh %272 : vector<8x128xf32>
    %274 = vector.extract_strided_slice %259 {offsets = [0, 384], sizes = [8, 128], strides = [1, 1]} : vector<8x512xf32> to vector<8x128xf32>
    %275 = arith.negf %274 : vector<8x128xf32>
    %276 = math.exp %275 : vector<8x128xf32>
    %cst_82 = arith.constant 1.000000e+00 : f32
    %277 = vector.broadcast %cst_82 : f32 to vector<8x128xf32>
    %278 = arith.addf %277, %276 : vector<8x128xf32>
    %279 = arith.divf %277, %278 : vector<8x128xf32>
    %280 = arith.mulf %271, %252 : vector<8x128xf32>
    %281 = arith.mulf %265, %273 : vector<8x128xf32>
    %282 = arith.addf %280, %281 : vector<8x128xf32>
    %283 = math.tanh %282 : vector<8x128xf32>
    %284 = arith.mulf %279, %283 : vector<8x128xf32>
    %c5_i32 = arith.constant 5 : i32
    %285 = arith.addi %15, %c5_i32 : i32
    %c27_i32_83 = arith.constant 27 : i32
    %286 = arith.cmpi slt, %285, %c27_i32_83 : i32
    %287 = arith.extui %286 : i1 to i32
    %288 = arith.sitofp %287 : i32 to f32
    %289 = vector.broadcast %288 : f32 to vector<8x128xf32>
    %290 = arith.mulf %289, %284 : vector<8x128xf32>
    %cst_84 = arith.constant 1.000000e+00 : f32
    %291 = arith.subf %cst_84, %288 : f32
    %292 = vector.broadcast %291 : f32 to vector<8x128xf32>
    %293 = arith.mulf %292, %246 : vector<8x128xf32>
    %294 = arith.addf %290, %293 : vector<8x128xf32>
    %295 = vector.broadcast %288 : f32 to vector<8x128xf32>
    %296 = arith.mulf %295, %282 : vector<8x128xf32>
    %cst_85 = arith.constant 1.000000e+00 : f32
    %297 = arith.subf %cst_85, %288 : f32
    %298 = vector.broadcast %297 : f32 to vector<8x128xf32>
    %299 = arith.mulf %298, %252 : vector<8x128xf32>
    %300 = arith.addf %296, %299 : vector<8x128xf32>
    %c5_86 = arith.constant 5 : index
    %c0_87 = arith.constant 0 : index
    %c0_88 = arith.constant 0 : index
    %301 = vector.load %arg7[%c5_86, %c0_87, %c0_88] : memref<8x8x128xf32, #tpu.memory_space<vmem>>, vector<1x8x128xf32>
    %302 = vector.shape_cast %301 : vector<1x8x128xf32> to vector<8x128xf32>
    %303 = vector.shape_cast %294 : vector<8x128xf32> to vector<1x8x128xf32>
    tpu.vector_store %arg7[%c5_86, %c0_87, %c0_88], %303 {strides = array<i32>} : memref<8x8x128xf32, #tpu.memory_space<vmem>>, vector<1x8x128xf32>,
    %c6 = arith.constant 6 : index
    %c0_89 = arith.constant 0 : index
    %c0_90 = arith.constant 0 : index
    %304 = vector.load %arg11[%c6, %c0_89, %c0_90] : memref<8x8x512xf32, #tpu.memory_space<vmem>>, vector<1x8x512xf32>
    %305 = vector.shape_cast %304 : vector<1x8x512xf32> to vector<8x512xf32>
    %cst_91 = arith.constant dense<0.000000e+00> : vector<8x512xf32>
    %306 = tpu.matmul %294, %12, %cst_91 {dimension_numbers = #tpu.dot_dimension_numbers<[1], [0], [0], [1], [0, 0, 1, 1], [], []>} : vector<8x128xf32>, vector<128x512xf32>, vector<8x512xf32> -> vector<8x512xf32>
    %307 = arith.addf %305, %306 : vector<8x512xf32>
    %308 = vector.extract_strided_slice %307 {offsets = [0, 0], sizes = [8, 128], strides = [1, 1]} : vector<8x512xf32> to vector<8x128xf32>
    %309 = arith.negf %308 : vector<8x128xf32>
    %310 = math.exp %309 : vector<8x128xf32>
    %cst_92 = arith.constant 1.000000e+00 : f32
    %311 = vector.broadcast %cst_92 : f32 to vector<8x128xf32>
    %312 = arith.addf %311, %310 : vector<8x128xf32>
    %313 = arith.divf %311, %312 : vector<8x128xf32>
    %314 = vector.extract_strided_slice %307 {offsets = [0, 128], sizes = [8, 128], strides = [1, 1]} : vector<8x512xf32> to vector<8x128xf32>
    %315 = arith.negf %314 : vector<8x128xf32>
    %316 = math.exp %315 : vector<8x128xf32>
    %cst_93 = arith.constant 1.000000e+00 : f32
    %317 = vector.broadcast %cst_93 : f32 to vector<8x128xf32>
    %318 = arith.addf %317, %316 : vector<8x128xf32>
    %319 = arith.divf %317, %318 : vector<8x128xf32>
    %320 = vector.extract_strided_slice %307 {offsets = [0, 256], sizes = [8, 128], strides = [1, 1]} : vector<8x512xf32> to vector<8x128xf32>
    %321 = math.tanh %320 : vector<8x128xf32>
    %322 = vector.extract_strided_slice %307 {offsets = [0, 384], sizes = [8, 128], strides = [1, 1]} : vector<8x512xf32> to vector<8x128xf32>
    %323 = arith.negf %322 : vector<8x128xf32>
    %324 = math.exp %323 : vector<8x128xf32>
    %cst_94 = arith.constant 1.000000e+00 : f32
    %325 = vector.broadcast %cst_94 : f32 to vector<8x128xf32>
    %326 = arith.addf %325, %324 : vector<8x128xf32>
    %327 = arith.divf %325, %326 : vector<8x128xf32>
    %328 = arith.mulf %319, %300 : vector<8x128xf32>
    %329 = arith.mulf %313, %321 : vector<8x128xf32>
    %330 = arith.addf %328, %329 : vector<8x128xf32>
    %331 = math.tanh %330 : vector<8x128xf32>
    %332 = arith.mulf %327, %331 : vector<8x128xf32>
    %c6_i32 = arith.constant 6 : i32
    %333 = arith.addi %15, %c6_i32 : i32
    %c27_i32_95 = arith.constant 27 : i32
    %334 = arith.cmpi slt, %333, %c27_i32_95 : i32
    %335 = arith.extui %334 : i1 to i32
    %336 = arith.sitofp %335 : i32 to f32
    %337 = vector.broadcast %336 : f32 to vector<8x128xf32>
    %338 = arith.mulf %337, %332 : vector<8x128xf32>
    %cst_96 = arith.constant 1.000000e+00 : f32
    %339 = arith.subf %cst_96, %336 : f32
    %340 = vector.broadcast %339 : f32 to vector<8x128xf32>
    %341 = arith.mulf %340, %294 : vector<8x128xf32>
    %342 = arith.addf %338, %341 : vector<8x128xf32>
    %343 = vector.broadcast %336 : f32 to vector<8x128xf32>
    %344 = arith.mulf %343, %330 : vector<8x128xf32>
    %cst_97 = arith.constant 1.000000e+00 : f32
    %345 = arith.subf %cst_97, %336 : f32
    %346 = vector.broadcast %345 : f32 to vector<8x128xf32>
    %347 = arith.mulf %346, %300 : vector<8x128xf32>
    %348 = arith.addf %344, %347 : vector<8x128xf32>
    %c6_98 = arith.constant 6 : index
    %c0_99 = arith.constant 0 : index
    %c0_100 = arith.constant 0 : index
    %349 = vector.load %arg7[%c6_98, %c0_99, %c0_100] : memref<8x8x128xf32, #tpu.memory_space<vmem>>, vector<1x8x128xf32>
    %350 = vector.shape_cast %349 : vector<1x8x128xf32> to vector<8x128xf32>
    %351 = vector.shape_cast %342 : vector<8x128xf32> to vector<1x8x128xf32>
    tpu.vector_store %arg7[%c6_98, %c0_99, %c0_100], %351 {strides = array<i32>} : memref<8x8x128xf32, #tpu.memory_space<vmem>>, vector<1x8x128xf32>,
    %c7 = arith.constant 7 : index
    %c0_101 = arith.constant 0 : index
    %c0_102 = arith.constant 0 : index
    %352 = vector.load %arg11[%c7, %c0_101, %c0_102] : memref<8x8x512xf32, #tpu.memory_space<vmem>>, vector<1x8x512xf32>
    %353 = vector.shape_cast %352 : vector<1x8x512xf32> to vector<8x512xf32>
    %cst_103 = arith.constant dense<0.000000e+00> : vector<8x512xf32>
    %354 = tpu.matmul %342, %12, %cst_103 {dimension_numbers = #tpu.dot_dimension_numbers<[1], [0], [0], [1], [0, 0, 1, 1], [], []>} : vector<8x128xf32>, vector<128x512xf32>, vector<8x512xf32> -> vector<8x512xf32>
    %355 = arith.addf %353, %354 : vector<8x512xf32>
    %356 = vector.extract_strided_slice %355 {offsets = [0, 0], sizes = [8, 128], strides = [1, 1]} : vector<8x512xf32> to vector<8x128xf32>
    %357 = arith.negf %356 : vector<8x128xf32>
    %358 = math.exp %357 : vector<8x128xf32>
    %cst_104 = arith.constant 1.000000e+00 : f32
    %359 = vector.broadcast %cst_104 : f32 to vector<8x128xf32>
    %360 = arith.addf %359, %358 : vector<8x128xf32>
    %361 = arith.divf %359, %360 : vector<8x128xf32>
    %362 = vector.extract_strided_slice %355 {offsets = [0, 128], sizes = [8, 128], strides = [1, 1]} : vector<8x512xf32> to vector<8x128xf32>
    %363 = arith.negf %362 : vector<8x128xf32>
    %364 = math.exp %363 : vector<8x128xf32>
    %cst_105 = arith.constant 1.000000e+00 : f32
    %365 = vector.broadcast %cst_105 : f32 to vector<8x128xf32>
    %366 = arith.addf %365, %364 : vector<8x128xf32>
    %367 = arith.divf %365, %366 : vector<8x128xf32>
    %368 = vector.extract_strided_slice %355 {offsets = [0, 256], sizes = [8, 128], strides = [1, 1]} : vector<8x512xf32> to vector<8x128xf32>
    %369 = math.tanh %368 : vector<8x128xf32>
    %370 = vector.extract_strided_slice %355 {offsets = [0, 384], sizes = [8, 128], strides = [1, 1]} : vector<8x512xf32> to vector<8x128xf32>
    %371 = arith.negf %370 : vector<8x128xf32>
    %372 = math.exp %371 : vector<8x128xf32>
    %cst_106 = arith.constant 1.000000e+00 : f32
    %373 = vector.broadcast %cst_106 : f32 to vector<8x128xf32>
    %374 = arith.addf %373, %372 : vector<8x128xf32>
    %375 = arith.divf %373, %374 : vector<8x128xf32>
    %376 = arith.mulf %367, %348 : vector<8x128xf32>
    %377 = arith.mulf %361, %369 : vector<8x128xf32>
    %378 = arith.addf %376, %377 : vector<8x128xf32>
    %379 = math.tanh %378 : vector<8x128xf32>
    %380 = arith.mulf %375, %379 : vector<8x128xf32>
    %c7_i32 = arith.constant 7 : i32
    %381 = arith.addi %15, %c7_i32 : i32
    %c27_i32_107 = arith.constant 27 : i32
    %382 = arith.cmpi slt, %381, %c27_i32_107 : i32
    %383 = arith.extui %382 : i1 to i32
    %384 = arith.sitofp %383 : i32 to f32
    %385 = vector.broadcast %384 : f32 to vector<8x128xf32>
    %386 = arith.mulf %385, %380 : vector<8x128xf32>
    %cst_108 = arith.constant 1.000000e+00 : f32
    %387 = arith.subf %cst_108, %384 : f32
    %388 = vector.broadcast %387 : f32 to vector<8x128xf32>
    %389 = arith.mulf %388, %342 : vector<8x128xf32>
    %390 = arith.addf %386, %389 : vector<8x128xf32>
    %391 = vector.broadcast %384 : f32 to vector<8x128xf32>
    %392 = arith.mulf %391, %378 : vector<8x128xf32>
    %cst_109 = arith.constant 1.000000e+00 : f32
    %393 = arith.subf %cst_109, %384 : f32
    %394 = vector.broadcast %393 : f32 to vector<8x128xf32>
    %395 = arith.mulf %394, %348 : vector<8x128xf32>
    %396 = arith.addf %392, %395 : vector<8x128xf32>
    %c7_110 = arith.constant 7 : index
    %c0_111 = arith.constant 0 : index
    %c0_112 = arith.constant 0 : index
    %397 = vector.load %arg7[%c7_110, %c0_111, %c0_112] : memref<8x8x128xf32, #tpu.memory_space<vmem>>, vector<1x8x128xf32>
    %398 = vector.shape_cast %397 : vector<1x8x128xf32> to vector<8x128xf32>
    %399 = vector.shape_cast %390 : vector<8x128xf32> to vector<1x8x128xf32>
    tpu.vector_store %arg7[%c7_110, %c0_111, %c0_112], %399 {strides = array<i32>} : memref<8x8x128xf32, #tpu.memory_space<vmem>>, vector<1x8x128xf32>,
    %c0_113 = arith.constant 0 : index
    %c0_114 = arith.constant 0 : index
    %400 = vector.load %arg12[%c0_113, %c0_114] : memref<8x128xf32, #tpu.memory_space<vmem>>, vector<8x128xf32>
    tpu.vector_store %arg12[%c0_113, %c0_114], %390 {strides = array<i32>} : memref<8x128xf32, #tpu.memory_space<vmem>>, vector<8x128xf32>,
    %c0_115 = arith.constant 0 : index
    %c0_116 = arith.constant 0 : index
    %401 = vector.load %arg13[%c0_115, %c0_116] : memref<8x128xf32, #tpu.memory_space<vmem>>, vector<8x128xf32>
    tpu.vector_store %arg13[%c0_115, %c0_116], %396 {strides = array<i32>} : memref<8x128xf32, #tpu.memory_space<vmem>>, vector<8x128xf32>,
    %c0_117 = arith.constant 0 : index
    %c0_118 = arith.constant 0 : index
    %402 = vector.load %arg9[%c0_117, %c0_118] : memref<8x128xf32, #tpu.memory_space<vmem>>, vector<8x128xf32>
    tpu.vector_store %arg9[%c0_117, %c0_118], %390 {strides = array<i32>} : memref<8x128xf32, #tpu.memory_space<vmem>>, vector<8x128xf32>,
    %c0_119 = arith.constant 0 : index
    %c0_120 = arith.constant 0 : index
    %403 = vector.load %arg10[%c0_119, %c0_120] : memref<8x128xf32, #tpu.memory_space<vmem>>, vector<8x128xf32>
    tpu.vector_store %arg10[%c0_119, %c0_120], %396 {strides = array<i32>} : memref<8x128xf32, #tpu.memory_space<vmem>>, vector<8x128xf32>,
    %c0_121 = arith.constant 0 : index
    %c0_122 = arith.constant 0 : index
    %c0_123 = arith.constant 0 : index
    %404 = vector.load %arg7[%c0_121, %c0_122, %c0_123] : memref<8x8x128xf32, #tpu.memory_space<vmem>>, vector<8x8x128xf32>
    %405 = vector.shape_cast %404 : vector<8x8x128xf32> to vector<64x128xf32>
    %c0_124 = arith.constant 0 : index
    %c0_125 = arith.constant 0 : index
    %406 = vector.load %arg6[%c0_124, %c0_125] : memref<128x128xf32, #tpu.memory_space<vmem>>, vector<128x128xf32>
    %cst_126 = arith.constant dense<0.000000e+00> : vector<64x128xf32>
    %407 = tpu.matmul %405, %406, %cst_126 {dimension_numbers = #tpu.dot_dimension_numbers<[1], [0], [0], [1], [0, 0, 1, 1], [], []>} : vector<64x128xf32>, vector<128x128xf32>, vector<64x128xf32> -> vector<64x128xf32>
    %408 = vector.shape_cast %407 : vector<64x128xf32> to vector<8x8x128xf32>
    %c0_127 = arith.constant 0 : index
    %c0_128 = arith.constant 0 : index
    %c0_129 = arith.constant 0 : index
    %409 = vector.load %arg8[%c0_127, %c0_128, %c0_129] : memref<8x8x128xf32, #tpu.memory_space<vmem>>, vector<8x8x128xf32>
    tpu.vector_store %arg8[%c0_127, %c0_128, %c0_129], %408 {strides = array<i32>} : memref<8x8x128xf32, #tpu.memory_space<vmem>>, vector<8x8x128xf32>,
    return
  }
  func.func @transform_0(%arg0: i32, %arg1: i32) -> (i32, i32, i32) {
    %c0_i32 = arith.constant 0 : i32
    %c0_i32_0 = arith.constant 0 : i32
    return %arg1, %arg0, %c0_i32 : i32, i32, i32
  }
  func.func @transform_1(%arg0: i32, %arg1: i32) -> (i32, i32) {
    %c0_i32 = arith.constant 0 : i32
    %c0_i32_0 = arith.constant 0 : i32
    %c0_i32_1 = arith.constant 0 : i32
    return %c0_i32, %c0_i32_0 : i32, i32
  }
  func.func @transform_2(%arg0: i32, %arg1: i32) -> (i32, i32) {
    %c0_i32 = arith.constant 0 : i32
    %c0_i32_0 = arith.constant 0 : i32
    %c0_i32_1 = arith.constant 0 : i32
    return %c0_i32, %c0_i32_0 : i32, i32
  }
  func.func @transform_3(%arg0: i32, %arg1: i32) -> (i32, i32) {
    %c0_i32 = arith.constant 0 : i32
    %c0_i32_0 = arith.constant 0 : i32
    %c0_i32_1 = arith.constant 0 : i32
    return %c0_i32, %c0_i32_0 : i32, i32
  }
  func.func @transform_4(%arg0: i32, %arg1: i32) -> (i32, i32) {
    %c0_i32 = arith.constant 0 : i32
    %c0_i32_0 = arith.constant 0 : i32
    %c0_i32_1 = arith.constant 0 : i32
    return %c0_i32, %c0_i32_0 : i32, i32
  }
  func.func @transform_5(%arg0: i32, %arg1: i32) -> (i32, i32, i32) {
    %c0_i32 = arith.constant 0 : i32
    %c0_i32_0 = arith.constant 0 : i32
    return %arg1, %arg0, %c0_i32 : i32, i32, i32
  }
  func.func @transform_6(%arg0: i32, %arg1: i32) -> (i32, i32, i32) {
    %c0_i32 = arith.constant 0 : i32
    %c0_i32_0 = arith.constant 0 : i32
    return %arg1, %arg0, %c0_i32 : i32, i32, i32
  }
  func.func @transform_7(%arg0: i32, %arg1: i32) -> (i32, i32) {
    %c0_i32 = arith.constant 0 : i32
    %c0_i32_0 = arith.constant 0 : i32
    return %arg0, %c0_i32 : i32, i32
  }
  func.func @transform_8(%arg0: i32, %arg1: i32) -> (i32, i32) {
    %c0_i32 = arith.constant 0 : i32
    %c0_i32_0 = arith.constant 0 : i32
    return %arg0, %c0_i32 : i32, i32
  }
}

</mosaic_0001>

<llo_original>
// kernel: tpu_custom_call.1
$region0: #{tpu_custom_call.1}
  #allocation0 [shape = 'u32[]', space=smem, size = 0x4, offset = 0x4, fixed_abs, tag = 'smem constant byte address 0x4 - core index']
  #allocation1 [shape = 'u32[144,128]{1,0:T(1,128)}', space=vmem, size = 0x12000, scoped, tag = 'internal scratch']
  #allocation2 [shape = 'f32[8,8,512]{2,1,0:T(8,128)}', space=vmem, size = 0x20000, scoped, tag = 'scratch operand']
  #allocation3 [shape = 'f32[8,128]{1,0:T(8,128)}', space=vmem, size = 0x1000, scoped, tag = 'scratch operand']
  #allocation4 [shape = 'f32[8,128]{1,0:T(8,128)}', space=vmem, size = 0x1000, scoped, tag = 'scratch operand']
  %s0 = inlined_call_operand.hbm [shape: f32[32,16,128], index: 0, kind: input, shape index: {}]
  %s1 = inlined_call_operand.hbm [shape: f32[128,512], index: 1, kind: input, shape index: {}]
  %s2 = inlined_call_operand.hbm [shape: f32[128,512], index: 2, kind: input, shape index: {}]
  %s3 = inlined_call_operand.vmem [shape: f32[1,512], index: 3, kind: input, shape index: {}]
  %s4 = inlined_call_operand.hbm [shape: f32[128,128], index: 4, kind: input, shape index: {}]
  %s5 = inlined_call_operand.hbm [shape: f32[32,16,128], index: 5, kind: output, shape index: {0}]
  %s6 = inlined_call_operand.hbm [shape: f32[32,16,128], index: 6, kind: output, shape index: {1}]
  %s7 = inlined_call_operand.hbm [shape: f32[16,128], index: 7, kind: output, shape index: {2}]
  %s8 = inlined_call_operand.hbm [shape: f32[16,128], index: 8, kind: output, shape index: {3}]
  %9 = xla_tuple %s5, %s6, %s7, %s8
  %s10 = sld [smem:[#allocation0]]
  $region97: #{tpu_custom_call.1} parent=0
    _
  %s12 = ssub.s32 1, %s10
  %s13 = scalar_select 0, %s12, %s10
  $region1: #{tpu_custom_call.1} parent=0
    #allocation5 [shape = 'u8[65536]{0}', space=vmem, size = 0x10000, scoped, tag = 'input window, operand 0']
    #allocation6 [shape = 's32[2]{0}', space=sflag, size = 0x8, scoped, tag = 'scoped memory for tpu_custom_call.1']
    #allocation7 [shape = 's32[2]{0}', space=sflag, size = 0x8, scoped, tag = 'scoped memory for tpu_custom_call.1']
    #allocation8 [shape = 'u8[262144]{0}', space=vmem, size = 0x40000, scoped, tag = 'input window, operand 1, single buffered']
    #allocation9 [shape = 's32[1]{0}', space=sflag, size = 0x4, scoped, tag = 'scoped memory for tpu_custom_call.1']
    #allocation10 [shape = 'u8[262144]{0}', space=vmem, size = 0x40000, scoped, tag = 'input window, operand 2, single buffered']
    #allocation11 [shape = 'u8[65536]{0}', space=vmem, size = 0x10000, scoped, tag = 'input window, operand 4, single buffered']
    #allocation12 [shape = 's32[1]{0}', space=sflag, size = 0x4, scoped, tag = 'scoped memory for tpu_custom_call.1']
    #allocation13 [shape = 'u8[65536]{0}', space=vmem, size = 0x10000, scoped, tag = 'output window, operand 0']
    #allocation14 [shape = 'u8[65536]{0}', space=vmem, size = 0x10000, scoped, tag = 'output window, operand 1']
    #allocation15 [shape = 's32[2]{0}', space=sflag, size = 0x8, scoped, tag = 'scoped memory for tpu_custom_call.1']
    #allocation16 [shape = 'u8[8192]{0}', space=vmem, size = 0x2000, scoped, tag = 'output window, operand 2']
    #allocation17 [shape = 'u8[8192]{0}', space=vmem, size = 0x2000, scoped, tag = 'output window, operand 3']
    #allocation18 [shape = 's32[2]{0}', space=sflag, size = 0x8, scoped, tag = 'scoped memory for tpu_custom_call.1']
    %14 = vsyncpa [#allocation6], 0
    %s15 = scalar_lea.sflag [#allocation6], 1
    %16 = vsyncpa %s15, 0
    %17 = vsyncpa [#allocation9], 0
    %18 = vsyncpa [#allocation12], 0
    %19 = vsyncpa [#allocation7], 0
    %s20 = scalar_lea.sflag [#allocation7], 1
    %21 = vsyncpa %s20, 0
    %22 = vsyncpa [#allocation15], 0
    %s23 = scalar_lea.sflag [#allocation15], 1
    %24 = vsyncpa %s23, 0
    %25 = vsyncpa [#allocation18], 0
    %s26 = scalar_lea.sflag [#allocation18], 1
    %27 = vsyncpa %s26, 0
    loop: start=0, step=1, limit=10
    $region2: #{tpu_custom_call.1} parent=1 // loop_pre_header
      _
    $region3: #{tpu_custom_call.1} parent=1 // loop_header
      %s29 = sphi 0, %s33
      %p30 = scmp.ge.s32.totalorder %s29, 10
      %s36 = sphi 0, %s48
      %s37 = sphi 0, %s44
      %s38 = sphi 0, %s36
      %s39 = sphi 0, %s37
      %s40 = sphi 0, %s38
      %s41 = sphi 0, %s39
      %s53 = sphi 0, %s55
      %s56 = sphi 0, %s53
      %s57 = sphi 0, %s56
      %s73 = sphi 0, %s57
      %s77 = sphi 0, %s77
      %s79 = sphi 0, %s77
      %s80 = sphi 0, %s79
      %s94 = sphi 0, %s80
      %s98 = sphi 0, %s98
      %s100 = sphi 0, %s98
      %s101 = sphi 0, %s100
      %s115 = sphi 0, %s101
      %s119 = sphi 0, %s119
      %s121 = sphi 0, %s119
      %s122 = sphi 0, %s121
      %s136 = sphi 0, %s122
      %s140 = sphi 0, %s140
      %s142 = sphi 0, %s140
      %s143 = sphi 0, %s142
      %s157 = sphi 0, %s143
      %s165 = sphi 0, %s167
      %s168 = sphi 0, %s165
      %s169 = sphi 0, %s168
      %s185 = sphi 0, %s169
      %s193 = sphi 0, %s195
      %s196 = sphi 0, %s193
      %s197 = sphi 0, %s196
      %s213 = sphi 0, %s197
      %s219 = sphi 0, %s221
      %s222 = sphi 0, %s219
      %s223 = sphi 0, %s222
      %s239 = sphi 0, %s223
      %s245 = sphi 0, %s247
      %s248 = sphi 0, %s245
      %s249 = sphi 0, %s248
      %s265 = sphi 0, %s249
    $region4: #{tpu_custom_call.1} parent=1 // loop_header_branch
      %32 = sbr.rel (%p30) target = $region8
    $region5: #{tpu_custom_call.1} parent=1 // loop_body
      %s34 = ssub.s32 %s29, 1
      %s35 = ssub.s32 %s29, 2
      %s42 = sadd.s32 1, %s37
      %p43 = scmp.ge.s32.totalorder %s42, 4
      %s44 = scalar_select %p43, 0, %s42
      %s45 = sadd.s32 1, %s36
      %s46 = scalar_select %p43, %s45, %s36
      %p47 = scmp.ge.s32.totalorder %s46, 2
      %s48 = scalar_select %p47, 0, %s46
      %s49 = ssub.s32 %s37, %s44
      %s50 = ssub.s32 %s36, %s48
      %s51 = sor.u32 %s49, %s50
      %p52 = scmp.eq.s32.totalorder %s51, 0
      %s54 = sadd.s32 %s53, 1
      %s55 = scalar_select %p52, %s53, %s54
      %p58 = pneg %p52
      %p59 = scmp.eq.s32.totalorder %s29, 7
      %p60 = por %p58, %p59
      %p61 = scmp.ne.s32.totalorder %s53, %s56
      %p62 = scmp.eq.s32.totalorder %s29, 0
      %p63 = por %p61, %p62
      %p64 = scmp.ne.s32.totalorder %s53, %s56
      %p65 = scmp.eq.s32.totalorder %s34, 7
      %p66 = por %p64, %p65
      %p67 = scmp.ne.s32.totalorder %s56, %s57
      %p68 = scmp.eq.s32.totalorder %s34, 0
      %p69 = por %p67, %p68
      %p70 = scmp.ne.s32.totalorder %s56, %s57
      %p71 = scmp.eq.s32.totalorder %s35, 7
      %p72 = por %p70, %p71
      %p74 = scmp.ne.s32.totalorder %s57, %s73
      %p75 = scmp.eq.s32.totalorder %s35, 0
      %p76 = por %p74, %p75
      %s78 = sadd.s32 %s77, 1
      %p81 = scmp.eq.s32.totalorder %s29, 7
      %p82 = scmp.ne.s32.totalorder %s77, %s79
      %p83 = scmp.eq.s32.totalorder %s29, 0
      %p84 = por %p82, %p83
      %p85 = scmp.ne.s32.totalorder %s77, %s79
      %p86 = scmp.eq.s32.totalorder %s34, 7
      %p87 = por %p85, %p86
      %p88 = scmp.ne.s32.totalorder %s79, %s80
      %p89 = scmp.eq.s32.totalorder %s34, 0
      %p90 = por %p88, %p89
      %p91 = scmp.ne.s32.totalorder %s79, %s80
      %p92 = scmp.eq.s32.totalorder %s35, 7
      %p93 = por %p91, %p92
      %p95 = scmp.ne.s32.totalorder %s80, %s94
      %p96 = scmp.eq.s32.totalorder %s35, 0
      %p97 = por %p95, %p96
      %s99 = sadd.s32 %s98, 1
      %p102 = scmp.eq.s32.totalorder %s29, 7
      %p103 = scmp.ne.s32.totalorder %s98, %s100
      %p104 = scmp.eq.s32.totalorder %s29, 0
      %p105 = por %p103, %p104
      %p106 = scmp.ne.s32.totalorder %s98, %s100
      %p107 = scmp.eq.s32.totalorder %s34, 7
      %p108 = por %p106, %p107
      %p109 = scmp.ne.s32.totalorder %s100, %s101
      %p110 = scmp.eq.s32.totalorder %s34, 0
      %p111 = por %p109, %p110
      %p112 = scmp.ne.s32.totalorder %s100, %s101
      %p113 = scmp.eq.s32.totalorder %s35, 7
      %p114 = por %p112, %p113
      %p116 = scmp.ne.s32.totalorder %s101, %s115
      %p117 = scmp.eq.s32.totalorder %s35, 0
      %p118 = por %p116, %p117
      %s120 = sadd.s32 %s119, 1
      %p123 = scmp.eq.s32.totalorder %s29, 7
      %p124 = scmp.ne.s32.totalorder %s119, %s121
      %p125 = scmp.eq.s32.totalorder %s29, 0
      %p126 = por %p124, %p125
      %p127 = scmp.ne.s32.totalorder %s119, %s121
      %p128 = scmp.eq.s32.totalorder %s34, 7
      %p129 = por %p127, %p128
      %p130 = scmp.ne.s32.totalorder %s121, %s122
      %p131 = scmp.eq.s32.totalorder %s34, 0
      %p132 = por %p130, %p131
      %p133 = scmp.ne.s32.totalorder %s121, %s122
      %p134 = scmp.eq.s32.totalorder %s35, 7
      %p135 = por %p133, %p134
      %p137 = scmp.ne.s32.totalorder %s122, %s136
      %p138 = scmp.eq.s32.totalorder %s35, 0
      %p139 = por %p137, %p138
      %s141 = sadd.s32 %s140, 1
      %p144 = scmp.eq.s32.totalorder %s29, 7
      %p145 = scmp.ne.s32.totalorder %s140, %s142
      %p146 = scmp.eq.s32.totalorder %s29, 0
      %p147 = por %p145, %p146
      %p148 = scmp.ne.s32.totalorder %s140, %s142
      %p149 = scmp.eq.s32.totalorder %s34, 7
      %p150 = por %p148, %p149
      %p151 = scmp.ne.s32.totalorder %s142, %s143
      %p152 = scmp.eq.s32.totalorder %s34, 0
      %p153 = por %p151, %p152
      %p154 = scmp.ne.s32.totalorder %s142, %s143
      %p155 = scmp.eq.s32.totalorder %s35, 7
      %p156 = por %p154, %p155
      %p158 = scmp.ne.s32.totalorder %s143, %s157
      %p159 = scmp.eq.s32.totalorder %s35, 0
      %p160 = por %p158, %p159
      %s161 = ssub.s32 %s37, %s44
      %s162 = ssub.s32 %s36, %s48
      %s163 = sor.u32 %s161, %s162
      %p164 = scmp.eq.s32.totalorder %s163, 0
      %s166 = sadd.s32 %s165, 1
      %s167 = scalar_select %p164, %s165, %s166
      %p170 = pneg %p164
      %p171 = scmp.eq.s32.totalorder %s29, 7
      %p172 = por %p170, %p171
      %p173 = scmp.ne.s32.totalorder %s165, %s168
      %p174 = scmp.eq.s32.totalorder %s29, 0
      %p175 = por %p173, %p174
      %p176 = scmp.ne.s32.totalorder %s165, %s168
      %p177 = scmp.eq.s32.totalorder %s34, 7
      %p178 = por %p176, %p177
      %p179 = scmp.ne.s32.totalorder %s168, %s169
      %p180 = scmp.eq.s32.totalorder %s34, 0
      %p181 = por %p179, %p180
      %p182 = scmp.ne.s32.totalorder %s168, %s169
      %p183 = scmp.eq.s32.totalorder %s35, 7
      %p184 = por %p182, %p183
      %p186 = scmp.ne.s32.totalorder %s169, %s185
      %p187 = scmp.eq.s32.totalorder %s35, 0
      %p188 = por %p186, %p187
      %s189 = ssub.s32 %s37, %s44
      %s190 = ssub.s32 %s36, %s48
      %s191 = sor.u32 %s189, %s190
      %p192 = scmp.eq.s32.totalorder %s191, 0
      %s194 = sadd.s32 %s193, 1
      %s195 = scalar_select %p192, %s193, %s194
      %p198 = pneg %p192
      %p199 = scmp.eq.s32.totalorder %s29, 7
      %p200 = por %p198, %p199
      %p201 = scmp.ne.s32.totalorder %s193, %s196
      %p202 = scmp.eq.s32.totalorder %s29, 0
      %p203 = por %p201, %p202
      %p204 = scmp.ne.s32.totalorder %s193, %s196
      %p205 = scmp.eq.s32.totalorder %s34, 7
      %p206 = por %p204, %p205
      %p207 = scmp.ne.s32.totalorder %s196, %s197
      %p208 = scmp.eq.s32.totalorder %s34, 0
      %p209 = por %p207, %p208
      %p210 = scmp.ne.s32.totalorder %s196, %s197
      %p211 = scmp.eq.s32.totalorder %s35, 7
      %p212 = por %p210, %p211
      %p214 = scmp.ne.s32.totalorder %s197, %s213
      %p215 = scmp.eq.s32.totalorder %s35, 0
      %p216 = por %p214, %p215
      %s217 = ssub.s32 %s36, %s48
      %p218 = scmp.eq.s32.totalorder %s217, 0
      %s220 = sadd.s32 %s219, 1
      %s221 = scalar_select %p218, %s219, %s220
      %p224 = pneg %p218
      %p225 = scmp.eq.s32.totalorder %s29, 7
      %p226 = por %p224, %p225
      %p227 = scmp.ne.s32.totalorder %s219, %s222
      %p228 = scmp.eq.s32.totalorder %s29, 0
      %p229 = por %p227, %p228
      %p230 = scmp.ne.s32.totalorder %s219, %s222
      %p231 = scmp.eq.s32.totalorder %s34, 7
      %p232 = por %p230, %p231
      %p233 = scmp.ne.s32.totalorder %s222, %s223
      %p234 = scmp.eq.s32.totalorder %s34, 0
      %p235 = por %p233, %p234
      %p236 = scmp.ne.s32.totalorder %s222, %s223
      %p237 = scmp.eq.s32.totalorder %s35, 7
      %p238 = por %p236, %p237
      %p240 = scmp.ne.s32.totalorder %s223, %s239
      %p241 = scmp.eq.s32.totalorder %s35, 0
      %p242 = por %p240, %p241
      %s243 = ssub.s32 %s36, %s48
      %p244 = scmp.eq.s32.totalorder %s243, 0
      %s246 = sadd.s32 %s245, 1
      %s247 = scalar_select %p244, %s245, %s246
      %p250 = pneg %p244
      %p251 = scmp.eq.s32.totalorder %s29, 7
      %p252 = por %p250, %p251
      %p253 = scmp.ne.s32.totalorder %s245, %s248
      %p254 = scmp.eq.s32.totalorder %s29, 0
      %p255 = por %p253, %p254
      %p256 = scmp.ne.s32.totalorder %s245, %s248
      %p257 = scmp.eq.s32.totalorder %s34, 7
      %p258 = por %p256, %p257
      %p259 = scmp.ne.s32.totalorder %s248, %s249
      %p260 = scmp.eq.s32.totalorder %s34, 0
      %p261 = por %p259, %p260
      %p262 = scmp.ne.s32.totalorder %s248, %s249
      %p263 = scmp.eq.s32.totalorder %s35, 7
      %p264 = por %p262, %p263
      %p266 = scmp.ne.s32.totalorder %s249, %s265
      %p267 = scmp.eq.s32.totalorder %s35, 0
      %p268 = por %p266, %p267
      %p269 = scmp.le.s32.totalorder 1, %s29
      %p270 = scmp.lt.s32.totalorder %s29, 9
      %p271 = pnand %p269, %p270
      %p272 = pneg %p271
      // Predicated region
      $region9: #{tpu_custom_call.1} parent=5 // pred_check
        _
      $region10: #{tpu_custom_call.1} parent=5 // pred_check_branch
        %274 = sbr.rel (%p271) target = $region12
      $region11: #{tpu_custom_call.1} parent=5 // pred_region
        %s275 = ssub.s32 %s29, 1
        // Predicated region
        $region13: #{tpu_custom_call.1} parent=11 // pred_check
          %p276 = pneg %p90
        $region14: #{tpu_custom_call.1} parent=11 // pred_check_branch
          %278 = sbr.rel (%p276) target = $region16
        $region15: #{tpu_custom_call.1} parent=11 // pred_region
          %s280 = ssub.s32 8192, 8192
          %281 = vsyncadd [#allocation9], %s280
          %s282 = sshll.u32 [#allocation8], 4
          %s283 = int_to_ptr.vmem [resolvable:$true] %s282
          %288 = dma.hbm_to_vmem [thread:$0]  %s1, 8192, %s283, [#allocation9], 512, 512, 32
        $region16: #{tpu_custom_call.1} parent=11 // pred_fallthru
          _
        // Predicated region
        $region17: #{tpu_custom_call.1} parent=11 // pred_check
          %p289 = pneg %p111
        $region18: #{tpu_custom_call.1} parent=11 // pred_check_branch
          %291 = sbr.rel (%p289) target = $region20
        $region19: #{tpu_custom_call.1} parent=11 // pred_region
          %s293 = ssub.s32 8192, 8192
          %294 = vsyncadd [#allocation9], %s293
          %s295 = sshll.u32 [#allocation10], 4
          %s296 = int_to_ptr.vmem [resolvable:$true] %s295
          %301 = dma.hbm_to_vmem [thread:$0]  %s2, 8192, %s296, [#allocation9], 512, 512, 32
        $region20: #{tpu_custom_call.1} parent=11 // pred_fallthru
          _
        // Predicated region
        $region21: #{tpu_custom_call.1} parent=11 // pred_check
          %p302 = pneg %p132
        $region22: #{tpu_custom_call.1} parent=11 // pred_check_branch
          %304 = sbr.rel (%p302) target = $region24
        $region23: #{tpu_custom_call.1} parent=11 // pred_region
          _
        $region24: #{tpu_custom_call.1} parent=11 // pred_fallthru
          _
        // Predicated region
        $region25: #{tpu_custom_call.1} parent=11 // pred_check
          %p305 = pneg %p153
        $region26: #{tpu_custom_call.1} parent=11 // pred_check_branch
          %307 = sbr.rel (%p305) target = $region28
        $region27: #{tpu_custom_call.1} parent=11 // pred_region
          %s309 = ssub.s32 2048, 2048
          %310 = vsyncadd [#allocation12], %s309
          %s311 = sshll.u32 [#allocation11], 4
          %s312 = int_to_ptr.vmem [resolvable:$true] %s311
          %317 = dma.hbm_to_vmem [thread:$0]  %s4, 2048, %s312, [#allocation12], 128, 128, 8
        $region28: #{tpu_custom_call.1} parent=11 // pred_fallthru
          _
      $region12: #{tpu_custom_call.1} parent=5 // pred_fallthru
        _
      %p318 = scmp.lt.s32.totalorder %s29, 8
      // Predicated region
      $region29: #{tpu_custom_call.1} parent=5 // pred_check
        %p319 = pneg %p318
      $region30: #{tpu_custom_call.1} parent=5 // pred_check_branch
        %321 = sbr.rel (%p319) target = $region32
      $region31: #{tpu_custom_call.1} parent=5 // pred_region
        // Predicated region
        $region33: #{tpu_custom_call.1} parent=31 // pred_check
          %p322 = pneg %p63
        $region34: #{tpu_custom_call.1} parent=31 // pred_check_branch
          %324 = sbr.rel (%p322) target = $region36
        $region35: #{tpu_custom_call.1} parent=31 // pred_region
          %s325 = sand.u32 %s53, 1
          %s326 = scalar_lea.sflag [#allocation6], %s325
          %s327 = sand.u32 %s53, 1
          %s328 = smul.addr %s327, 64
          %s329 = scalar_lea.vmem [#allocation5], %s328
          %s330 = smul.u32 8, %s37
          %s332 = ssub.s32 1024, 1024
          %333 = vsyncadd %s326, %s332
          %s334 = smul.addr %s330, 2
          %s335 = sadd.s32 %s36, %s334
          %s336 = smul.addr %s335, 128
          %s337 = scalar_lea.hbm %s0, %s336
          %s338 = sshll.u32 %s329, 4
          %s339 = int_to_ptr.vmem [resolvable:$true] %s338
          %344 = dma.hbm_to_vmem [thread:$0]  %s337, 1024, %s339, %s326, 256, 128, 8
        $region36: #{tpu_custom_call.1} parent=31 // pred_fallthru
          _
      $region32: #{tpu_custom_call.1} parent=5 // pred_fallthru
        _
      %p345 = scmp.le.s32.totalorder 1, %s29
      %p346 = scmp.lt.s32.totalorder %s29, 9
      %p347 = pnand %p345, %p346
      %p348 = pneg %p347
      // Predicated region
      $region37: #{tpu_custom_call.1} parent=5 // pred_check
        _
      $region38: #{tpu_custom_call.1} parent=5 // pred_check_branch
        %350 = sbr.rel (%p347) target = $region40
      $region39: #{tpu_custom_call.1} parent=5 // pred_region
        %s351 = ssub.s32 %s29, 1
        %s352 = sand.u32 %s56, 1
        %s353 = scalar_lea.sflag [#allocation6], %s352
        %s354 = sand.u32 %s56, 1
        %s355 = smul.addr %s354, 64
        %s356 = scalar_lea.vmem [#allocation5], %s355
        // Predicated region
        $region41: #{tpu_custom_call.1} parent=39 // pred_check
          %p357 = pneg %p69
        $region42: #{tpu_custom_call.1} parent=39 // pred_check_branch
          %359 = sbr.rel (%p357) target = $region44
        $region43: #{tpu_custom_call.1} parent=39 // pred_region
          %360 = dma.done %s353, 1024
        $region44: #{tpu_custom_call.1} parent=39 // pred_fallthru
          _
        // Predicated region
        $region45: #{tpu_custom_call.1} parent=39 // pred_check
          %p361 = pneg %p90
        $region46: #{tpu_custom_call.1} parent=39 // pred_check_branch
          %363 = sbr.rel (%p361) target = $region48
        $region47: #{tpu_custom_call.1} parent=39 // pred_region
          %364 = dma.done [#allocation9], 8192
        $region48: #{tpu_custom_call.1} parent=39 // pred_fallthru
          _
        // Predicated region
        $region49: #{tpu_custom_call.1} parent=39 // pred_check
          %p365 = pneg %p111
        $region50: #{tpu_custom_call.1} parent=39 // pred_check_branch
          %367 = sbr.rel (%p365) target = $region52
        $region51: #{tpu_custom_call.1} parent=39 // pred_region
          %368 = dma.done [#allocation9], 8192
        $region52: #{tpu_custom_call.1} parent=39 // pred_fallthru
          _
        // Predicated region
        $region53: #{tpu_custom_call.1} parent=39 // pred_check
          %p369 = pneg %p153
        $region54: #{tpu_custom_call.1} parent=39 // pred_check_branch
          %371 = sbr.rel (%p369) target = $region56
        $region55: #{tpu_custom_call.1} parent=39 // pred_region
          %372 = dma.done [#allocation12], 2048
        $region56: #{tpu_custom_call.1} parent=39 // pred_fallthru
          _
        %s373 = sand.u32 %s56, 1
        %s374 = scalar_lea.sflag [#allocation6], %s373
        %s375 = sand.u32 %s56, 1
        %s376 = smul.addr %s375, 64
        %s377 = scalar_lea.vmem [#allocation5], %s376
        %p378 = pneg %p69
        %p379 = pneg %p66
        %p380 = pneg %p90
        %p381 = pneg %p87
        %p382 = pneg %p111
        %p383 = pneg %p108
        %p384 = pneg %p132
        %p385 = pneg %p129
        %p386 = pneg %p153
        %p387 = pneg %p150
        %p388 = pneg %p181
        %p389 = pneg %p178
        %s390 = sand.u32 %s168, 1
        %s391 = scalar_lea.sflag [#allocation7], %s390
        %s392 = sand.u32 %s168, 1
        %s393 = smul.addr %s392, 64
        %s394 = scalar_lea.vmem [#allocation13], %s393
        %p395 = pneg %p209
        %p396 = pneg %p206
        %s397 = sand.u32 %s34, 1
        %s398 = scalar_lea.sflag [#allocation15], %s397
        %s399 = sand.u32 %s196, 1
        %s400 = smul.addr %s399, 64
        %s401 = scalar_lea.vmem [#allocation14], %s400
        %p402 = pneg %p235
        %p403 = pneg %p232
        %s404 = sand.u32 %s34, 1
        %s405 = scalar_lea.sflag [#allocation15], %s404
        %s406 = sand.u32 %s222, 1
        %s407 = smul.addr %s406, 8
        %s408 = scalar_lea.vmem [#allocation16], %s407
        %p409 = pneg %p261
        %p410 = pneg %p258
        %s411 = sand.u32 %s248, 1
        %s412 = scalar_lea.sflag [#allocation18], %s411
        %s413 = sand.u32 %s248, 1
        %s414 = smul.addr %s413, 8
        %s415 = scalar_lea.vmem [#allocation17], %s414
        %s416 = smul.u32 8, %s39
        %s417 = smul.u32 8, %s39
        %s418 = smul.u32 8, %s39
        %p419 = scmp.eq.s32.totalorder %s39, 0
        // Predicated region
        $region57: #{tpu_custom_call.1} parent=39 // pred_check
          %p420 = pneg %p419
        $region58: #{tpu_custom_call.1} parent=39 // pred_check_branch
          %422 = sbr.rel (%p420) target = $region60
        $region59: #{tpu_custom_call.1} parent=39 // pred_region
          %423 = vst [vmem:[#allocation3] sm:$0xff] 0.0
          %424 = vst [vmem:[#allocation4] sm:$0xff] 0.0
        $region60: #{tpu_custom_call.1} parent=39 // pred_fallthru
          _
        %v425 = vld [vmem:[%s356] sm:$0xff]
        %v426 = vld [vmem:[%s356 + $0x8] sm:$0xff]
        %v427 = vld [vmem:[%s356 + $0x10] sm:$0xff]
        %v428 = vld [vmem:[%s356 + $0x18] sm:$0xff]
        %v429 = vld [vmem:[%s356 + $0x20] sm:$0xff]
        %v430 = vld [vmem:[%s356 + $0x28] sm:$0xff]
        %v431 = vld [vmem:[%s356 + $0x30] sm:$0xff]
        %v432 = vld [vmem:[%s356 + $0x38] sm:$0xff]
        %v433 = vld [vmem:[#allocation8] sm:$0xff]
        %v434 = vld [vmem:[#allocation8 + $0x8] sm:$0xff]
        %v435 = vld [vmem:[#allocation8 + $0x10] sm:$0xff]
        %v436 = vld [vmem:[#allocation8 + $0x18] sm:$0xff]
        %v437 = vld [vmem:[#allocation8 + $0x20] sm:$0xff]
        %v438 = vld [vmem:[#allocation8 + $0x28] sm:$0xff]
        %v439 = vld [vmem:[#allocation8 + $0x30] sm:$0xff]
        %v440 = vld [vmem:[#allocation8 + $0x38] sm:$0xff]
        %v441 = vld [vmem:[#allocation8 + $0x40] sm:$0xff]
        %v442 = vld [vmem:[#allocation8 + $0x48] sm:$0xff]
        %v443 = vld [vmem:[#allocation8 + $0x50] sm:$0xff]
        %v444 = vld [vmem:[#allocation8 + $0x58] sm:$0xff]
        %v445 = vld [vmem:[#allocation8 + $0x60] sm:$0xff]
        %v446 = vld [vmem:[#allocation8 + $0x68] sm:$0xff]
        %v447 = vld [vmem:[#allocation8 + $0x70] sm:$0xff]
        %v448 = vld [vmem:[#allocation8 + $0x78] sm:$0xff]
        %v449 = vld [vmem:[#allocation8 + $0x80] sm:$0xff]
        %v450 = vld [vmem:[#allocation8 + $0x88] sm:$0xff]
        %v451 = vld [vmem:[#allocation8 + $0x90] sm:$0xff]
        %v452 = vld [vmem:[#allocation8 + $0x98] sm:$0xff]
        %v453 = vld [vmem:[#allocation8 + $0xa0] sm:$0xff]
        %v454 = vld [vmem:[#allocation8 + $0xa8] sm:$0xff]
        %v455 = vld [vmem:[#allocation8 + $0xb0] sm:$0xff]
        %v456 = vld [vmem:[#allocation8 + $0xb8] sm:$0xff]
        %v457 = vld [vmem:[#allocation8 + $0xc0] sm:$0xff]
        %v458 = vld [vmem:[#allocation8 + $0xc8] sm:$0xff]
        %v459 = vld [vmem:[#allocation8 + $0xd0] sm:$0xff]
        %v460 = vld [vmem:[#allocation8 + $0xd8] sm:$0xff]
        %v461 = vld [vmem:[#allocation8 + $0xe0] sm:$0xff]
        %v462 = vld [vmem:[#allocation8 + $0xe8] sm:$0xff]
        %v463 = vld [vmem:[#allocation8 + $0xf0] sm:$0xff]
        %v464 = vld [vmem:[#allocation8 + $0xf8] sm:$0xff]
        %v465 = vld [vmem:[#allocation8 + $0x100] sm:$0xff]
        %v466 = vld [vmem:[#allocation8 + $0x108] sm:$0xff]
        %v467 = vld [vmem:[#allocation8 + $0x110] sm:$0xff]
        %v468 = vld [vmem:[#allocation8 + $0x118] sm:$0xff]
        %v469 = vld [vmem:[#allocation8 + $0x120] sm:$0xff]
        %v470 = vld [vmem:[#allocation8 + $0x128] sm:$0xff]
        %v471 = vld [vmem:[#allocation8 + $0x130] sm:$0xff]
        %v472 = vld [vmem:[#allocation8 + $0x138] sm:$0xff]
        %v473 = vld [vmem:[#allocation8 + $0x140] sm:$0xff]
        %v474 = vld [vmem:[#allocation8 + $0x148] sm:$0xff]
        %v475 = vld [vmem:[#allocation8 + $0x150] sm:$0xff]
        %v476 = vld [vmem:[#allocation8 + $0x158] sm:$0xff]
        %v477 = vld [vmem:[#allocation8 + $0x160] sm:$0xff]
        %v478 = vld [vmem:[#allocation8 + $0x168] sm:$0xff]
        %v479 = vld [vmem:[#allocation8 + $0x170] sm:$0xff]
        %v480 = vld [vmem:[#allocation8 + $0x178] sm:$0xff]
        %v481 = vld [vmem:[#allocation8 + $0x180] sm:$0xff]
        %v482 = vld [vmem:[#allocation8 + $0x188] sm:$0xff]
        %v483 = vld [vmem:[#allocation8 + $0x190] sm:$0xff]
        %v484 = vld [vmem:[#allocation8 + $0x198] sm:$0xff]
        %v485 = vld [vmem:[#allocation8 + $0x1a0] sm:$0xff]
        %v486 = vld [vmem:[#allocation8 + $0x1a8] sm:$0xff]
        %v487 = vld [vmem:[#allocation8 + $0x1b0] sm:$0xff]
        %v488 = vld [vmem:[#allocation8 + $0x1b8] sm:$0xff]
        %v489 = vld [vmem:[#allocation8 + $0x1c0] sm:$0xff]
        %v490 = vld [vmem:[#allocation8 + $0x1c8] sm:$0xff]
        %v491 = vld [vmem:[#allocation8 + $0x1d0] sm:$0xff]
        %v492 = vld [vmem:[#allocation8 + $0x1d8] sm:$0xff]
        %v493 = vld [vmem:[#allocation8 + $0x1e0] sm:$0xff]
        %v494 = vld [vmem:[#allocation8 + $0x1e8] sm:$0xff]
        %v495 = vld [vmem:[#allocation8 + $0x1f0] sm:$0xff]
        %v496 = vld [vmem:[#allocation8 + $0x1f8] sm:$0xff]
        %v497 = vld [vmem:[%s3] sm:$0xf]
        %v499 = vlaneseq
        %v500 = vshrl.u32 %v499, 7
        %v501 = vsub.s32 0, %v500
        %v502 = vrot.slane %v497, %v501
        %v503 = vlaneseq
        %v504 = vshrl.u32 %v503, 7
        %v505 = vsub.s32 1, %v504
        %v506 = vrot.slane %v497, %v505
        %v507 = vlaneseq
        %v508 = vshrl.u32 %v507, 7
        %v509 = vsub.s32 2, %v508
        %v510 = vrot.slane %v497, %v509
        %v511 = vlaneseq
        %v512 = vshrl.u32 %v511, 7
        %v513 = vsub.s32 3, %v512
        %v514 = vrot.slane %v497, %v513
        %519 = vmatprep.subr.mxu0 %v494
        %520 = vmatpush1.msra.mxu0 %v493
        %521 = vmatprep.subr.mxu0 %v490
        %522 = vmatpush1.msra.mxu0 %v489
        %523 = vmatprep.subr.mxu0 %v486
        %524 = vmatpush1.msra.mxu0 %v485
        %525 = vmatprep.subr.mxu0 %v482
        %526 = vmatpush1.msra.mxu0 %v481
        %527 = vmatprep.subr.mxu0 %v478
        %528 = vmatpush1.msra.mxu0 %v477
        %529 = vmatprep.subr.mxu0 %v474
        %530 = vmatpush1.msra.mxu0 %v473
        %531 = vmatprep.subr.mxu0 %v470
        %532 = vmatpush1.msra.mxu0 %v469
        %533 = vmatprep.subr.mxu0 %v466
        %534 = vmatpush1.msra.mxu0 %v465
        %535 = vmatprep.subr.mxu0 %v462
        %536 = vmatpush1.msra.mxu0 %v461
        %537 = vmatprep.subr.mxu0 %v458
        %538 = vmatpush1.msra.mxu0 %v457
        %539 = vmatprep.subr.mxu0 %v454
        %540 = vmatpush1.msra.mxu0 %v453
        %541 = vmatprep.subr.mxu0 %v450
        %542 = vmatpush1.msra.mxu0 %v449
        %543 = vmatprep.subr.mxu0 %v446
        %544 = vmatpush1.msra.mxu0 %v445
        %545 = vmatprep.subr.mxu0 %v442
        %546 = vmatpush1.msra.mxu0 %v441
        %547 = vmatprep.subr.mxu0 %v438
        %548 = vmatpush1.msra.mxu0 %v437
        %549 = vmatprep.subr.mxu0 %v434
        %550 = vmatpush1.msra.mxu0 %v433
        %551 = vmatprep.subr.mxu0 0.0
        %552 = vmatpush2.msra.mxu0 0.0
        %553 = vmatprep.subr.mxu0 0.0
        %554 = vmatpush2.msra.mxu0 0.0
        %555 = vmatprep.subr.mxu0 0.0
        %556 = vmatpush2.msra.mxu0 0.0
        %557 = vmatprep.subr.mxu0 0.0
        %558 = vmatpush2.msra.mxu0 0.0
        %559 = vmatprep.subr.mxu0 0.0
        %560 = vmatpush2.msra.mxu0 0.0
        %561 = vmatprep.subr.mxu0 0.0
        %562 = vmatpush2.msra.mxu0 0.0
        %563 = vmatprep.subr.mxu0 0.0
        %564 = vmatpush2.msra.mxu0 0.0
        %565 = vmatprep.subr.mxu0 0.0
        %566 = vmatpush2.msra.mxu0 0.0
        %567 = vmatprep.subr.mxu0 0.0
        %568 = vmatpush2.msra.mxu0 0.0
        %569 = vmatprep.subr.mxu0 0.0
        %570 = vmatpush2.msra.mxu0 0.0
        %571 = vmatprep.subr.mxu0 0.0
        %572 = vmatpush2.msra.mxu0 0.0
        %573 = vmatprep.subr.mxu0 0.0
        %574 = vmatpush2.msra.mxu0 0.0
        %575 = vmatprep.subr.mxu0 0.0
        %576 = vmatpush2.msra.mxu0 0.0
        %577 = vmatprep.subr.mxu0 0.0
        %578 = vmatpush2.msra.mxu0 0.0
        %579 = vmatprep.subr.mxu0 0.0
        %580 = vmatpush2.msra.mxu0 0.0
        %581 = vmatprep.subr.mxu0 0.0
        %582 = vmatpush2.msra.mxu0 0.0
        %583 = vmatprep.mubr.f32.mxu0 0.0
        %584 = vmatmul.mubr.f32.gmra.mxu0 %v425
        %v585 = vpop.f32.mrf.mxu0
        %v586 = vadd.f32 %v502, %v585
        %v587 = vpop.f32.mrf.mxu0
        %v588 = vadd.f32 %v506, %v587
        %589 = vmatprep.mubr.f32.mxu0 0.0
        %590 = vmatmul.mubr.f32.gmra.mxu0 %v426
        %v591 = vpop.f32.mrf.mxu0
        %v592 = vadd.f32 %v502, %v591
        %v593 = vpop.f32.mrf.mxu0
        %v594 = vadd.f32 %v506, %v593
        %595 = vmatprep.mubr.f32.mxu0 0.0
        %596 = vmatmul.mubr.f32.gmra.mxu0 %v427
        %v597 = vpop.f32.mrf.mxu0
        %v598 = vadd.f32 %v502, %v597
        %v599 = vpop.f32.mrf.mxu0
        %v600 = vadd.f32 %v506, %v599
        %601 = vmatprep.mubr.f32.mxu0 0.0
        %602 = vmatmul.mubr.f32.gmra.mxu0 %v428
        %v603 = vpop.f32.mrf.mxu0
        %v604 = vadd.f32 %v502, %v603
        %v605 = vpop.f32.mrf.mxu0
        %v606 = vadd.f32 %v506, %v605
        %607 = vmatprep.mubr.f32.mxu0 0.0
        %608 = vmatmul.mubr.f32.gmra.mxu0 %v429
        %v609 = vpop.f32.mrf.mxu0
        %v610 = vadd.f32 %v502, %v609
        %v611 = vpop.f32.mrf.mxu0
        %v612 = vadd.f32 %v506, %v611
        %613 = vmatprep.mubr.f32.mxu0 0.0
        %614 = vmatmul.mubr.f32.gmra.mxu0 %v430
        %v615 = vpop.f32.mrf.mxu0
        %v616 = vadd.f32 %v502, %v615
        %v617 = vpop.f32.mrf.mxu0
        %v618 = vadd.f32 %v506, %v617
        %619 = vmatprep.mubr.f32.mxu0 0.0
        %620 = vmatmul.mubr.f32.gmra.mxu0 %v431
        %v621 = vpop.f32.mrf.mxu0
        %v622 = vadd.f32 %v502, %v621
        %v623 = vpop.f32.mrf.mxu0
        %v624 = vadd.f32 %v506, %v623
        %625 = vmatprep.mubr.f32.mxu0 0.0
        %626 = vmatmul.mubr.f32.gmra.mxu0 %v432
        %v627 = vpop.f32.mrf.mxu0
        %v628 = vadd.f32 %v502, %v627
        %v629 = vpop.f32.mrf.mxu0
        %v630 = vadd.f32 %v506, %v629
        %631 = vdwg.mxu0
        %632 = vmatprep.subr.mxu0 %v496
        %633 = vmatpush1.msra.mxu0 %v495
        %634 = vmatprep.subr.mxu0 %v492
        %635 = vmatpush1.msra.mxu0 %v491
        %636 = vmatprep.subr.mxu0 %v488
        %637 = vmatpush1.msra.mxu0 %v487
        %638 = vmatprep.subr.mxu0 %v484
        %639 = vmatpush1.msra.mxu0 %v483
        %640 = vmatprep.subr.mxu0 %v480
        %641 = vmatpush1.msra.mxu0 %v479
        %642 = vmatprep.subr.mxu0 %v476
        %643 = vmatpush1.msra.mxu0 %v475
        %644 = vmatprep.subr.mxu0 %v472
        %645 = vmatpush1.msra.mxu0 %v471
        %646 = vmatprep.subr.mxu0 %v468
        %647 = vmatpush1.msra.mxu0 %v467
        %648 = vmatprep.subr.mxu0 %v464
        %649 = vmatpush1.msra.mxu0 %v463
        %650 = vmatprep.subr.mxu0 %v460
        %651 = vmatpush1.msra.mxu0 %v459
        %652 = vmatprep.subr.mxu0 %v456
        %653 = vmatpush1.msra.mxu0 %v455
        %654 = vmatprep.subr.mxu0 %v452
        %655 = vmatpush1.msra.mxu0 %v451
        %656 = vmatprep.subr.mxu0 %v448
        %657 = vmatpush1.msra.mxu0 %v447
        %658 = vmatprep.subr.mxu0 %v444
        %659 = vmatpush1.msra.mxu0 %v443
        %660 = vmatprep.subr.mxu0 %v440
        %661 = vmatpush1.msra.mxu0 %v439
        %662 = vmatprep.subr.mxu0 %v436
        %663 = vmatpush1.msra.mxu0 %v435
        %664 = vmatprep.subr.mxu0 0.0
        %665 = vmatpush2.msra.mxu0 0.0
        %666 = vmatprep.subr.mxu0 0.0
        %667 = vmatpush2.msra.mxu0 0.0
        %668 = vmatprep.subr.mxu0 0.0
        %669 = vmatpush2.msra.mxu0 0.0
        %670 = vmatprep.subr.mxu0 0.0
        %671 = vmatpush2.msra.mxu0 0.0
        %672 = vmatprep.subr.mxu0 0.0
        %673 = vmatpush2.msra.mxu0 0.0
        %674 = vmatprep.subr.mxu0 0.0
        %675 = vmatpush2.msra.mxu0 0.0
        %676 = vmatprep.subr.mxu0 0.0
        %677 = vmatpush2.msra.mxu0 0.0
        %678 = vmatprep.subr.mxu0 0.0
        %679 = vmatpush2.msra.mxu0 0.0
        %680 = vmatprep.subr.mxu0 0.0
        %681 = vmatpush2.msra.mxu0 0.0
        %682 = vmatprep.subr.mxu0 0.0
        %683 = vmatpush2.msra.mxu0 0.0
        %684 = vmatprep.subr.mxu0 0.0
        %685 = vmatpush2.msra.mxu0 0.0
        %686 = vmatprep.subr.mxu0 0.0
        %687 = vmatpush2.msra.mxu0 0.0
        %688 = vmatprep.subr.mxu0 0.0
        %689 = vmatpush2.msra.mxu0 0.0
        %690 = vmatprep.subr.mxu0 0.0
        %691 = vmatpush2.msra.mxu0 0.0
        %692 = vmatprep.subr.mxu0 0.0
        %693 = vmatpush2.msra.mxu0 0.0
        %694 = vmatprep.subr.mxu0 0.0
        %695 = vmatpush2.msra.mxu0 0.0
        %696 = vmatprep.mubr.f32.mxu0 0.0
        %697 = vmatmul.mubr.f32.gmra.mxu0 %v425
        %v698 = vpop.f32.mrf.mxu0
        %v699 = vadd.f32 %v510, %v698
        %v700 = vpop.f32.mrf.mxu0
        %v701 = vadd.f32 %v514, %v700
        %702 = vmatprep.mubr.f32.mxu0 0.0
        %703 = vmatmul.mubr.f32.gmra.mxu0 %v426
        %v704 = vpop.f32.mrf.mxu0
        %v705 = vadd.f32 %v510, %v704
        %v706 = vpop.f32.mrf.mxu0
        %v707 = vadd.f32 %v514, %v706
        %708 = vmatprep.mubr.f32.mxu0 0.0
        %709 = vmatmul.mubr.f32.gmra.mxu0 %v427
        %v710 = vpop.f32.mrf.mxu0
        %v711 = vadd.f32 %v510, %v710
        %v712 = vpop.f32.mrf.mxu0
        %v713 = vadd.f32 %v514, %v712
        %714 = vmatprep.mubr.f32.mxu0 0.0
        %715 = vmatmul.mubr.f32.gmra.mxu0 %v428
        %v716 = vpop.f32.mrf.mxu0
        %v717 = vadd.f32 %v510, %v716
        %v718 = vpop.f32.mrf.mxu0
        %v719 = vadd.f32 %v514, %v718
        %720 = vmatprep.mubr.f32.mxu0 0.0
        %721 = vmatmul.mubr.f32.gmra.mxu0 %v429
        %v722 = vpop.f32.mrf.mxu0
        %v723 = vadd.f32 %v510, %v722
        %v724 = vpop.f32.mrf.mxu0
        %v725 = vadd.f32 %v514, %v724
        %726 = vmatprep.mubr.f32.mxu0 0.0
        %727 = vmatmul.mubr.f32.gmra.mxu0 %v430
        %v728 = vpop.f32.mrf.mxu0
        %v729 = vadd.f32 %v510, %v728
        %v730 = vpop.f32.mrf.mxu0
        %v731 = vadd.f32 %v514, %v730
        %732 = vmatprep.mubr.f32.mxu0 0.0
        %733 = vmatmul.mubr.f32.gmra.mxu0 %v431
        %v734 = vpop.f32.mrf.mxu0
        %v735 = vadd.f32 %v510, %v734
        %v736 = vpop.f32.mrf.mxu0
        %v737 = vadd.f32 %v514, %v736
        %738 = vmatprep.mubr.f32.mxu0 0.0
        %739 = vmatmul.mubr.f32.gmra.mxu0 %v432
        %v740 = vpop.f32.mrf.mxu0
        %v741 = vadd.f32 %v510, %v740
        %v742 = vpop.f32.mrf.mxu0
        %v743 = vadd.f32 %v514, %v742
        %744 = vdwg.mxu0
        %745 = vst [vmem:[#allocation2] sm:$0xff] %v586
        %746 = vst [vmem:[#allocation2 + $0x8] sm:$0xff] %v588
        %747 = vst [vmem:[#allocation2 + $0x10] sm:$0xff] %v699
        %748 = vst [vmem:[#allocation2 + $0x18] sm:$0xff] %v701
        %749 = vst [vmem:[#allocation2 + $0x20] sm:$0xff] %v592
        %750 = vst [vmem:[#allocation2 + $0x28] sm:$0xff] %v594
        %751 = vst [vmem:[#allocation2 + $0x30] sm:$0xff] %v705
        %752 = vst [vmem:[#allocation2 + $0x38] sm:$0xff] %v707
        %753 = vst [vmem:[#allocation2 + $0x40] sm:$0xff] %v598
        %754 = vst [vmem:[#allocation2 + $0x48] sm:$0xff] %v600
        %755 = vst [vmem:[#allocation2 + $0x50] sm:$0xff] %v711
        %756 = vst [vmem:[#allocation2 + $0x58] sm:$0xff] %v713
        %757 = vst [vmem:[#allocation2 + $0x60] sm:$0xff] %v604
        %758 = vst [vmem:[#allocation2 + $0x68] sm:$0xff] %v606
        %759 = vst [vmem:[#allocation2 + $0x70] sm:$0xff] %v717
        %760 = vst [vmem:[#allocation2 + $0x78] sm:$0xff] %v719
        %761 = vst [vmem:[#allocation2 + $0x80] sm:$0xff] %v610
        %762 = vst [vmem:[#allocation2 + $0x88] sm:$0xff] %v612
        %763 = vst [vmem:[#allocation2 + $0x90] sm:$0xff] %v723
        %764 = vst [vmem:[#allocation2 + $0x98] sm:$0xff] %v725
        %765 = vst [vmem:[#allocation2 + $0xa0] sm:$0xff] %v616
        %766 = vst [vmem:[#allocation2 + $0xa8] sm:$0xff] %v618
        %767 = vst [vmem:[#allocation2 + $0xb0] sm:$0xff] %v729
        %768 = vst [vmem:[#allocation2 + $0xb8] sm:$0xff] %v731
        %769 = vst [vmem:[#allocation2 + $0xc0] sm:$0xff] %v622
        %770 = vst [vmem:[#allocation2 + $0xc8] sm:$0xff] %v624
        %771 = vst [vmem:[#allocation2 + $0xd0] sm:$0xff] %v735
        %772 = vst [vmem:[#allocation2 + $0xd8] sm:$0xff] %v737
        %773 = vst [vmem:[#allocation2 + $0xe0] sm:$0xff] %v628
        %774 = vst [vmem:[#allocation2 + $0xe8] sm:$0xff] %v630
        %775 = vst [vmem:[#allocation2 + $0xf0] sm:$0xff] %v741
        %776 = vst [vmem:[#allocation2 + $0xf8] sm:$0xff] %v743
        %v777 = vld [vmem:[#allocation10] sm:$0xff]
        %v778 = vld [vmem:[#allocation10 + $0x8] sm:$0xff]
        %v779 = vld [vmem:[#allocation10 + $0x10] sm:$0xff]
        %v780 = vld [vmem:[#allocation10 + $0x18] sm:$0xff]
        %v781 = vld [vmem:[#allocation10 + $0x20] sm:$0xff]
        %v782 = vld [vmem:[#allocation10 + $0x28] sm:$0xff]
        %v783 = vld [vmem:[#allocation10 + $0x30] sm:$0xff]
        %v784 = vld [vmem:[#allocation10 + $0x38] sm:$0xff]
        %v785 = vld [vmem:[#allocation10 + $0x40] sm:$0xff]
        %v786 = vld [vmem:[#allocation10 + $0x48] sm:$0xff]
        %v787 = vld [vmem:[#allocation10 + $0x50] sm:$0xff]
        %v788 = vld [vmem:[#allocation10 + $0x58] sm:$0xff]
        %v789 = vld [vmem:[#allocation10 + $0x60] sm:$0xff]
        %v790 = vld [vmem:[#allocation10 + $0x68] sm:$0xff]
        %v791 = vld [vmem:[#allocation10 + $0x70] sm:$0xff]
        %v792 = vld [vmem:[#allocation10 + $0x78] sm:$0xff]
        %v793 = vld [vmem:[#allocation10 + $0x80] sm:$0xff]
        %v794 = vld [vmem:[#allocation10 + $0x88] sm:$0xff]
        %v795 = vld [vmem:[#allocation10 + $0x90] sm:$0xff]
        %v796 = vld [vmem:[#allocation10 + $0x98] sm:$0xff]
        %v797 = vld [vmem:[#allocation10 + $0xa0] sm:$0xff]
        %v798 = vld [vmem:[#allocation10 + $0xa8] sm:$0xff]
        %v799 = vld [vmem:[#allocation10 + $0xb0] sm:$0xff]
        %v800 = vld [vmem:[#allocation10 + $0xb8] sm:$0xff]
        %v801 = vld [vmem:[#allocation10 + $0xc0] sm:$0xff]
        %v802 = vld [vmem:[#allocation10 + $0xc8] sm:$0xff]
        %v803 = vld [vmem:[#allocation10 + $0xd0] sm:$0xff]
        %v804 = vld [vmem:[#allocation10 + $0xd8] sm:$0xff]
        %v805 = vld [vmem:[#allocation10 + $0xe0] sm:$0xff]
        %v806 = vld [vmem:[#allocation10 + $0xe8] sm:$0xff]
        %v807 = vld [vmem:[#allocation10 + $0xf0] sm:$0xff]
        %v808 = vld [vmem:[#allocation10 + $0xf8] sm:$0xff]
        %v809 = vld [vmem:[#allocation10 + $0x100] sm:$0xff]
        %v810 = vld [vmem:[#allocation10 + $0x108] sm:$0xff]
        %v811 = vld [vmem:[#allocation10 + $0x110] sm:$0xff]
        %v812 = vld [vmem:[#allocation10 + $0x118] sm:$0xff]
        %v813 = vld [vmem:[#allocation10 + $0x120] sm:$0xff]
        %v814 = vld [vmem:[#allocation10 + $0x128] sm:$0xff]
        %v815 = vld [vmem:[#allocation10 + $0x130] sm:$0xff]
        %v816 = vld [vmem:[#allocation10 + $0x138] sm:$0xff]
        %v817 = vld [vmem:[#allocation10 + $0x140] sm:$0xff]
        %v818 = vld [vmem:[#allocation10 + $0x148] sm:$0xff]
        %v819 = vld [vmem:[#allocation10 + $0x150] sm:$0xff]
        %v820 = vld [vmem:[#allocation10 + $0x158] sm:$0xff]
        %v821 = vld [vmem:[#allocation10 + $0x160] sm:$0xff]
        %v822 = vld [vmem:[#allocation10 + $0x168] sm:$0xff]
        %v823 = vld [vmem:[#allocation10 + $0x170] sm:$0xff]
        %v824 = vld [vmem:[#allocation10 + $0x178] sm:$0xff]
        %v825 = vld [vmem:[#allocation10 + $0x180] sm:$0xff]
        %v826 = vld [vmem:[#allocation10 + $0x188] sm:$0xff]
        %v827 = vld [vmem:[#allocation10 + $0x190] sm:$0xff]
        %v828 = vld [vmem:[#allocation10 + $0x198] sm:$0xff]
        %v829 = vld [vmem:[#allocation10 + $0x1a0] sm:$0xff]
        %v830 = vld [vmem:[#allocation10 + $0x1a8] sm:$0xff]
        %v831 = vld [vmem:[#allocation10 + $0x1b0] sm:$0xff]
        %v832 = vld [vmem:[#allocation10 + $0x1b8] sm:$0xff]
        %v833 = vld [vmem:[#allocation10 + $0x1c0] sm:$0xff]
        %v834 = vld [vmem:[#allocation10 + $0x1c8] sm:$0xff]
        %v835 = vld [vmem:[#allocation10 + $0x1d0] sm:$0xff]
        %v836 = vld [vmem:[#allocation10 + $0x1d8] sm:$0xff]
        %v837 = vld [vmem:[#allocation10 + $0x1e0] sm:$0xff]
        %v838 = vld [vmem:[#allocation10 + $0x1e8] sm:$0xff]
        %v839 = vld [vmem:[#allocation10 + $0x1f0] sm:$0xff]
        %v840 = vld [vmem:[#allocation10 + $0x1f8] sm:$0xff]
        %v841 = vld [vmem:[#allocation3] sm:$0xff]
        %v842 = vld [vmem:[#allocation4] sm:$0xff]
        %s843 = smul.u32 %s39, 8
        %v844 = vld [vmem:[#allocation2] sm:$0xff]
        %v845 = vld [vmem:[#allocation2 + $0x8] sm:$0xff]
        %v846 = vld [vmem:[#allocation2 + $0x10] sm:$0xff]
        %v847 = vld [vmem:[#allocation2 + $0x18] sm:$0xff]
        %848 = vmatprep.subr.mxu0 %v838
        %849 = vmatpush1.msra.mxu0 %v837
        %850 = vmatprep.subr.mxu0 %v834
        %851 = vmatpush1.msra.mxu0 %v833
        %852 = vmatprep.subr.mxu0 %v830
        %853 = vmatpush1.msra.mxu0 %v829
        %854 = vmatprep.subr.mxu0 %v826
        %855 = vmatpush1.msra.mxu0 %v825
        %856 = vmatprep.subr.mxu0 %v822
        %857 = vmatpush1.msra.mxu0 %v821
        %858 = vmatprep.subr.mxu0 %v818
        %859 = vmatpush1.msra.mxu0 %v817
        %860 = vmatprep.subr.mxu0 %v814
        %861 = vmatpush1.msra.mxu0 %v813
        %862 = vmatprep.subr.mxu0 %v810
        %863 = vmatpush1.msra.mxu0 %v809
        %864 = vmatprep.subr.mxu0 %v806
        %865 = vmatpush1.msra.mxu0 %v805
        %866 = vmatprep.subr.mxu0 %v802
        %867 = vmatpush1.msra.mxu0 %v801
        %868 = vmatprep.subr.mxu0 %v798
        %869 = vmatpush1.msra.mxu0 %v797
        %870 = vmatprep.subr.mxu0 %v794
        %871 = vmatpush1.msra.mxu0 %v793
        %872 = vmatprep.subr.mxu0 %v790
        %873 = vmatpush1.msra.mxu0 %v789
        %874 = vmatprep.subr.mxu0 %v786
        %875 = vmatpush1.msra.mxu0 %v785
        %876 = vmatprep.subr.mxu0 %v782
        %877 = vmatpush1.msra.mxu0 %v781
        %878 = vmatprep.subr.mxu0 %v778
        %879 = vmatpush1.msra.mxu0 %v777
        %880 = vmatprep.subr.mxu0 0.0
        %881 = vmatpush2.msra.mxu0 0.0
        %882 = vmatprep.subr.mxu0 0.0
        %883 = vmatpush2.msra.mxu0 0.0
        %884 = vmatprep.subr.mxu0 0.0
        %885 = vmatpush2.msra.mxu0 0.0
        %886 = vmatprep.subr.mxu0 0.0
        %887 = vmatpush2.msra.mxu0 0.0
        %888 = vmatprep.subr.mxu0 0.0
        %889 = vmatpush2.msra.mxu0 0.0
        %890 = vmatprep.subr.mxu0 0.0
        %891 = vmatpush2.msra.mxu0 0.0
        %892 = vmatprep.subr.mxu0 0.0
        %893 = vmatpush2.msra.mxu0 0.0
        %894 = vmatprep.subr.mxu0 0.0
        %895 = vmatpush2.msra.mxu0 0.0
        %896 = vmatprep.subr.mxu0 0.0
        %897 = vmatpush2.msra.mxu0 0.0
        %898 = vmatprep.subr.mxu0 0.0
        %899 = vmatpush2.msra.mxu0 0.0
        %900 = vmatprep.subr.mxu0 0.0
        %901 = vmatpush2.msra.mxu0 0.0
        %902 = vmatprep.subr.mxu0 0.0
        %903 = vmatpush2.msra.mxu0 0.0
        %904 = vmatprep.subr.mxu0 0.0
        %905 = vmatpush2.msra.mxu0 0.0
        %906 = vmatprep.subr.mxu0 0.0
        %907 = vmatpush2.msra.mxu0 0.0
        %908 = vmatprep.subr.mxu0 0.0
        %909 = vmatpush2.msra.mxu0 0.0
        %910 = vmatprep.subr.mxu0 0.0
        %911 = vmatpush2.msra.mxu0 0.0
        %912 = vmatprep.mubr.f32.mxu0 0.0
        %913 = vmatmul.mubr.f32.gmra.mxu0 %v841
        %v914 = vpop.f32.mrf.mxu0
        %v915 = vadd.f32 0.0, %v914
        %v916 = vpop.f32.mrf.mxu0
        %v917 = vadd.f32 0.0, %v916
        %918 = vdwg.mxu0
        %919 = vmatprep.subr.mxu0 %v840
        %920 = vmatpush1.msra.mxu0 %v839
        %921 = vmatprep.subr.mxu0 %v836
        %922 = vmatpush1.msra.mxu0 %v835
        %923 = vmatprep.subr.mxu0 %v832
        %924 = vmatpush1.msra.mxu0 %v831
        %925 = vmatprep.subr.mxu0 %v828
        %926 = vmatpush1.msra.mxu0 %v827
        %927 = vmatprep.subr.mxu0 %v824
        %928 = vmatpush1.msra.mxu0 %v823
        %929 = vmatprep.subr.mxu0 %v820
        %930 = vmatpush1.msra.mxu0 %v819
        %931 = vmatprep.subr.mxu0 %v816
        %932 = vmatpush1.msra.mxu0 %v815
        %933 = vmatprep.subr.mxu0 %v812
        %934 = vmatpush1.msra.mxu0 %v811
        %935 = vmatprep.subr.mxu0 %v808
        %936 = vmatpush1.msra.mxu0 %v807
        %937 = vmatprep.subr.mxu0 %v804
        %938 = vmatpush1.msra.mxu0 %v803
        %939 = vmatprep.subr.mxu0 %v800
        %940 = vmatpush1.msra.mxu0 %v799
        %941 = vmatprep.subr.mxu0 %v796
        %942 = vmatpush1.msra.mxu0 %v795
        %943 = vmatprep.subr.mxu0 %v792
        %944 = vmatpush1.msra.mxu0 %v791
        %945 = vmatprep.subr.mxu0 %v788
        %946 = vmatpush1.msra.mxu0 %v787
        %947 = vmatprep.subr.mxu0 %v784
        %948 = vmatpush1.msra.mxu0 %v783
        %949 = vmatprep.subr.mxu0 %v780
        %950 = vmatpush1.msra.mxu0 %v779
        %951 = vmatprep.subr.mxu0 0.0
        %952 = vmatpush2.msra.mxu0 0.0
        %953 = vmatprep.subr.mxu0 0.0
        %954 = vmatpush2.msra.mxu0 0.0
        %955 = vmatprep.subr.mxu0 0.0
        %956 = vmatpush2.msra.mxu0 0.0
        %957 = vmatprep.subr.mxu0 0.0
        %958 = vmatpush2.msra.mxu0 0.0
        %959 = vmatprep.subr.mxu0 0.0
        %960 = vmatpush2.msra.mxu0 0.0
        %961 = vmatprep.subr.mxu0 0.0
        %962 = vmatpush2.msra.mxu0 0.0
        %963 = vmatprep.subr.mxu0 0.0
        %964 = vmatpush2.msra.mxu0 0.0
        %965 = vmatprep.subr.mxu0 0.0
        %966 = vmatpush2.msra.mxu0 0.0
        %967 = vmatprep.subr.mxu0 0.0
        %968 = vmatpush2.msra.mxu0 0.0
        %969 = vmatprep.subr.mxu0 0.0
        %970 = vmatpush2.msra.mxu0 0.0
        %971 = vmatprep.subr.mxu0 0.0
        %972 = vmatpush2.msra.mxu0 0.0
        %973 = vmatprep.subr.mxu0 0.0
        %974 = vmatpush2.msra.mxu0 0.0
        %975 = vmatprep.subr.mxu0 0.0
        %976 = vmatpush2.msra.mxu0 0.0
        %977 = vmatprep.subr.mxu0 0.0
        %978 = vmatpush2.msra.mxu0 0.0
        %979 = vmatprep.subr.mxu0 0.0
        %980 = vmatpush2.msra.mxu0 0.0
        %981 = vmatprep.subr.mxu0 0.0
        %982 = vmatpush2.msra.mxu0 0.0
        %983 = vmatprep.mubr.f32.mxu0 0.0
        %984 = vmatmul.mubr.f32.gmra.mxu0 %v841
        %v985 = vpop.f32.mrf.mxu0
        %v986 = vadd.f32 0.0, %v985
        %v987 = vpop.f32.mrf.mxu0
        %v988 = vadd.f32 0.0, %v987
        %989 = vdwg.mxu0
        %v990 = vadd.f32 %v844, %v915
        %v991 = vadd.f32 %v845, %v917
        %v992 = vadd.f32 %v846, %v986
        %v993 = vadd.f32 %v847, %v988
        %v994 = vxor.u32 %v990, 2147483648
        %v995 = vmul.f32 %v994, 1.442695
        %v996 = vpow.pop %v995
        %v997 = vadd.f32 %v996, 1.0
        %v998 = vrcp.pop %v997
        %v999 = vmul.f32 1.0, %v998
        %v1000 = vxor.u32 %v991, 2147483648
        %v1001 = vmul.f32 %v1000, 1.442695
        %v1002 = vpow.pop %v1001
        %v1003 = vadd.f32 %v1002, 1.0
        %v1004 = vrcp.pop %v1003
        %v1005 = vmul.f32 1.0, %v1004
        %v1006 = vtanh.pop %v992
        %v1007 = vxor.u32 %v993, 2147483648
        %v1008 = vmul.f32 %v1007, 1.442695
        %v1009 = vpow.pop %v1008
        %v1010 = vadd.f32 %v1009, 1.0
        %v1011 = vrcp.pop %v1010
        %v1012 = vmul.f32 1.0, %v1011
        %v1013 = vmul.f32 %v1005, %v842
        %v1014 = vmul.f32 %v999, %v1006
        %v1015 = vadd.f32 %v1013, %v1014
        %v1016 = vtanh.pop %v1015
        %v1017 = vmul.f32 %v1012, %v1016
        %p1018 = scmp.lt.s32.totalorder %s843, 27
        %s1019 = scalar_select %p1018, 1, 0
        %s1020 = scvt.s32.f32 %s1019
        %v1021 = vstv %s1020
        %v1022 = vmul.f32 %v1021, %v1017
        %s1023 = ssub.f32 1.0, %s1020
        %v1024 = vstv %s1023
        %v1025 = vmul.f32 %v1024, %v841
        %v1026 = vadd.f32 %v1022, %v1025
        %v1027 = vmul.f32 %v1021, %v1015
        %v1028 = vmul.f32 %v1024, %v842
        %v1029 = vadd.f32 %v1027, %v1028
        %1030 = vst [vmem:[%s394] sm:$0xff] %v1026
        %s1031 = scalar_lea.vmem [#allocation2], 32
        %v1032 = vld [vmem:[%s1031] sm:$0xff]
        %v1033 = vld [vmem:[%s1031 + $0x8] sm:$0xff]
        %v1034 = vld [vmem:[%s1031 + $0x10] sm:$0xff]
        %v1035 = vld [vmem:[%s1031 + $0x18] sm:$0xff]
        %1036 = vmatprep.subr.mxu0 %v838
        %1037 = vmatpush1.msra.mxu0 %v837
        %1038 = vmatprep.subr.mxu0 %v834
        %1039 = vmatpush1.msra.mxu0 %v833
        %1040 = vmatprep.subr.mxu0 %v830
        %1041 = vmatpush1.msra.mxu0 %v829
        %1042 = vmatprep.subr.mxu0 %v826
        %1043 = vmatpush1.msra.mxu0 %v825
        %1044 = vmatprep.subr.mxu0 %v822
        %1045 = vmatpush1.msra.mxu0 %v821
        %1046 = vmatprep.subr.mxu0 %v818
        %1047 = vmatpush1.msra.mxu0 %v817
        %1048 = vmatprep.subr.mxu0 %v814
        %1049 = vmatpush1.msra.mxu0 %v813
        %1050 = vmatprep.subr.mxu0 %v810
        %1051 = vmatpush1.msra.mxu0 %v809
        %1052 = vmatprep.subr.mxu0 %v806
        %1053 = vmatpush1.msra.mxu0 %v805
        %1054 = vmatprep.subr.mxu0 %v802
        %1055 = vmatpush1.msra.mxu0 %v801
        %1056 = vmatprep.subr.mxu0 %v798
        %1057 = vmatpush1.msra.mxu0 %v797
        %1058 = vmatprep.subr.mxu0 %v794
        %1059 = vmatpush1.msra.mxu0 %v793
        %1060 = vmatprep.subr.mxu0 %v790
        %1061 = vmatpush1.msra.mxu0 %v789
        %1062 = vmatprep.subr.mxu0 %v786
        %1063 = vmatpush1.msra.mxu0 %v785
        %1064 = vmatprep.subr.mxu0 %v782
        %1065 = vmatpush1.msra.mxu0 %v781
        %1066 = vmatprep.subr.mxu0 %v778
        %1067 = vmatpush1.msra.mxu0 %v777
        %1068 = vmatprep.subr.mxu0 0.0
        %1069 = vmatpush2.msra.mxu0 0.0
        %1070 = vmatprep.subr.mxu0 0.0
        %1071 = vmatpush2.msra.mxu0 0.0
        %1072 = vmatprep.subr.mxu0 0.0
        %1073 = vmatpush2.msra.mxu0 0.0
        %1074 = vmatprep.subr.mxu0 0.0
        %1075 = vmatpush2.msra.mxu0 0.0
        %1076 = vmatprep.subr.mxu0 0.0
        %1077 = vmatpush2.msra.mxu0 0.0
        %1078 = vmatprep.subr.mxu0 0.0
        %1079 = vmatpush2.msra.mxu0 0.0
        %1080 = vmatprep.subr.mxu0 0.0
        %1081 = vmatpush2.msra.mxu0 0.0
        %1082 = vmatprep.subr.mxu0 0.0
        %1083 = vmatpush2.msra.mxu0 0.0
        %1084 = vmatprep.subr.mxu0 0.0
        %1085 = vmatpush2.msra.mxu0 0.0
        %1086 = vmatprep.subr.mxu0 0.0
        %1087 = vmatpush2.msra.mxu0 0.0
        %1088 = vmatprep.subr.mxu0 0.0
        %1089 = vmatpush2.msra.mxu0 0.0
        %1090 = vmatprep.subr.mxu0 0.0
        %1091 = vmatpush2.msra.mxu0 0.0
        %1092 = vmatprep.subr.mxu0 0.0
        %1093 = vmatpush2.msra.mxu0 0.0
        %1094 = vmatprep.subr.mxu0 0.0
        %1095 = vmatpush2.msra.mxu0 0.0
        %1096 = vmatprep.subr.mxu0 0.0
        %1097 = vmatpush2.msra.mxu0 0.0
        %1098 = vmatprep.subr.mxu0 0.0
        %1099 = vmatpush2.msra.mxu0 0.0
        %1100 = vmatprep.mubr.f32.mxu0 0.0
        %1101 = vmatmul.mubr.f32.gmra.mxu0 %v1026
        %v1102 = vpop.f32.mrf.mxu0
        %v1103 = vadd.f32 0.0, %v1102
        %v1104 = vpop.f32.mrf.mxu0
        %v1105 = vadd.f32 0.0, %v1104
        %1106 = vdwg.mxu0
        %1107 = vmatprep.subr.mxu0 %v840
        %1108 = vmatpush1.msra.mxu0 %v839
        %1109 = vmatprep.subr.mxu0 %v836
        %1110 = vmatpush1.msra.mxu0 %v835
        %1111 = vmatprep.subr.mxu0 %v832
        %1112 = vmatpush1.msra.mxu0 %v831
        %1113 = vmatprep.subr.mxu0 %v828
        %1114 = vmatpush1.msra.mxu0 %v827
        %1115 = vmatprep.subr.mxu0 %v824
        %1116 = vmatpush1.msra.mxu0 %v823
        %1117 = vmatprep.subr.mxu0 %v820
        %1118 = vmatpush1.msra.mxu0 %v819
        %1119 = vmatprep.subr.mxu0 %v816
        %1120 = vmatpush1.msra.mxu0 %v815
        %1121 = vmatprep.subr.mxu0 %v812
        %1122 = vmatpush1.msra.mxu0 %v811
        %1123 = vmatprep.subr.mxu0 %v808
        %1124 = vmatpush1.msra.mxu0 %v807
        %1125 = vmatprep.subr.mxu0 %v804
        %1126 = vmatpush1.msra.mxu0 %v803
        %1127 = vmatprep.subr.mxu0 %v800
        %1128 = vmatpush1.msra.mxu0 %v799
        %1129 = vmatprep.subr.mxu0 %v796
        %1130 = vmatpush1.msra.mxu0 %v795
        %1131 = vmatprep.subr.mxu0 %v792
        %1132 = vmatpush1.msra.mxu0 %v791
        %1133 = vmatprep.subr.mxu0 %v788
        %1134 = vmatpush1.msra.mxu0 %v787
        %1135 = vmatprep.subr.mxu0 %v784
        %1136 = vmatpush1.msra.mxu0 %v783
        %1137 = vmatprep.subr.mxu0 %v780
        %1138 = vmatpush1.msra.mxu0 %v779
        %1139 = vmatprep.subr.mxu0 0.0
        %1140 = vmatpush2.msra.mxu0 0.0
        %1141 = vmatprep.subr.mxu0 0.0
        %1142 = vmatpush2.msra.mxu0 0.0
        %1143 = vmatprep.subr.mxu0 0.0
        %1144 = vmatpush2.msra.mxu0 0.0
        %1145 = vmatprep.subr.mxu0 0.0
        %1146 = vmatpush2.msra.mxu0 0.0
        %1147 = vmatprep.subr.mxu0 0.0
        %1148 = vmatpush2.msra.mxu0 0.0
        %1149 = vmatprep.subr.mxu0 0.0
        %1150 = vmatpush2.msra.mxu0 0.0
        %1151 = vmatprep.subr.mxu0 0.0
        %1152 = vmatpush2.msra.mxu0 0.0
        %1153 = vmatprep.subr.mxu0 0.0
        %1154 = vmatpush2.msra.mxu0 0.0
        %1155 = vmatprep.subr.mxu0 0.0
        %1156 = vmatpush2.msra.mxu0 0.0
        %1157 = vmatprep.subr.mxu0 0.0
        %1158 = vmatpush2.msra.mxu0 0.0
        %1159 = vmatprep.subr.mxu0 0.0
        %1160 = vmatpush2.msra.mxu0 0.0
        %1161 = vmatprep.subr.mxu0 0.0
        %1162 = vmatpush2.msra.mxu0 0.0
        %1163 = vmatprep.subr.mxu0 0.0
        %1164 = vmatpush2.msra.mxu0 0.0
        %1165 = vmatprep.subr.mxu0 0.0
        %1166 = vmatpush2.msra.mxu0 0.0
        %1167 = vmatprep.subr.mxu0 0.0
        %1168 = vmatpush2.msra.mxu0 0.0
        %1169 = vmatprep.subr.mxu0 0.0
        %1170 = vmatpush2.msra.mxu0 0.0
        %1171 = vmatprep.mubr.f32.mxu0 0.0
        %1172 = vmatmul.mubr.f32.gmra.mxu0 %v1026
        %v1173 = vpop.f32.mrf.mxu0
        %v1174 = vadd.f32 0.0, %v1173
        %v1175 = vpop.f32.mrf.mxu0
        %v1176 = vadd.f32 0.0, %v1175
        %1177 = vdwg.mxu0
        %v1178 = vadd.f32 %v1032, %v1103
        %v1179 = vadd.f32 %v1033, %v1105
        %v1180 = vadd.f32 %v1034, %v1174
        %v1181 = vadd.f32 %v1035, %v1176
        %v1182 = vxor.u32 %v1178, 2147483648
        %v1183 = vmul.f32 %v1182, 1.442695
        %v1184 = vpow.pop %v1183
        %v1185 = vadd.f32 %v1184, 1.0
        %v1186 = vrcp.pop %v1185
        %v1187 = vmul.f32 1.0, %v1186
        %v1188 = vxor.u32 %v1179, 2147483648
        %v1189 = vmul.f32 %v1188, 1.442695
        %v1190 = vpow.pop %v1189
        %v1191 = vadd.f32 %v1190, 1.0
        %v1192 = vrcp.pop %v1191
        %v1193 = vmul.f32 1.0, %v1192
        %v1194 = vtanh.pop %v1180
        %v1195 = vxor.u32 %v1181, 2147483648
        %v1196 = vmul.f32 %v1195, 1.442695
        %v1197 = vpow.pop %v1196
        %v1198 = vadd.f32 %v1197, 1.0
        %v1199 = vrcp.pop %v1198
        %v1200 = vmul.f32 1.0, %v1199
        %v1201 = vmul.f32 %v1193, %v1029
        %v1202 = vmul.f32 %v1187, %v1194
        %v1203 = vadd.f32 %v1201, %v1202
        %v1204 = vtanh.pop %v1203
        %v1205 = vmul.f32 %v1200, %v1204
        %s1206 = sadd.s32 %s843, 1
        %p1207 = scmp.lt.s32.totalorder %s1206, 27
        %s1208 = scalar_select %p1207, 1, 0
        %s1209 = scvt.s32.f32 %s1208
        %v1210 = vstv %s1209
        %v1211 = vmul.f32 %v1210, %v1205
        %s1212 = ssub.f32 1.0, %s1209
        %v1213 = vstv %s1212
        %v1214 = vmul.f32 %v1213, %v1026
        %v1215 = vadd.f32 %v1211, %v1214
        %v1216 = vmul.f32 %v1210, %v1203
        %v1217 = vmul.f32 %v1213, %v1029
        %v1218 = vadd.f32 %v1216, %v1217
        %s1219 = scalar_lea.vmem %s394, 8 [#allocation13]
        %1220 = vst [vmem:[%s1219] sm:$0xff] %v1215
        %s1221 = scalar_lea.vmem [#allocation2], 64
        %v1222 = vld [vmem:[%s1221] sm:$0xff]
        %v1223 = vld [vmem:[%s1221 + $0x8] sm:$0xff]
        %v1224 = vld [vmem:[%s1221 + $0x10] sm:$0xff]
        %v1225 = vld [vmem:[%s1221 + $0x18] sm:$0xff]
        %1226 = vmatprep.subr.mxu0 %v838
        %1227 = vmatpush1.msra.mxu0 %v837
        %1228 = vmatprep.subr.mxu0 %v834
        %1229 = vmatpush1.msra.mxu0 %v833
        %1230 = vmatprep.subr.mxu0 %v830
        %1231 = vmatpush1.msra.mxu0 %v829
        %1232 = vmatprep.subr.mxu0 %v826
        %1233 = vmatpush1.msra.mxu0 %v825
        %1234 = vmatprep.subr.mxu0 %v822
        %1235 = vmatpush1.msra.mxu0 %v821
        %1236 = vmatprep.subr.mxu0 %v818
        %1237 = vmatpush1.msra.mxu0 %v817
        %1238 = vmatprep.subr.mxu0 %v814
        %1239 = vmatpush1.msra.mxu0 %v813
        %1240 = vmatprep.subr.mxu0 %v810
        %1241 = vmatpush1.msra.mxu0 %v809
        %1242 = vmatprep.subr.mxu0 %v806
        %1243 = vmatpush1.msra.mxu0 %v805
        %1244 = vmatprep.subr.mxu0 %v802
        %1245 = vmatpush1.msra.mxu0 %v801
        %1246 = vmatprep.subr.mxu0 %v798
        %1247 = vmatpush1.msra.mxu0 %v797
        %1248 = vmatprep.subr.mxu0 %v794
        %1249 = vmatpush1.msra.mxu0 %v793
        %1250 = vmatprep.subr.mxu0 %v790
        %1251 = vmatpush1.msra.mxu0 %v789
        %1252 = vmatprep.subr.mxu0 %v786
        %1253 = vmatpush1.msra.mxu0 %v785
        %1254 = vmatprep.subr.mxu0 %v782
        %1255 = vmatpush1.msra.mxu0 %v781
        %1256 = vmatprep.subr.mxu0 %v778
        %1257 = vmatpush1.msra.mxu0 %v777
        %1258 = vmatprep.subr.mxu0 0.0
        %1259 = vmatpush2.msra.mxu0 0.0
        %1260 = vmatprep.subr.mxu0 0.0
        %1261 = vmatpush2.msra.mxu0 0.0
        %1262 = vmatprep.subr.mxu0 0.0
        %1263 = vmatpush2.msra.mxu0 0.0
        %1264 = vmatprep.subr.mxu0 0.0
        %1265 = vmatpush2.msra.mxu0 0.0
        %1266 = vmatprep.subr.mxu0 0.0
        %1267 = vmatpush2.msra.mxu0 0.0
        %1268 = vmatprep.subr.mxu0 0.0
        %1269 = vmatpush2.msra.mxu0 0.0
        %1270 = vmatprep.subr.mxu0 0.0
        %1271 = vmatpush2.msra.mxu0 0.0
        %1272 = vmatprep.subr.mxu0 0.0
        %1273 = vmatpush2.msra.mxu0 0.0
        %1274 = vmatprep.subr.mxu0 0.0
        %1275 = vmatpush2.msra.mxu0 0.0
        %1276 = vmatprep.subr.mxu0 0.0
        %1277 = vmatpush2.msra.mxu0 0.0
        %1278 = vmatprep.subr.mxu0 0.0
        %1279 = vmatpush2.msra.mxu0 0.0
        %1280 = vmatprep.subr.mxu0 0.0
        %1281 = vmatpush2.msra.mxu0 0.0
        %1282 = vmatprep.subr.mxu0 0.0
        %1283 = vmatpush2.msra.mxu0 0.0
        %1284 = vmatprep.subr.mxu0 0.0
        %1285 = vmatpush2.msra.mxu0 0.0
        %1286 = vmatprep.subr.mxu0 0.0
        %1287 = vmatpush2.msra.mxu0 0.0
        %1288 = vmatprep.subr.mxu0 0.0
        %1289 = vmatpush2.msra.mxu0 0.0
        %1290 = vmatprep.mubr.f32.mxu0 0.0
        %1291 = vmatmul.mubr.f32.gmra.mxu0 %v1215
        %v1292 = vpop.f32.mrf.mxu0
        %v1293 = vadd.f32 0.0, %v1292
        %v1294 = vpop.f32.mrf.mxu0
        %v1295 = vadd.f32 0.0, %v1294
        %1296 = vdwg.mxu0
        %1297 = vmatprep.subr.mxu0 %v840
        %1298 = vmatpush1.msra.mxu0 %v839
        %1299 = vmatprep.subr.mxu0 %v836
        %1300 = vmatpush1.msra.mxu0 %v835
        %1301 = vmatprep.subr.mxu0 %v832
        %1302 = vmatpush1.msra.mxu0 %v831
        %1303 = vmatprep.subr.mxu0 %v828
        %1304 = vmatpush1.msra.mxu0 %v827
        %1305 = vmatprep.subr.mxu0 %v824
        %1306 = vmatpush1.msra.mxu0 %v823
        %1307 = vmatprep.subr.mxu0 %v820
        %1308 = vmatpush1.msra.mxu0 %v819
        %1309 = vmatprep.subr.mxu0 %v816
        %1310 = vmatpush1.msra.mxu0 %v815
        %1311 = vmatprep.subr.mxu0 %v812
        %1312 = vmatpush1.msra.mxu0 %v811
        %1313 = vmatprep.subr.mxu0 %v808
        %1314 = vmatpush1.msra.mxu0 %v807
        %1315 = vmatprep.subr.mxu0 %v804
        %1316 = vmatpush1.msra.mxu0 %v803
        %1317 = vmatprep.subr.mxu0 %v800
        %1318 = vmatpush1.msra.mxu0 %v799
        %1319 = vmatprep.subr.mxu0 %v796
        %1320 = vmatpush1.msra.mxu0 %v795
        %1321 = vmatprep.subr.mxu0 %v792
        %1322 = vmatpush1.msra.mxu0 %v791
        %1323 = vmatprep.subr.mxu0 %v788
        %1324 = vmatpush1.msra.mxu0 %v787
        %1325 = vmatprep.subr.mxu0 %v784
        %1326 = vmatpush1.msra.mxu0 %v783
        %1327 = vmatprep.subr.mxu0 %v780
        %1328 = vmatpush1.msra.mxu0 %v779
        %1329 = vmatprep.subr.mxu0 0.0
        %1330 = vmatpush2.msra.mxu0 0.0
        %1331 = vmatprep.subr.mxu0 0.0
        %1332 = vmatpush2.msra.mxu0 0.0
        %1333 = vmatprep.subr.mxu0 0.0
        %1334 = vmatpush2.msra.mxu0 0.0
        %1335 = vmatprep.subr.mxu0 0.0
        %1336 = vmatpush2.msra.mxu0 0.0
        %1337 = vmatprep.subr.mxu0 0.0
        %1338 = vmatpush2.msra.mxu0 0.0
        %1339 = vmatprep.subr.mxu0 0.0
        %1340 = vmatpush2.msra.mxu0 0.0
        %1341 = vmatprep.subr.mxu0 0.0
        %1342 = vmatpush2.msra.mxu0 0.0
        %1343 = vmatprep.subr.mxu0 0.0
        %1344 = vmatpush2.msra.mxu0 0.0
        %1345 = vmatprep.subr.mxu0 0.0
        %1346 = vmatpush2.msra.mxu0 0.0
        %1347 = vmatprep.subr.mxu0 0.0
        %1348 = vmatpush2.msra.mxu0 0.0
        %1349 = vmatprep.subr.mxu0 0.0
        %1350 = vmatpush2.msra.mxu0 0.0
        %1351 = vmatprep.subr.mxu0 0.0
        %1352 = vmatpush2.msra.mxu0 0.0
        %1353 = vmatprep.subr.mxu0 0.0
        %1354 = vmatpush2.msra.mxu0 0.0
        %1355 = vmatprep.subr.mxu0 0.0
        %1356 = vmatpush2.msra.mxu0 0.0
        %1357 = vmatprep.subr.mxu0 0.0
        %1358 = vmatpush2.msra.mxu0 0.0
        %1359 = vmatprep.subr.mxu0 0.0
        %1360 = vmatpush2.msra.mxu0 0.0
        %1361 = vmatprep.mubr.f32.mxu0 0.0
        %1362 = vmatmul.mubr.f32.gmra.mxu0 %v1215
        %v1363 = vpop.f32.mrf.mxu0
        %v1364 = vadd.f32 0.0, %v1363
        %v1365 = vpop.f32.mrf.mxu0
        %v1366 = vadd.f32 0.0, %v1365
        %1367 = vdwg.mxu0
        %v1368 = vadd.f32 %v1222, %v1293
        %v1369 = vadd.f32 %v1223, %v1295
        %v1370 = vadd.f32 %v1224, %v1364
        %v1371 = vadd.f32 %v1225, %v1366
        %v1372 = vxor.u32 %v1368, 2147483648
        %v1373 = vmul.f32 %v1372, 1.442695
        %v1374 = vpow.pop %v1373
        %v1375 = vadd.f32 %v1374, 1.0
        %v1376 = vrcp.pop %v1375
        %v1377 = vmul.f32 1.0, %v1376
        %v1378 = vxor.u32 %v1369, 2147483648
        %v1379 = vmul.f32 %v1378, 1.442695
        %v1380 = vpow.pop %v1379
        %v1381 = vadd.f32 %v1380, 1.0
        %v1382 = vrcp.pop %v1381
        %v1383 = vmul.f32 1.0, %v1382
        %v1384 = vtanh.pop %v1370
        %v1385 = vxor.u32 %v1371, 2147483648
        %v1386 = vmul.f32 %v1385, 1.442695
        %v1387 = vpow.pop %v1386
        %v1388 = vadd.f32 %v1387, 1.0
        %v1389 = vrcp.pop %v1388
        %v1390 = vmul.f32 1.0, %v1389
        %v1391 = vmul.f32 %v1383, %v1218
        %v1392 = vmul.f32 %v1377, %v1384
        %v1393 = vadd.f32 %v1391, %v1392
        %v1394 = vtanh.pop %v1393
        %v1395 = vmul.f32 %v1390, %v1394
        %s1396 = sadd.s32 %s843, 2
        %p1397 = scmp.lt.s32.totalorder %s1396, 27
        %s1398 = scalar_select %p1397, 1, 0
        %s1399 = scvt.s32.f32 %s1398
        %v1400 = vstv %s1399
        %v1401 = vmul.f32 %v1400, %v1395
        %s1402 = ssub.f32 1.0, %s1399
        %v1403 = vstv %s1402
        %v1404 = vmul.f32 %v1403, %v1215
        %v1405 = vadd.f32 %v1401, %v1404
        %v1406 = vmul.f32 %v1400, %v1393
        %v1407 = vmul.f32 %v1403, %v1218
        %v1408 = vadd.f32 %v1406, %v1407
        %s1409 = scalar_lea.vmem %s394, 16 [#allocation13]
        %1410 = vst [vmem:[%s1409] sm:$0xff] %v1405
        %s1411 = scalar_lea.vmem [#allocation2], 96
        %v1412 = vld [vmem:[%s1411] sm:$0xff]
        %v1413 = vld [vmem:[%s1411 + $0x8] sm:$0xff]
        %v1414 = vld [vmem:[%s1411 + $0x10] sm:$0xff]
        %v1415 = vld [vmem:[%s1411 + $0x18] sm:$0xff]
        %1416 = vmatprep.subr.mxu0 %v838
        %1417 = vmatpush1.msra.mxu0 %v837
        %1418 = vmatprep.subr.mxu0 %v834
        %1419 = vmatpush1.msra.mxu0 %v833
        %1420 = vmatprep.subr.mxu0 %v830
        %1421 = vmatpush1.msra.mxu0 %v829
        %1422 = vmatprep.subr.mxu0 %v826
        %1423 = vmatpush1.msra.mxu0 %v825
        %1424 = vmatprep.subr.mxu0 %v822
        %1425 = vmatpush1.msra.mxu0 %v821
        %1426 = vmatprep.subr.mxu0 %v818
        %1427 = vmatpush1.msra.mxu0 %v817
        %1428 = vmatprep.subr.mxu0 %v814
        %1429 = vmatpush1.msra.mxu0 %v813
        %1430 = vmatprep.subr.mxu0 %v810
        %1431 = vmatpush1.msra.mxu0 %v809
        %1432 = vmatprep.subr.mxu0 %v806
        %1433 = vmatpush1.msra.mxu0 %v805
        %1434 = vmatprep.subr.mxu0 %v802
        %1435 = vmatpush1.msra.mxu0 %v801
        %1436 = vmatprep.subr.mxu0 %v798
        %1437 = vmatpush1.msra.mxu0 %v797
        %1438 = vmatprep.subr.mxu0 %v794
        %1439 = vmatpush1.msra.mxu0 %v793
        %1440 = vmatprep.subr.mxu0 %v790
        %1441 = vmatpush1.msra.mxu0 %v789
        %1442 = vmatprep.subr.mxu0 %v786
        %1443 = vmatpush1.msra.mxu0 %v785
        %1444 = vmatprep.subr.mxu0 %v782
        %1445 = vmatpush1.msra.mxu0 %v781
        %1446 = vmatprep.subr.mxu0 %v778
        %1447 = vmatpush1.msra.mxu0 %v777
        %1448 = vmatprep.subr.mxu0 0.0
        %1449 = vmatpush2.msra.mxu0 0.0
        %1450 = vmatprep.subr.mxu0 0.0
        %1451 = vmatpush2.msra.mxu0 0.0
        %1452 = vmatprep.subr.mxu0 0.0
        %1453 = vmatpush2.msra.mxu0 0.0
        %1454 = vmatprep.subr.mxu0 0.0
        %1455 = vmatpush2.msra.mxu0 0.0
        %1456 = vmatprep.subr.mxu0 0.0
        %1457 = vmatpush2.msra.mxu0 0.0
        %1458 = vmatprep.subr.mxu0 0.0
        %1459 = vmatpush2.msra.mxu0 0.0
        %1460 = vmatprep.subr.mxu0 0.0
        %1461 = vmatpush2.msra.mxu0 0.0
        %1462 = vmatprep.subr.mxu0 0.0
        %1463 = vmatpush2.msra.mxu0 0.0
        %1464 = vmatprep.subr.mxu0 0.0
        %1465 = vmatpush2.msra.mxu0 0.0
        %1466 = vmatprep.subr.mxu0 0.0
        %1467 = vmatpush2.msra.mxu0 0.0
        %1468 = vmatprep.subr.mxu0 0.0
        %1469 = vmatpush2.msra.mxu0 0.0
        %1470 = vmatprep.subr.mxu0 0.0
        %1471 = vmatpush2.msra.mxu0 0.0
        %1472 = vmatprep.subr.mxu0 0.0
        %1473 = vmatpush2.msra.mxu0 0.0
        %1474 = vmatprep.subr.mxu0 0.0
        %1475 = vmatpush2.msra.mxu0 0.0
        %1476 = vmatprep.subr.mxu0 0.0
        %1477 = vmatpush2.msra.mxu0 0.0
        %1478 = vmatprep.subr.mxu0 0.0
        %1479 = vmatpush2.msra.mxu0 0.0
        %1480 = vmatprep.mubr.f32.mxu0 0.0
        %1481 = vmatmul.mubr.f32.gmra.mxu0 %v1405
        %v1482 = vpop.f32.mrf.mxu0
        %v1483 = vadd.f32 0.0, %v1482
        %v1484 = vpop.f32.mrf.mxu0
        %v1485 = vadd.f32 0.0, %v1484
        %1486 = vdwg.mxu0
        %1487 = vmatprep.subr.mxu0 %v840
        %1488 = vmatpush1.msra.mxu0 %v839
        %1489 = vmatprep.subr.mxu0 %v836
        %1490 = vmatpush1.msra.mxu0 %v835
        %1491 = vmatprep.subr.mxu0 %v832
        %1492 = vmatpush1.msra.mxu0 %v831
        %1493 = vmatprep.subr.mxu0 %v828
        %1494 = vmatpush1.msra.mxu0 %v827
        %1495 = vmatprep.subr.mxu0 %v824
        %1496 = vmatpush1.msra.mxu0 %v823
        %1497 = vmatprep.subr.mxu0 %v820
        %1498 = vmatpush1.msra.mxu0 %v819
        %1499 = vmatprep.subr.mxu0 %v816
        %1500 = vmatpush1.msra.mxu0 %v815
        %1501 = vmatprep.subr.mxu0 %v812
        %1502 = vmatpush1.msra.mxu0 %v811
        %1503 = vmatprep.subr.mxu0 %v808
        %1504 = vmatpush1.msra.mxu0 %v807
        %1505 = vmatprep.subr.mxu0 %v804
        %1506 = vmatpush1.msra.mxu0 %v803
        %1507 = vmatprep.subr.mxu0 %v800
        %1508 = vmatpush1.msra.mxu0 %v799
        %1509 = vmatprep.subr.mxu0 %v796
        %1510 = vmatpush1.msra.mxu0 %v795
        %1511 = vmatprep.subr.mxu0 %v792
        %1512 = vmatpush1.msra.mxu0 %v791
        %1513 = vmatprep.subr.mxu0 %v788
        %1514 = vmatpush1.msra.mxu0 %v787
        %1515 = vmatprep.subr.mxu0 %v784
        %1516 = vmatpush1.msra.mxu0 %v783
        %1517 = vmatprep.subr.mxu0 %v780
        %1518 = vmatpush1.msra.mxu0 %v779
        %1519 = vmatprep.subr.mxu0 0.0
        %1520 = vmatpush2.msra.mxu0 0.0
        %1521 = vmatprep.subr.mxu0 0.0
        %1522 = vmatpush2.msra.mxu0 0.0
        %1523 = vmatprep.subr.mxu0 0.0
        %1524 = vmatpush2.msra.mxu0 0.0
        %1525 = vmatprep.subr.mxu0 0.0
        %1526 = vmatpush2.msra.mxu0 0.0
        %1527 = vmatprep.subr.mxu0 0.0
        %1528 = vmatpush2.msra.mxu0 0.0
        %1529 = vmatprep.subr.mxu0 0.0
        %1530 = vmatpush2.msra.mxu0 0.0
        %1531 = vmatprep.subr.mxu0 0.0
        %1532 = vmatpush2.msra.mxu0 0.0
        %1533 = vmatprep.subr.mxu0 0.0
        %1534 = vmatpush2.msra.mxu0 0.0
        %1535 = vmatprep.subr.mxu0 0.0
        %1536 = vmatpush2.msra.mxu0 0.0
        %1537 = vmatprep.subr.mxu0 0.0
        %1538 = vmatpush2.msra.mxu0 0.0
        %1539 = vmatprep.subr.mxu0 0.0
        %1540 = vmatpush2.msra.mxu0 0.0
        %1541 = vmatprep.subr.mxu0 0.0
        %1542 = vmatpush2.msra.mxu0 0.0
        %1543 = vmatprep.subr.mxu0 0.0
        %1544 = vmatpush2.msra.mxu0 0.0
        %1545 = vmatprep.subr.mxu0 0.0
        %1546 = vmatpush2.msra.mxu0 0.0
        %1547 = vmatprep.subr.mxu0 0.0
        %1548 = vmatpush2.msra.mxu0 0.0
        %1549 = vmatprep.subr.mxu0 0.0
        %1550 = vmatpush2.msra.mxu0 0.0
        %1551 = vmatprep.mubr.f32.mxu0 0.0
        %1552 = vmatmul.mubr.f32.gmra.mxu0 %v1405
        %v1553 = vpop.f32.mrf.mxu0
        %v1554 = vadd.f32 0.0, %v1553
        %v1555 = vpop.f32.mrf.mxu0
        %v1556 = vadd.f32 0.0, %v1555
        %1557 = vdwg.mxu0
        %v1558 = vadd.f32 %v1412, %v1483
        %v1559 = vadd.f32 %v1413, %v1485
        %v1560 = vadd.f32 %v1414, %v1554
        %v1561 = vadd.f32 %v1415, %v1556
        %v1562 = vxor.u32 %v1558, 2147483648
        %v1563 = vmul.f32 %v1562, 1.442695
        %v1564 = vpow.pop %v1563
        %v1565 = vadd.f32 %v1564, 1.0
        %v1566 = vrcp.pop %v1565
        %v1567 = vmul.f32 1.0, %v1566
        %v1568 = vxor.u32 %v1559, 2147483648
        %v1569 = vmul.f32 %v1568, 1.442695
        %v1570 = vpow.pop %v1569
        %v1571 = vadd.f32 %v1570, 1.0
        %v1572 = vrcp.pop %v1571
        %v1573 = vmul.f32 1.0, %v1572
        %v1574 = vtanh.pop %v1560
        %v1575 = vxor.u32 %v1561, 2147483648
        %v1576 = vmul.f32 %v1575, 1.442695
        %v1577 = vpow.pop %v1576
        %v1578 = vadd.f32 %v1577, 1.0
        %v1579 = vrcp.pop %v1578
        %v1580 = vmul.f32 1.0, %v1579
        %v1581 = vmul.f32 %v1573, %v1408
        %v1582 = vmul.f32 %v1567, %v1574
        %v1583 = vadd.f32 %v1581, %v1582
        %v1584 = vtanh.pop %v1583
        %v1585 = vmul.f32 %v1580, %v1584
        %s1586 = sadd.s32 %s843, 3
        %p1587 = scmp.lt.s32.totalorder %s1586, 27
        %s1588 = scalar_select %p1587, 1, 0
        %s1589 = scvt.s32.f32 %s1588
        %v1590 = vstv %s1589
        %v1591 = vmul.f32 %v1590, %v1585
        %s1592 = ssub.f32 1.0, %s1589
        %v1593 = vstv %s1592
        %v1594 = vmul.f32 %v1593, %v1405
        %v1595 = vadd.f32 %v1591, %v1594
        %v1596 = vmul.f32 %v1590, %v1583
        %v1597 = vmul.f32 %v1593, %v1408
        %v1598 = vadd.f32 %v1596, %v1597
        %s1599 = scalar_lea.vmem %s394, 24 [#allocation13]
        %1600 = vst [vmem:[%s1599] sm:$0xff] %v1595
        %s1601 = scalar_lea.vmem [#allocation2], 128
        %v1602 = vld [vmem:[%s1601] sm:$0xff]
        %v1603 = vld [vmem:[%s1601 + $0x8] sm:$0xff]
        %v1604 = vld [vmem:[%s1601 + $0x10] sm:$0xff]
        %v1605 = vld [vmem:[%s1601 + $0x18] sm:$0xff]
        %1606 = vmatprep.subr.mxu0 %v838
        %1607 = vmatpush1.msra.mxu0 %v837
        %1608 = vmatprep.subr.mxu0 %v834
        %1609 = vmatpush1.msra.mxu0 %v833
        %1610 = vmatprep.subr.mxu0 %v830
        %1611 = vmatpush1.msra.mxu0 %v829
        %1612 = vmatprep.subr.mxu0 %v826
        %1613 = vmatpush1.msra.mxu0 %v825
        %1614 = vmatprep.subr.mxu0 %v822
        %1615 = vmatpush1.msra.mxu0 %v821
        %1616 = vmatprep.subr.mxu0 %v818
        %1617 = vmatpush1.msra.mxu0 %v817
        %1618 = vmatprep.subr.mxu0 %v814
        %1619 = vmatpush1.msra.mxu0 %v813
        %1620 = vmatprep.subr.mxu0 %v810
        %1621 = vmatpush1.msra.mxu0 %v809
        %1622 = vmatprep.subr.mxu0 %v806
        %1623 = vmatpush1.msra.mxu0 %v805
        %1624 = vmatprep.subr.mxu0 %v802
        %1625 = vmatpush1.msra.mxu0 %v801
        %1626 = vmatprep.subr.mxu0 %v798
        %1627 = vmatpush1.msra.mxu0 %v797
        %1628 = vmatprep.subr.mxu0 %v794
        %1629 = vmatpush1.msra.mxu0 %v793
        %1630 = vmatprep.subr.mxu0 %v790
        %1631 = vmatpush1.msra.mxu0 %v789
        %1632 = vmatprep.subr.mxu0 %v786
        %1633 = vmatpush1.msra.mxu0 %v785
        %1634 = vmatprep.subr.mxu0 %v782
        %1635 = vmatpush1.msra.mxu0 %v781
        %1636 = vmatprep.subr.mxu0 %v778
        %1637 = vmatpush1.msra.mxu0 %v777
        %1638 = vmatprep.subr.mxu0 0.0
        %1639 = vmatpush2.msra.mxu0 0.0
        %1640 = vmatprep.subr.mxu0 0.0
        %1641 = vmatpush2.msra.mxu0 0.0
        %1642 = vmatprep.subr.mxu0 0.0
        %1643 = vmatpush2.msra.mxu0 0.0
        %1644 = vmatprep.subr.mxu0 0.0
        %1645 = vmatpush2.msra.mxu0 0.0
        %1646 = vmatprep.subr.mxu0 0.0
        %1647 = vmatpush2.msra.mxu0 0.0
        %1648 = vmatprep.subr.mxu0 0.0
        %1649 = vmatpush2.msra.mxu0 0.0
        %1650 = vmatprep.subr.mxu0 0.0
        %1651 = vmatpush2.msra.mxu0 0.0
        %1652 = vmatprep.subr.mxu0 0.0
        %1653 = vmatpush2.msra.mxu0 0.0
        %1654 = vmatprep.subr.mxu0 0.0
        %1655 = vmatpush2.msra.mxu0 0.0
        %1656 = vmatprep.subr.mxu0 0.0
        %1657 = vmatpush2.msra.mxu0 0.0
        %1658 = vmatprep.subr.mxu0 0.0
        %1659 = vmatpush2.msra.mxu0 0.0
        %1660 = vmatprep.subr.mxu0 0.0
        %1661 = vmatpush2.msra.mxu0 0.0
        %1662 = vmatprep.subr.mxu0 0.0
        %1663 = vmatpush2.msra.mxu0 0.0
        %1664 = vmatprep.subr.mxu0 0.0
        %1665 = vmatpush2.msra.mxu0 0.0
        %1666 = vmatprep.subr.mxu0 0.0
        %1667 = vmatpush2.msra.mxu0 0.0
        %1668 = vmatprep.subr.mxu0 0.0
        %1669 = vmatpush2.msra.mxu0 0.0
        %1670 = vmatprep.mubr.f32.mxu0 0.0
        %1671 = vmatmul.mubr.f32.gmra.mxu0 %v1595
        %v1672 = vpop.f32.mrf.mxu0
        %v1673 = vadd.f32 0.0, %v1672
        %v1674 = vpop.f32.mrf.mxu0
        %v1675 = vadd.f32 0.0, %v1674
        %1676 = vdwg.mxu0
        %1677 = vmatprep.subr.mxu0 %v840
        %1678 = vmatpush1.msra.mxu0 %v839
        %1679 = vmatprep.subr.mxu0 %v836
        %1680 = vmatpush1.msra.mxu0 %v835
        %1681 = vmatprep.subr.mxu0 %v832
        %1682 = vmatpush1.msra.mxu0 %v831
        %1683 = vmatprep.subr.mxu0 %v828
        %1684 = vmatpush1.msra.mxu0 %v827
        %1685 = vmatprep.subr.mxu0 %v824
        %1686 = vmatpush1.msra.mxu0 %v823
        %1687 = vmatprep.subr.mxu0 %v820
        %1688 = vmatpush1.msra.mxu0 %v819
        %1689 = vmatprep.subr.mxu0 %v816
        %1690 = vmatpush1.msra.mxu0 %v815
        %1691 = vmatprep.subr.mxu0 %v812
        %1692 = vmatpush1.msra.mxu0 %v811
        %1693 = vmatprep.subr.mxu0 %v808
        %1694 = vmatpush1.msra.mxu0 %v807
        %1695 = vmatprep.subr.mxu0 %v804
        %1696 = vmatpush1.msra.mxu0 %v803
        %1697 = vmatprep.subr.mxu0 %v800
        %1698 = vmatpush1.msra.mxu0 %v799
        %1699 = vmatprep.subr.mxu0 %v796
        %1700 = vmatpush1.msra.mxu0 %v795
        %1701 = vmatprep.subr.mxu0 %v792
        %1702 = vmatpush1.msra.mxu0 %v791
        %1703 = vmatprep.subr.mxu0 %v788
        %1704 = vmatpush1.msra.mxu0 %v787
        %1705 = vmatprep.subr.mxu0 %v784
        %1706 = vmatpush1.msra.mxu0 %v783
        %1707 = vmatprep.subr.mxu0 %v780
        %1708 = vmatpush1.msra.mxu0 %v779
        %1709 = vmatprep.subr.mxu0 0.0
        %1710 = vmatpush2.msra.mxu0 0.0
        %1711 = vmatprep.subr.mxu0 0.0
        %1712 = vmatpush2.msra.mxu0 0.0
        %1713 = vmatprep.subr.mxu0 0.0
        %1714 = vmatpush2.msra.mxu0 0.0
        %1715 = vmatprep.subr.mxu0 0.0
        %1716 = vmatpush2.msra.mxu0 0.0
        %1717 = vmatprep.subr.mxu0 0.0
        %1718 = vmatpush2.msra.mxu0 0.0
        %1719 = vmatprep.subr.mxu0 0.0
        %1720 = vmatpush2.msra.mxu0 0.0
        %1721 = vmatprep.subr.mxu0 0.0
        %1722 = vmatpush2.msra.mxu0 0.0
        %1723 = vmatprep.subr.mxu0 0.0
        %1724 = vmatpush2.msra.mxu0 0.0
        %1725 = vmatprep.subr.mxu0 0.0
        %1726 = vmatpush2.msra.mxu0 0.0
        %1727 = vmatprep.subr.mxu0 0.0
        %1728 = vmatpush2.msra.mxu0 0.0
        %1729 = vmatprep.subr.mxu0 0.0
        %1730 = vmatpush2.msra.mxu0 0.0
        %1731 = vmatprep.subr.mxu0 0.0
        %1732 = vmatpush2.msra.mxu0 0.0
        %1733 = vmatprep.subr.mxu0 0.0
        %1734 = vmatpush2.msra.mxu0 0.0
        %1735 = vmatprep.subr.mxu0 0.0
        %1736 = vmatpush2.msra.mxu0 0.0
        %1737 = vmatprep.subr.mxu0 0.0
        %1738 = vmatpush2.msra.mxu0 0.0
        %1739 = vmatprep.subr.mxu0 0.0
        %1740 = vmatpush2.msra.mxu0 0.0
        %1741 = vmatprep.mubr.f32.mxu0 0.0
        %1742 = vmatmul.mubr.f32.gmra.mxu0 %v1595
        %v1743 = vpop.f32.mrf.mxu0
        %v1744 = vadd.f32 0.0, %v1743
        %v1745 = vpop.f32.mrf.mxu0
        %v1746 = vadd.f32 0.0, %v1745
        %1747 = vdwg.mxu0
        %v1748 = vadd.f32 %v1602, %v1673
        %v1749 = vadd.f32 %v1603, %v1675
        %v1750 = vadd.f32 %v1604, %v1744
        %v1751 = vadd.f32 %v1605, %v1746
        %v1752 = vxor.u32 %v1748, 2147483648
        %v1753 = vmul.f32 %v1752, 1.442695
        %v1754 = vpow.pop %v1753
        %v1755 = vadd.f32 %v1754, 1.0
        %v1756 = vrcp.pop %v1755
        %v1757 = vmul.f32 1.0, %v1756
        %v1758 = vxor.u32 %v1749, 2147483648
        %v1759 = vmul.f32 %v1758, 1.442695
        %v1760 = vpow.pop %v1759
        %v1761 = vadd.f32 %v1760, 1.0
        %v1762 = vrcp.pop %v1761
        %v1763 = vmul.f32 1.0, %v1762
        %v1764 = vtanh.pop %v1750
        %v1765 = vxor.u32 %v1751, 2147483648
        %v1766 = vmul.f32 %v1765, 1.442695
        %v1767 = vpow.pop %v1766
        %v1768 = vadd.f32 %v1767, 1.0
        %v1769 = vrcp.pop %v1768
        %v1770 = vmul.f32 1.0, %v1769
        %v1771 = vmul.f32 %v1763, %v1598
        %v1772 = vmul.f32 %v1757, %v1764
        %v1773 = vadd.f32 %v1771, %v1772
        %v1774 = vtanh.pop %v1773
        %v1775 = vmul.f32 %v1770, %v1774
        %s1776 = sadd.s32 %s843, 4
        %p1777 = scmp.lt.s32.totalorder %s1776, 27
        %s1778 = scalar_select %p1777, 1, 0
        %s1779 = scvt.s32.f32 %s1778
        %v1780 = vstv %s1779
        %v1781 = vmul.f32 %v1780, %v1775
        %s1782 = ssub.f32 1.0, %s1779
        %v1783 = vstv %s1782
        %v1784 = vmul.f32 %v1783, %v1595
        %v1785 = vadd.f32 %v1781, %v1784
        %v1786 = vmul.f32 %v1780, %v1773
        %v1787 = vmul.f32 %v1783, %v1598
        %v1788 = vadd.f32 %v1786, %v1787
        %s1789 = scalar_lea.vmem %s394, 32 [#allocation13]
        %1790 = vst [vmem:[%s1789] sm:$0xff] %v1785
        %s1791 = scalar_lea.vmem [#allocation2], 160
        %v1792 = vld [vmem:[%s1791] sm:$0xff]
        %v1793 = vld [vmem:[%s1791 + $0x8] sm:$0xff]
        %v1794 = vld [vmem:[%s1791 + $0x10] sm:$0xff]
        %v1795 = vld [vmem:[%s1791 + $0x18] sm:$0xff]
        %1796 = vmatprep.subr.mxu0 %v838
        %1797 = vmatpush1.msra.mxu0 %v837
        %1798 = vmatprep.subr.mxu0 %v834
        %1799 = vmatpush1.msra.mxu0 %v833
        %1800 = vmatprep.subr.mxu0 %v830
        %1801 = vmatpush1.msra.mxu0 %v829
        %1802 = vmatprep.subr.mxu0 %v826
        %1803 = vmatpush1.msra.mxu0 %v825
        %1804 = vmatprep.subr.mxu0 %v822
        %1805 = vmatpush1.msra.mxu0 %v821
        %1806 = vmatprep.subr.mxu0 %v818
        %1807 = vmatpush1.msra.mxu0 %v817
        %1808 = vmatprep.subr.mxu0 %v814
        %1809 = vmatpush1.msra.mxu0 %v813
        %1810 = vmatprep.subr.mxu0 %v810
        %1811 = vmatpush1.msra.mxu0 %v809
        %1812 = vmatprep.subr.mxu0 %v806
        %1813 = vmatpush1.msra.mxu0 %v805
        %1814 = vmatprep.subr.mxu0 %v802
        %1815 = vmatpush1.msra.mxu0 %v801
        %1816 = vmatprep.subr.mxu0 %v798
        %1817 = vmatpush1.msra.mxu0 %v797
        %1818 = vmatprep.subr.mxu0 %v794
        %1819 = vmatpush1.msra.mxu0 %v793
        %1820 = vmatprep.subr.mxu0 %v790
        %1821 = vmatpush1.msra.mxu0 %v789
        %1822 = vmatprep.subr.mxu0 %v786
        %1823 = vmatpush1.msra.mxu0 %v785
        %1824 = vmatprep.subr.mxu0 %v782
        %1825 = vmatpush1.msra.mxu0 %v781
        %1826 = vmatprep.subr.mxu0 %v778
        %1827 = vmatpush1.msra.mxu0 %v777
        %1828 = vmatprep.subr.mxu0 0.0
        %1829 = vmatpush2.msra.mxu0 0.0
        %1830 = vmatprep.subr.mxu0 0.0
        %1831 = vmatpush2.msra.mxu0 0.0
        %1832 = vmatprep.subr.mxu0 0.0
        %1833 = vmatpush2.msra.mxu0 0.0
        %1834 = vmatprep.subr.mxu0 0.0
        %1835 = vmatpush2.msra.mxu0 0.0
        %1836 = vmatprep.subr.mxu0 0.0
        %1837 = vmatpush2.msra.mxu0 0.0
        %1838 = vmatprep.subr.mxu0 0.0
        %1839 = vmatpush2.msra.mxu0 0.0
        %1840 = vmatprep.subr.mxu0 0.0
        %1841 = vmatpush2.msra.mxu0 0.0
        %1842 = vmatprep.subr.mxu0 0.0
        %1843 = vmatpush2.msra.mxu0 0.0
        %1844 = vmatprep.subr.mxu0 0.0
        %1845 = vmatpush2.msra.mxu0 0.0
        %1846 = vmatprep.subr.mxu0 0.0
        %1847 = vmatpush2.msra.mxu0 0.0
        %1848 = vmatprep.subr.mxu0 0.0
        %1849 = vmatpush2.msra.mxu0 0.0
        %1850 = vmatprep.subr.mxu0 0.0
        %1851 = vmatpush2.msra.mxu0 0.0
        %1852 = vmatprep.subr.mxu0 0.0
        %1853 = vmatpush2.msra.mxu0 0.0
        %1854 = vmatprep.subr.mxu0 0.0
        %1855 = vmatpush2.msra.mxu0 0.0
        %1856 = vmatprep.subr.mxu0 0.0
        %1857 = vmatpush2.msra.mxu0 0.0
        %1858 = vmatprep.subr.mxu0 0.0
        %1859 = vmatpush2.msra.mxu0 0.0
        %1860 = vmatprep.mubr.f32.mxu0 0.0
        %1861 = vmatmul.mubr.f32.gmra.mxu0 %v1785
        %v1862 = vpop.f32.mrf.mxu0
        %v1863 = vadd.f32 0.0, %v1862
        %v1864 = vpop.f32.mrf.mxu0
        %v1865 = vadd.f32 0.0, %v1864
        %1866 = vdwg.mxu0
        %1867 = vmatprep.subr.mxu0 %v840
        %1868 = vmatpush1.msra.mxu0 %v839
        %1869 = vmatprep.subr.mxu0 %v836
        %1870 = vmatpush1.msra.mxu0 %v835
        %1871 = vmatprep.subr.mxu0 %v832
        %1872 = vmatpush1.msra.mxu0 %v831
        %1873 = vmatprep.subr.mxu0 %v828
        %1874 = vmatpush1.msra.mxu0 %v827
        %1875 = vmatprep.subr.mxu0 %v824
        %1876 = vmatpush1.msra.mxu0 %v823
        %1877 = vmatprep.subr.mxu0 %v820
        %1878 = vmatpush1.msra.mxu0 %v819
        %1879 = vmatprep.subr.mxu0 %v816
        %1880 = vmatpush1.msra.mxu0 %v815
        %1881 = vmatprep.subr.mxu0 %v812
        %1882 = vmatpush1.msra.mxu0 %v811
        %1883 = vmatprep.subr.mxu0 %v808
        %1884 = vmatpush1.msra.mxu0 %v807
        %1885 = vmatprep.subr.mxu0 %v804
        %1886 = vmatpush1.msra.mxu0 %v803
        %1887 = vmatprep.subr.mxu0 %v800
        %1888 = vmatpush1.msra.mxu0 %v799
        %1889 = vmatprep.subr.mxu0 %v796
        %1890 = vmatpush1.msra.mxu0 %v795
        %1891 = vmatprep.subr.mxu0 %v792
        %1892 = vmatpush1.msra.mxu0 %v791
        %1893 = vmatprep.subr.mxu0 %v788
        %1894 = vmatpush1.msra.mxu0 %v787
        %1895 = vmatprep.subr.mxu0 %v784
        %1896 = vmatpush1.msra.mxu0 %v783
        %1897 = vmatprep.subr.mxu0 %v780
        %1898 = vmatpush1.msra.mxu0 %v779
        %1899 = vmatprep.subr.mxu0 0.0
        %1900 = vmatpush2.msra.mxu0 0.0
        %1901 = vmatprep.subr.mxu0 0.0
        %1902 = vmatpush2.msra.mxu0 0.0
        %1903 = vmatprep.subr.mxu0 0.0
        %1904 = vmatpush2.msra.mxu0 0.0
        %1905 = vmatprep.subr.mxu0 0.0
        %1906 = vmatpush2.msra.mxu0 0.0
        %1907 = vmatprep.subr.mxu0 0.0
        %1908 = vmatpush2.msra.mxu0 0.0
        %1909 = vmatprep.subr.mxu0 0.0
        %1910 = vmatpush2.msra.mxu0 0.0
        %1911 = vmatprep.subr.mxu0 0.0
        %1912 = vmatpush2.msra.mxu0 0.0
        %1913 = vmatprep.subr.mxu0 0.0
        %1914 = vmatpush2.msra.mxu0 0.0
        %1915 = vmatprep.subr.mxu0 0.0
        %1916 = vmatpush2.msra.mxu0 0.0
        %1917 = vmatprep.subr.mxu0 0.0
        %1918 = vmatpush2.msra.mxu0 0.0
        %1919 = vmatprep.subr.mxu0 0.0
        %1920 = vmatpush2.msra.mxu0 0.0
        %1921 = vmatprep.subr.mxu0 0.0
        %1922 = vmatpush2.msra.mxu0 0.0
        %1923 = vmatprep.subr.mxu0 0.0
        %1924 = vmatpush2.msra.mxu0 0.0
        %1925 = vmatprep.subr.mxu0 0.0
        %1926 = vmatpush2.msra.mxu0 0.0
        %1927 = vmatprep.subr.mxu0 0.0
        %1928 = vmatpush2.msra.mxu0 0.0
        %1929 = vmatprep.subr.mxu0 0.0
        %1930 = vmatpush2.msra.mxu0 0.0
        %1931 = vmatprep.mubr.f32.mxu0 0.0
        %1932 = vmatmul.mubr.f32.gmra.mxu0 %v1785
        %v1933 = vpop.f32.mrf.mxu0
        %v1934 = vadd.f32 0.0, %v1933
        %v1935 = vpop.f32.mrf.mxu0
        %v1936 = vadd.f32 0.0, %v1935
        %1937 = vdwg.mxu0
        %v1938 = vadd.f32 %v1792, %v1863
        %v1939 = vadd.f32 %v1793, %v1865
        %v1940 = vadd.f32 %v1794, %v1934
        %v1941 = vadd.f32 %v1795, %v1936
        %v1942 = vxor.u32 %v1938, 2147483648
        %v1943 = vmul.f32 %v1942, 1.442695
        %v1944 = vpow.pop %v1943
        %v1945 = vadd.f32 %v1944, 1.0
        %v1946 = vrcp.pop %v1945
        %v1947 = vmul.f32 1.0, %v1946
        %v1948 = vxor.u32 %v1939, 2147483648
        %v1949 = vmul.f32 %v1948, 1.442695
        %v1950 = vpow.pop %v1949
        %v1951 = vadd.f32 %v1950, 1.0
        %v1952 = vrcp.pop %v1951
        %v1953 = vmul.f32 1.0, %v1952
        %v1954 = vtanh.pop %v1940
        %v1955 = vxor.u32 %v1941, 2147483648
        %v1956 = vmul.f32 %v1955, 1.442695
        %v1957 = vpow.pop %v1956
        %v1958 = vadd.f32 %v1957, 1.0
        %v1959 = vrcp.pop %v1958
        %v1960 = vmul.f32 1.0, %v1959
        %v1961 = vmul.f32 %v1953, %v1788
        %v1962 = vmul.f32 %v1947, %v1954
        %v1963 = vadd.f32 %v1961, %v1962
        %v1964 = vtanh.pop %v1963
        %v1965 = vmul.f32 %v1960, %v1964
        %s1966 = sadd.s32 %s843, 5
        %p1967 = scmp.lt.s32.totalorder %s1966, 27
        %s1968 = scalar_select %p1967, 1, 0
        %s1969 = scvt.s32.f32 %s1968
        %v1970 = vstv %s1969
        %v1971 = vmul.f32 %v1970, %v1965
        %s1972 = ssub.f32 1.0, %s1969
        %v1973 = vstv %s1972
        %v1974 = vmul.f32 %v1973, %v1785
        %v1975 = vadd.f32 %v1971, %v1974
        %v1976 = vmul.f32 %v1970, %v1963
        %v1977 = vmul.f32 %v1973, %v1788
        %v1978 = vadd.f32 %v1976, %v1977
        %s1979 = scalar_lea.vmem %s394, 40 [#allocation13]
        %1980 = vst [vmem:[%s1979] sm:$0xff] %v1975
        %s1981 = scalar_lea.vmem [#allocation2], 192
        %v1982 = vld [vmem:[%s1981] sm:$0xff]
        %v1983 = vld [vmem:[%s1981 + $0x8] sm:$0xff]
        %v1984 = vld [vmem:[%s1981 + $0x10] sm:$0xff]
        %v1985 = vld [vmem:[%s1981 + $0x18] sm:$0xff]
        %1986 = vmatprep.subr.mxu0 %v838
        %1987 = vmatpush1.msra.mxu0 %v837
        %1988 = vmatprep.subr.mxu0 %v834
        %1989 = vmatpush1.msra.mxu0 %v833
        %1990 = vmatprep.subr.mxu0 %v830
        %1991 = vmatpush1.msra.mxu0 %v829
        %1992 = vmatprep.subr.mxu0 %v826
        %1993 = vmatpush1.msra.mxu0 %v825
        %1994 = vmatprep.subr.mxu0 %v822
        %1995 = vmatpush1.msra.mxu0 %v821
        %1996 = vmatprep.subr.mxu0 %v818
        %1997 = vmatpush1.msra.mxu0 %v817
        %1998 = vmatprep.subr.mxu0 %v814
        %1999 = vmatpush1.msra.mxu0 %v813
        %2000 = vmatprep.subr.mxu0 %v810
        %2001 = vmatpush1.msra.mxu0 %v809
        %2002 = vmatprep.subr.mxu0 %v806
        %2003 = vmatpush1.msra.mxu0 %v805
        %2004 = vmatprep.subr.mxu0 %v802
        %2005 = vmatpush1.msra.mxu0 %v801
        %2006 = vmatprep.subr.mxu0 %v798
        %2007 = vmatpush1.msra.mxu0 %v797
        %2008 = vmatprep.subr.mxu0 %v794
        %2009 = vmatpush1.msra.mxu0 %v793
        %2010 = vmatprep.subr.mxu0 %v790
        %2011 = vmatpush1.msra.mxu0 %v789
        %2012 = vmatprep.subr.mxu0 %v786
        %2013 = vmatpush1.msra.mxu0 %v785
        %2014 = vmatprep.subr.mxu0 %v782
        %2015 = vmatpush1.msra.mxu0 %v781
        %2016 = vmatprep.subr.mxu0 %v778
        %2017 = vmatpush1.msra.mxu0 %v777
        %2018 = vmatprep.subr.mxu0 0.0
        %2019 = vmatpush2.msra.mxu0 0.0
        %2020 = vmatprep.subr.mxu0 0.0
        %2021 = vmatpush2.msra.mxu0 0.0
        %2022 = vmatprep.subr.mxu0 0.0
        %2023 = vmatpush2.msra.mxu0 0.0
        %2024 = vmatprep.subr.mxu0 0.0
        %2025 = vmatpush2.msra.mxu0 0.0
        %2026 = vmatprep.subr.mxu0 0.0
        %2027 = vmatpush2.msra.mxu0 0.0
        %2028 = vmatprep.subr.mxu0 0.0
        %2029 = vmatpush2.msra.mxu0 0.0
        %2030 = vmatprep.subr.mxu0 0.0
        %2031 = vmatpush2.msra.mxu0 0.0
        %2032 = vmatprep.subr.mxu0 0.0
        %2033 = vmatpush2.msra.mxu0 0.0
        %2034 = vmatprep.subr.mxu0 0.0
        %2035 = vmatpush2.msra.mxu0 0.0
        %2036 = vmatprep.subr.mxu0 0.0
        %2037 = vmatpush2.msra.mxu0 0.0
        %2038 = vmatprep.subr.mxu0 0.0
        %2039 = vmatpush2.msra.mxu0 0.0
        %2040 = vmatprep.subr.mxu0 0.0
        %2041 = vmatpush2.msra.mxu0 0.0
        %2042 = vmatprep.subr.mxu0 0.0
        %2043 = vmatpush2.msra.mxu0 0.0
        %2044 = vmatprep.subr.mxu0 0.0
        %2045 = vmatpush2.msra.mxu0 0.0
        %2046 = vmatprep.subr.mxu0 0.0
        %2047 = vmatpush2.msra.mxu0 0.0
        %2048 = vmatprep.subr.mxu0 0.0
        %2049 = vmatpush2.msra.mxu0 0.0
        %2050 = vmatprep.mubr.f32.mxu0 0.0
        %2051 = vmatmul.mubr.f32.gmra.mxu0 %v1975
        %v2052 = vpop.f32.mrf.mxu0
        %v2053 = vadd.f32 0.0, %v2052
        %v2054 = vpop.f32.mrf.mxu0
        %v2055 = vadd.f32 0.0, %v2054
        %2056 = vdwg.mxu0
        %2057 = vmatprep.subr.mxu0 %v840
        %2058 = vmatpush1.msra.mxu0 %v839
        %2059 = vmatprep.subr.mxu0 %v836
        %2060 = vmatpush1.msra.mxu0 %v835
        %2061 = vmatprep.subr.mxu0 %v832
        %2062 = vmatpush1.msra.mxu0 %v831
        %2063 = vmatprep.subr.mxu0 %v828
        %2064 = vmatpush1.msra.mxu0 %v827
        %2065 = vmatprep.subr.mxu0 %v824
        %2066 = vmatpush1.msra.mxu0 %v823
        %2067 = vmatprep.subr.mxu0 %v820
        %2068 = vmatpush1.msra.mxu0 %v819
        %2069 = vmatprep.subr.mxu0 %v816
        %2070 = vmatpush1.msra.mxu0 %v815
        %2071 = vmatprep.subr.mxu0 %v812
        %2072 = vmatpush1.msra.mxu0 %v811
        %2073 = vmatprep.subr.mxu0 %v808
        %2074 = vmatpush1.msra.mxu0 %v807
        %2075 = vmatprep.subr.mxu0 %v804
        %2076 = vmatpush1.msra.mxu0 %v803
        %2077 = vmatprep.subr.mxu0 %v800
        %2078 = vmatpush1.msra.mxu0 %v799
        %2079 = vmatprep.subr.mxu0 %v796
        %2080 = vmatpush1.msra.mxu0 %v795
        %2081 = vmatprep.subr.mxu0 %v792
        %2082 = vmatpush1.msra.mxu0 %v791
        %2083 = vmatprep.subr.mxu0 %v788
        %2084 = vmatpush1.msra.mxu0 %v787
        %2085 = vmatprep.subr.mxu0 %v784
        %2086 = vmatpush1.msra.mxu0 %v783
        %2087 = vmatprep.subr.mxu0 %v780
        %2088 = vmatpush1.msra.mxu0 %v779
        %2089 = vmatprep.subr.mxu0 0.0
        %2090 = vmatpush2.msra.mxu0 0.0
        %2091 = vmatprep.subr.mxu0 0.0
        %2092 = vmatpush2.msra.mxu0 0.0
        %2093 = vmatprep.subr.mxu0 0.0
        %2094 = vmatpush2.msra.mxu0 0.0
        %2095 = vmatprep.subr.mxu0 0.0
        %2096 = vmatpush2.msra.mxu0 0.0
        %2097 = vmatprep.subr.mxu0 0.0
        %2098 = vmatpush2.msra.mxu0 0.0
        %2099 = vmatprep.subr.mxu0 0.0
        %2100 = vmatpush2.msra.mxu0 0.0
        %2101 = vmatprep.subr.mxu0 0.0
        %2102 = vmatpush2.msra.mxu0 0.0
        %2103 = vmatprep.subr.mxu0 0.0
        %2104 = vmatpush2.msra.mxu0 0.0
        %2105 = vmatprep.subr.mxu0 0.0
        %2106 = vmatpush2.msra.mxu0 0.0
        %2107 = vmatprep.subr.mxu0 0.0
        %2108 = vmatpush2.msra.mxu0 0.0
        %2109 = vmatprep.subr.mxu0 0.0
        %2110 = vmatpush2.msra.mxu0 0.0
        %2111 = vmatprep.subr.mxu0 0.0
        %2112 = vmatpush2.msra.mxu0 0.0
        %2113 = vmatprep.subr.mxu0 0.0
        %2114 = vmatpush2.msra.mxu0 0.0
        %2115 = vmatprep.subr.mxu0 0.0
        %2116 = vmatpush2.msra.mxu0 0.0
        %2117 = vmatprep.subr.mxu0 0.0
        %2118 = vmatpush2.msra.mxu0 0.0
        %2119 = vmatprep.subr.mxu0 0.0
        %2120 = vmatpush2.msra.mxu0 0.0
        %2121 = vmatprep.mubr.f32.mxu0 0.0
        %2122 = vmatmul.mubr.f32.gmra.mxu0 %v1975
        %v2123 = vpop.f32.mrf.mxu0
        %v2124 = vadd.f32 0.0, %v2123
        %v2125 = vpop.f32.mrf.mxu0
        %v2126 = vadd.f32 0.0, %v2125
        %2127 = vdwg.mxu0
        %v2128 = vadd.f32 %v1982, %v2053
        %v2129 = vadd.f32 %v1983, %v2055
        %v2130 = vadd.f32 %v1984, %v2124
        %v2131 = vadd.f32 %v1985, %v2126
        %v2132 = vxor.u32 %v2128, 2147483648
        %v2133 = vmul.f32 %v2132, 1.442695
        %v2134 = vpow.pop %v2133
        %v2135 = vadd.f32 %v2134, 1.0
        %v2136 = vrcp.pop %v2135
        %v2137 = vmul.f32 1.0, %v2136
        %v2138 = vxor.u32 %v2129, 2147483648
        %v2139 = vmul.f32 %v2138, 1.442695
        %v2140 = vpow.pop %v2139
        %v2141 = vadd.f32 %v2140, 1.0
        %v2142 = vrcp.pop %v2141
        %v2143 = vmul.f32 1.0, %v2142
        %v2144 = vtanh.pop %v2130
        %v2145 = vxor.u32 %v2131, 2147483648
        %v2146 = vmul.f32 %v2145, 1.442695
        %v2147 = vpow.pop %v2146
        %v2148 = vadd.f32 %v2147, 1.0
        %v2149 = vrcp.pop %v2148
        %v2150 = vmul.f32 1.0, %v2149
        %v2151 = vmul.f32 %v2143, %v1978
        %v2152 = vmul.f32 %v2137, %v2144
        %v2153 = vadd.f32 %v2151, %v2152
        %v2154 = vtanh.pop %v2153
        %v2155 = vmul.f32 %v2150, %v2154
        %s2156 = sadd.s32 %s843, 6
        %p2157 = scmp.lt.s32.totalorder %s2156, 27
        %s2158 = scalar_select %p2157, 1, 0
        %s2159 = scvt.s32.f32 %s2158
        %v2160 = vstv %s2159
        %v2161 = vmul.f32 %v2160, %v2155
        %s2162 = ssub.f32 1.0, %s2159
        %v2163 = vstv %s2162
        %v2164 = vmul.f32 %v2163, %v1975
        %v2165 = vadd.f32 %v2161, %v2164
        %v2166 = vmul.f32 %v2160, %v2153
        %v2167 = vmul.f32 %v2163, %v1978
        %v2168 = vadd.f32 %v2166, %v2167
        %s2169 = scalar_lea.vmem %s394, 48 [#allocation13]
        %2170 = vst [vmem:[%s2169] sm:$0xff] %v2165
        %s2171 = scalar_lea.vmem [#allocation2], 224
        %v2172 = vld [vmem:[%s2171] sm:$0xff]
        %v2173 = vld [vmem:[%s2171 + $0x8] sm:$0xff]
        %v2174 = vld [vmem:[%s2171 + $0x10] sm:$0xff]
        %v2175 = vld [vmem:[%s2171 + $0x18] sm:$0xff]
        %2176 = vmatprep.subr.mxu0 %v838
        %2177 = vmatpush1.msra.mxu0 %v837
        %2178 = vmatprep.subr.mxu0 %v834
        %2179 = vmatpush1.msra.mxu0 %v833
        %2180 = vmatprep.subr.mxu0 %v830
        %2181 = vmatpush1.msra.mxu0 %v829
        %2182 = vmatprep.subr.mxu0 %v826
        %2183 = vmatpush1.msra.mxu0 %v825
        %2184 = vmatprep.subr.mxu0 %v822
        %2185 = vmatpush1.msra.mxu0 %v821
        %2186 = vmatprep.subr.mxu0 %v818
        %2187 = vmatpush1.msra.mxu0 %v817
        %2188 = vmatprep.subr.mxu0 %v814
        %2189 = vmatpush1.msra.mxu0 %v813
        %2190 = vmatprep.subr.mxu0 %v810
        %2191 = vmatpush1.msra.mxu0 %v809
        %2192 = vmatprep.subr.mxu0 %v806
        %2193 = vmatpush1.msra.mxu0 %v805
        %2194 = vmatprep.subr.mxu0 %v802
        %2195 = vmatpush1.msra.mxu0 %v801
        %2196 = vmatprep.subr.mxu0 %v798
        %2197 = vmatpush1.msra.mxu0 %v797
        %2198 = vmatprep.subr.mxu0 %v794
        %2199 = vmatpush1.msra.mxu0 %v793
        %2200 = vmatprep.subr.mxu0 %v790
        %2201 = vmatpush1.msra.mxu0 %v789
        %2202 = vmatprep.subr.mxu0 %v786
        %2203 = vmatpush1.msra.mxu0 %v785
        %2204 = vmatprep.subr.mxu0 %v782
        %2205 = vmatpush1.msra.mxu0 %v781
        %2206 = vmatprep.subr.mxu0 %v778
        %2207 = vmatpush1.msra.mxu0 %v777
        %2208 = vmatprep.subr.mxu0 0.0
        %2209 = vmatpush2.msra.mxu0 0.0
        %2210 = vmatprep.subr.mxu0 0.0
        %2211 = vmatpush2.msra.mxu0 0.0
        %2212 = vmatprep.subr.mxu0 0.0
        %2213 = vmatpush2.msra.mxu0 0.0
        %2214 = vmatprep.subr.mxu0 0.0
        %2215 = vmatpush2.msra.mxu0 0.0
        %2216 = vmatprep.subr.mxu0 0.0
        %2217 = vmatpush2.msra.mxu0 0.0
        %2218 = vmatprep.subr.mxu0 0.0
        %2219 = vmatpush2.msra.mxu0 0.0
        %2220 = vmatprep.subr.mxu0 0.0
        %2221 = vmatpush2.msra.mxu0 0.0
        %2222 = vmatprep.subr.mxu0 0.0
        %2223 = vmatpush2.msra.mxu0 0.0
        %2224 = vmatprep.subr.mxu0 0.0
        %2225 = vmatpush2.msra.mxu0 0.0
        %2226 = vmatprep.subr.mxu0 0.0
        %2227 = vmatpush2.msra.mxu0 0.0
        %2228 = vmatprep.subr.mxu0 0.0
        %2229 = vmatpush2.msra.mxu0 0.0
        %2230 = vmatprep.subr.mxu0 0.0
        %2231 = vmatpush2.msra.mxu0 0.0
        %2232 = vmatprep.subr.mxu0 0.0
        %2233 = vmatpush2.msra.mxu0 0.0
        %2234 = vmatprep.subr.mxu0 0.0
        %2235 = vmatpush2.msra.mxu0 0.0
        %2236 = vmatprep.subr.mxu0 0.0
        %2237 = vmatpush2.msra.mxu0 0.0
        %2238 = vmatprep.subr.mxu0 0.0
        %2239 = vmatpush2.msra.mxu0 0.0
        %2240 = vmatprep.mubr.f32.mxu0 0.0
        %2241 = vmatmul.mubr.f32.gmra.mxu0 %v2165
        %v2242 = vpop.f32.mrf.mxu0
        %v2243 = vadd.f32 0.0, %v2242
        %v2244 = vpop.f32.mrf.mxu0
        %v2245 = vadd.f32 0.0, %v2244
        %2246 = vdwg.mxu0
        %2247 = vmatprep.subr.mxu0 %v840
        %2248 = vmatpush1.msra.mxu0 %v839
        %2249 = vmatprep.subr.mxu0 %v836
        %2250 = vmatpush1.msra.mxu0 %v835
        %2251 = vmatprep.subr.mxu0 %v832
        %2252 = vmatpush1.msra.mxu0 %v831
        %2253 = vmatprep.subr.mxu0 %v828
        %2254 = vmatpush1.msra.mxu0 %v827
        %2255 = vmatprep.subr.mxu0 %v824
        %2256 = vmatpush1.msra.mxu0 %v823
        %2257 = vmatprep.subr.mxu0 %v820
        %2258 = vmatpush1.msra.mxu0 %v819
        %2259 = vmatprep.subr.mxu0 %v816
        %2260 = vmatpush1.msra.mxu0 %v815
        %2261 = vmatprep.subr.mxu0 %v812
        %2262 = vmatpush1.msra.mxu0 %v811
        %2263 = vmatprep.subr.mxu0 %v808
        %2264 = vmatpush1.msra.mxu0 %v807
        %2265 = vmatprep.subr.mxu0 %v804
        %2266 = vmatpush1.msra.mxu0 %v803
        %2267 = vmatprep.subr.mxu0 %v800
        %2268 = vmatpush1.msra.mxu0 %v799
        %2269 = vmatprep.subr.mxu0 %v796
        %2270 = vmatpush1.msra.mxu0 %v795
        %2271 = vmatprep.subr.mxu0 %v792
        %2272 = vmatpush1.msra.mxu0 %v791
        %2273 = vmatprep.subr.mxu0 %v788
        %2274 = vmatpush1.msra.mxu0 %v787
        %2275 = vmatprep.subr.mxu0 %v784
        %2276 = vmatpush1.msra.mxu0 %v783
        %2277 = vmatprep.subr.mxu0 %v780
        %2278 = vmatpush1.msra.mxu0 %v779
        %2279 = vmatprep.subr.mxu0 0.0
        %2280 = vmatpush2.msra.mxu0 0.0
        %2281 = vmatprep.subr.mxu0 0.0
        %2282 = vmatpush2.msra.mxu0 0.0
        %2283 = vmatprep.subr.mxu0 0.0
        %2284 = vmatpush2.msra.mxu0 0.0
        %2285 = vmatprep.subr.mxu0 0.0
        %2286 = vmatpush2.msra.mxu0 0.0
        %2287 = vmatprep.subr.mxu0 0.0
        %2288 = vmatpush2.msra.mxu0 0.0
        %2289 = vmatprep.subr.mxu0 0.0
        %2290 = vmatpush2.msra.mxu0 0.0
        %2291 = vmatprep.subr.mxu0 0.0
        %2292 = vmatpush2.msra.mxu0 0.0
        %2293 = vmatprep.subr.mxu0 0.0
        %2294 = vmatpush2.msra.mxu0 0.0
        %2295 = vmatprep.subr.mxu0 0.0
        %2296 = vmatpush2.msra.mxu0 0.0
        %2297 = vmatprep.subr.mxu0 0.0
        %2298 = vmatpush2.msra.mxu0 0.0
        %2299 = vmatprep.subr.mxu0 0.0
        %2300 = vmatpush2.msra.mxu0 0.0
        %2301 = vmatprep.subr.mxu0 0.0
        %2302 = vmatpush2.msra.mxu0 0.0
        %2303 = vmatprep.subr.mxu0 0.0
        %2304 = vmatpush2.msra.mxu0 0.0
        %2305 = vmatprep.subr.mxu0 0.0
        %2306 = vmatpush2.msra.mxu0 0.0
        %2307 = vmatprep.subr.mxu0 0.0
        %2308 = vmatpush2.msra.mxu0 0.0
        %2309 = vmatprep.subr.mxu0 0.0
        %2310 = vmatpush2.msra.mxu0 0.0
        %2311 = vmatprep.mubr.f32.mxu0 0.0
        %2312 = vmatmul.mubr.f32.gmra.mxu0 %v2165
        %v2313 = vpop.f32.mrf.mxu0
        %v2314 = vadd.f32 0.0, %v2313
        %v2315 = vpop.f32.mrf.mxu0
        %v2316 = vadd.f32 0.0, %v2315
        %2317 = vdwg.mxu0
        %v2318 = vadd.f32 %v2172, %v2243
        %v2319 = vadd.f32 %v2173, %v2245
        %v2320 = vadd.f32 %v2174, %v2314
        %v2321 = vadd.f32 %v2175, %v2316
        %v2322 = vxor.u32 %v2318, 2147483648
        %v2323 = vmul.f32 %v2322, 1.442695
        %v2324 = vpow.pop %v2323
        %v2325 = vadd.f32 %v2324, 1.0
        %v2326 = vrcp.pop %v2325
        %v2327 = vmul.f32 1.0, %v2326
        %v2328 = vxor.u32 %v2319, 2147483648
        %v2329 = vmul.f32 %v2328, 1.442695
        %v2330 = vpow.pop %v2329
        %v2331 = vadd.f32 %v2330, 1.0
        %v2332 = vrcp.pop %v2331
        %v2333 = vmul.f32 1.0, %v2332
        %v2334 = vtanh.pop %v2320
        %v2335 = vxor.u32 %v2321, 2147483648
        %v2336 = vmul.f32 %v2335, 1.442695
        %v2337 = vpow.pop %v2336
        %v2338 = vadd.f32 %v2337, 1.0
        %v2339 = vrcp.pop %v2338
        %v2340 = vmul.f32 1.0, %v2339
        %v2341 = vmul.f32 %v2333, %v2168
        %v2342 = vmul.f32 %v2327, %v2334
        %v2343 = vadd.f32 %v2341, %v2342
        %v2344 = vtanh.pop %v2343
        %v2345 = vmul.f32 %v2340, %v2344
        %s2346 = sadd.s32 %s843, 7
        %p2347 = scmp.lt.s32.totalorder %s2346, 27
        %s2348 = scalar_select %p2347, 1, 0
        %s2349 = scvt.s32.f32 %s2348
        %v2350 = vstv %s2349
        %v2351 = vmul.f32 %v2350, %v2345
        %s2352 = ssub.f32 1.0, %s2349
        %v2353 = vstv %s2352
        %v2354 = vmul.f32 %v2353, %v2165
        %v2355 = vadd.f32 %v2351, %v2354
        %v2356 = vmul.f32 %v2350, %v2343
        %v2357 = vmul.f32 %v2353, %v2168
        %v2358 = vadd.f32 %v2356, %v2357
        %s2359 = scalar_lea.vmem %s394, 56 [#allocation13]
        %2360 = vst [vmem:[%s2359] sm:$0xff] %v2355
        %2361 = vst [vmem:[#allocation3] sm:$0xff] %v2355
        %2362 = vst [vmem:[#allocation4] sm:$0xff] %v2358
        %2363 = vst [vmem:[%s408] sm:$0xff] %v2355
        %2364 = vst [vmem:[%s415] sm:$0xff] %v2358
        %v2365 = vld [vmem:[%s394] sm:$0xff]
        %v2366 = vld [vmem:[%s394 + $0x8] sm:$0xff]
        %v2367 = vld [vmem:[%s394 + $0x10] sm:$0xff]
        %v2368 = vld [vmem:[%s394 + $0x18] sm:$0xff]
        %v2369 = vld [vmem:[%s394 + $0x20] sm:$0xff]
        %v2370 = vld [vmem:[%s394 + $0x28] sm:$0xff]
        %v2371 = vld [vmem:[%s394 + $0x30] sm:$0xff]
        %v2372 = vld [vmem:[%s394 + $0x38] sm:$0xff]
        %v2373 = vld [vmem:[#allocation11] sm:$0xff]
        %v2374 = vld [vmem:[#allocation11 + $0x8] sm:$0xff]
        %v2375 = vld [vmem:[#allocation11 + $0x10] sm:$0xff]
        %v2376 = vld [vmem:[#allocation11 + $0x18] sm:$0xff]
        %v2377 = vld [vmem:[#allocation11 + $0x20] sm:$0xff]
        %v2378 = vld [vmem:[#allocation11 + $0x28] sm:$0xff]
        %v2379 = vld [vmem:[#allocation11 + $0x30] sm:$0xff]
        %v2380 = vld [vmem:[#allocation11 + $0x38] sm:$0xff]
        %v2381 = vld [vmem:[#allocation11 + $0x40] sm:$0xff]
        %v2382 = vld [vmem:[#allocation11 + $0x48] sm:$0xff]
        %v2383 = vld [vmem:[#allocation11 + $0x50] sm:$0xff]
        %v2384 = vld [vmem:[#allocation11 + $0x58] sm:$0xff]
        %v2385 = vld [vmem:[#allocation11 + $0x60] sm:$0xff]
        %v2386 = vld [vmem:[#allocation11 + $0x68] sm:$0xff]
        %v2387 = vld [vmem:[#allocation11 + $0x70] sm:$0xff]
        %v2388 = vld [vmem:[#allocation11 + $0x78] sm:$0xff]
        %2389 = vmatprep.subr.mxu0 0.0
        %2390 = vmatpush1.msra.mxu0 %v2388
        %2391 = vmatprep.subr.mxu0 0.0
        %2392 = vmatpush1.msra.mxu0 %v2387
        %2393 = vmatprep.subr.mxu0 0.0
        %2394 = vmatpush1.msra.mxu0 %v2386
        %2395 = vmatprep.subr.mxu0 0.0
        %2396 = vmatpush1.msra.mxu0 %v2385
        %2397 = vmatprep.subr.mxu0 0.0
        %2398 = vmatpush1.msra.mxu0 %v2384
        %2399 = vmatprep.subr.mxu0 0.0
        %2400 = vmatpush1.msra.mxu0 %v2383
        %2401 = vmatprep.subr.mxu0 0.0
        %2402 = vmatpush1.msra.mxu0 %v2382
        %2403 = vmatprep.subr.mxu0 0.0
        %2404 = vmatpush1.msra.mxu0 %v2381
        %2405 = vmatprep.subr.mxu0 0.0
        %2406 = vmatpush1.msra.mxu0 %v2380
        %2407 = vmatprep.subr.mxu0 0.0
        %2408 = vmatpush1.msra.mxu0 %v2379
        %2409 = vmatprep.subr.mxu0 0.0
        %2410 = vmatpush1.msra.mxu0 %v2378
        %2411 = vmatprep.subr.mxu0 0.0
        %2412 = vmatpush1.msra.mxu0 %v2377
        %2413 = vmatprep.subr.mxu0 0.0
        %2414 = vmatpush1.msra.mxu0 %v2376
        %2415 = vmatprep.subr.mxu0 0.0
        %2416 = vmatpush1.msra.mxu0 %v2375
        %2417 = vmatprep.subr.mxu0 0.0
        %2418 = vmatpush1.msra.mxu0 %v2374
        %2419 = vmatprep.subr.mxu0 0.0
        %2420 = vmatpush1.msra.mxu0 %v2373
        %2421 = vmatprep.subr.mxu0 0.0
        %2422 = vmatpush2.msra.mxu0 0.0
        %2423 = vmatprep.subr.mxu0 0.0
        %2424 = vmatpush2.msra.mxu0 0.0
        %2425 = vmatprep.subr.mxu0 0.0
        %2426 = vmatpush2.msra.mxu0 0.0
        %2427 = vmatprep.subr.mxu0 0.0
        %2428 = vmatpush2.msra.mxu0 0.0
        %2429 = vmatprep.subr.mxu0 0.0
        %2430 = vmatpush2.msra.mxu0 0.0
        %2431 = vmatprep.subr.mxu0 0.0
        %2432 = vmatpush2.msra.mxu0 0.0
        %2433 = vmatprep.subr.mxu0 0.0
        %2434 = vmatpush2.msra.mxu0 0.0
        %2435 = vmatprep.subr.mxu0 0.0
        %2436 = vmatpush2.msra.mxu0 0.0
        %2437 = vmatprep.subr.mxu0 0.0
        %2438 = vmatpush2.msra.mxu0 0.0
        %2439 = vmatprep.subr.mxu0 0.0
        %2440 = vmatpush2.msra.mxu0 0.0
        %2441 = vmatprep.subr.mxu0 0.0
        %2442 = vmatpush2.msra.mxu0 0.0
        %2443 = vmatprep.subr.mxu0 0.0
        %2444 = vmatpush2.msra.mxu0 0.0
        %2445 = vmatprep.subr.mxu0 0.0
        %2446 = vmatpush2.msra.mxu0 0.0
        %2447 = vmatprep.subr.mxu0 0.0
        %2448 = vmatpush2.msra.mxu0 0.0
        %2449 = vmatprep.subr.mxu0 0.0
        %2450 = vmatpush2.msra.mxu0 0.0
        %2451 = vmatprep.subr.mxu0 0.0
        %2452 = vmatpush2.msra.mxu0 0.0
        %2453 = vmatprep.mubr.f32.mxu0 0.0
        %2454 = vmatmul.mubr.f32.gmra.mxu0 %v2365
        %v2455 = vpop.f32.mrf.mxu0
        %v2456 = vadd.f32 0.0, %v2455
        %v2457 = vpop.f32.mrf.mxu0
        %2458 = vmatprep.mubr.f32.mxu0 0.0
        %2459 = vmatmul.mubr.f32.gmra.mxu0 %v2366
        %v2460 = vpop.f32.mrf.mxu0
        %v2461 = vadd.f32 0.0, %v2460
        %v2462 = vpop.f32.mrf.mxu0
        %2463 = vmatprep.mubr.f32.mxu0 0.0
        %2464 = vmatmul.mubr.f32.gmra.mxu0 %v2367
        %v2465 = vpop.f32.mrf.mxu0
        %v2466 = vadd.f32 0.0, %v2465
        %v2467 = vpop.f32.mrf.mxu0
        %2468 = vmatprep.mubr.f32.mxu0 0.0
        %2469 = vmatmul.mubr.f32.gmra.mxu0 %v2368
        %v2470 = vpop.f32.mrf.mxu0
        %v2471 = vadd.f32 0.0, %v2470
        %v2472 = vpop.f32.mrf.mxu0
        %2473 = vmatprep.mubr.f32.mxu0 0.0
        %2474 = vmatmul.mubr.f32.gmra.mxu0 %v2369
        %v2475 = vpop.f32.mrf.mxu0
        %v2476 = vadd.f32 0.0, %v2475
        %v2477 = vpop.f32.mrf.mxu0
        %2478 = vmatprep.mubr.f32.mxu0 0.0
        %2479 = vmatmul.mubr.f32.gmra.mxu0 %v2370
        %v2480 = vpop.f32.mrf.mxu0
        %v2481 = vadd.f32 0.0, %v2480
        %v2482 = vpop.f32.mrf.mxu0
        %2483 = vmatprep.mubr.f32.mxu0 0.0
        %2484 = vmatmul.mubr.f32.gmra.mxu0 %v2371
        %v2485 = vpop.f32.mrf.mxu0
        %v2486 = vadd.f32 0.0, %v2485
        %v2487 = vpop.f32.mrf.mxu0
        %2488 = vmatprep.mubr.f32.mxu0 0.0
        %2489 = vmatmul.mubr.f32.gmra.mxu0 %v2372
        %v2490 = vpop.f32.mrf.mxu0
        %v2491 = vadd.f32 0.0, %v2490
        %v2492 = vpop.f32.mrf.mxu0
        %2493 = vdwg.mxu0
        %2494 = vst [vmem:[%s401] sm:$0xff] %v2456
        %2495 = vst [vmem:[%s401 + $0x8] sm:$0xff] %v2461
        %2496 = vst [vmem:[%s401 + $0x10] sm:$0xff] %v2466
        %2497 = vst [vmem:[%s401 + $0x18] sm:$0xff] %v2471
        %2498 = vst [vmem:[%s401 + $0x20] sm:$0xff] %v2476
        %2499 = vst [vmem:[%s401 + $0x28] sm:$0xff] %v2481
        %2500 = vst [vmem:[%s401 + $0x30] sm:$0xff] %v2486
        %2501 = vst [vmem:[%s401 + $0x38] sm:$0xff] %v2491
        %s2502 = sand.u32 %s168, 1
        %s2503 = scalar_lea.sflag [#allocation7], %s2502
        %s2504 = sand.u32 %s168, 1
        %s2505 = smul.addr %s2504, 64
        %s2506 = scalar_lea.vmem [#allocation13], %s2505
        %s2507 = sand.u32 %s34, 1
        %s2508 = scalar_lea.sflag [#allocation15], %s2507
        %s2509 = sand.u32 %s196, 1
        %s2510 = smul.addr %s2509, 64
        %s2511 = scalar_lea.vmem [#allocation14], %s2510
        %s2512 = sand.u32 %s34, 1
        %s2513 = scalar_lea.sflag [#allocation15], %s2512
        %s2514 = sand.u32 %s222, 1
        %s2515 = smul.addr %s2514, 8
        %s2516 = scalar_lea.vmem [#allocation16], %s2515
        %s2517 = sand.u32 %s248, 1
        %s2518 = scalar_lea.sflag [#allocation18], %s2517
        %s2519 = sand.u32 %s248, 1
        %s2520 = smul.addr %s2519, 8
        %s2521 = scalar_lea.vmem [#allocation17], %s2520
        // Predicated region
        $region61: #{tpu_custom_call.1} parent=39 // pred_check
          %p2522 = pneg %p178
        $region62: #{tpu_custom_call.1} parent=39 // pred_check_branch
          %2524 = sbr.rel (%p2522) target = $region64
        $region63: #{tpu_custom_call.1} parent=39 // pred_region
          %s2525 = smul.u32 8, %s39
          %s2527 = ssub.s32 1024, 1024
          %2528 = vsyncadd %s2503, %s2527
          %s2529 = smul.addr %s2525, 2
          %s2530 = sadd.s32 %s38, %s2529
          %s2531 = smul.addr %s2530, 128
          %s2532 = scalar_lea.hbm %s5, %s2531
          %s2533 = sshll.u32 %s2506, 4
          %s2534 = int_to_ptr.vmem [resolvable:$true] %s2533
          %2539 = dma.vmem_to_hbm [thread:$0]  %s2534, 1024, %s2532, %s2503, 128, 256, 8
        $region64: #{tpu_custom_call.1} parent=39 // pred_fallthru
          _
        // Predicated region
        $region65: #{tpu_custom_call.1} parent=39 // pred_check
          %p2540 = pneg %p206
        $region66: #{tpu_custom_call.1} parent=39 // pred_check_branch
          %2542 = sbr.rel (%p2540) target = $region68
        $region67: #{tpu_custom_call.1} parent=39 // pred_region
          %s2543 = smul.u32 8, %s39
          %s2545 = ssub.s32 1024, 1024
          %2546 = vsyncadd %s2508, %s2545
          %s2547 = smul.addr %s2543, 2
          %s2548 = sadd.s32 %s38, %s2547
          %s2549 = smul.addr %s2548, 128
          %s2550 = scalar_lea.hbm %s6, %s2549
          %s2551 = sshll.u32 %s2511, 4
          %s2552 = int_to_ptr.vmem [resolvable:$true] %s2551
          %2557 = dma.vmem_to_hbm [thread:$0]  %s2552, 1024, %s2550, %s2508, 128, 256, 8
        $region68: #{tpu_custom_call.1} parent=39 // pred_fallthru
          _
        // Predicated region
        $region69: #{tpu_custom_call.1} parent=39 // pred_check
          %p2558 = pneg %p232
        $region70: #{tpu_custom_call.1} parent=39 // pred_check_branch
          %2560 = sbr.rel (%p2558) target = $region72
        $region71: #{tpu_custom_call.1} parent=39 // pred_region
          %s2562 = ssub.s32 128, 128
          %2563 = vsyncadd %s2513, %s2562
          %s2564 = smul.addr %s38, 128
          %s2565 = scalar_lea.hbm %s7, %s2564
          %s2567 = sshll.u32 %s2516, 4
          %s2568 = int_to_ptr.vmem [resolvable:$true] %s2567
          %2570 = dma.vmem_to_hbm [thread:$0]  %s2568, 128, %s2565, %s2513
        $region72: #{tpu_custom_call.1} parent=39 // pred_fallthru
          _
        // Predicated region
        $region73: #{tpu_custom_call.1} parent=39 // pred_check
          %p2571 = pneg %p258
        $region74: #{tpu_custom_call.1} parent=39 // pred_check_branch
          %2573 = sbr.rel (%p2571) target = $region76
        $region75: #{tpu_custom_call.1} parent=39 // pred_region
          %s2575 = ssub.s32 128, 128
          %2576 = vsyncadd %s2518, %s2575
          %s2577 = smul.addr %s38, 128
          %s2578 = scalar_lea.hbm %s8, %s2577
          %s2580 = sshll.u32 %s2521, 4
          %s2581 = int_to_ptr.vmem [resolvable:$true] %s2580
          %2583 = dma.vmem_to_hbm [thread:$0]  %s2581, 128, %s2578, %s2518
        $region76: #{tpu_custom_call.1} parent=39 // pred_fallthru
          _
      $region40: #{tpu_custom_call.1} parent=5 // pred_fallthru
        _
      %p2584 = scmp.le.s32.totalorder 2, %s29
      // Predicated region
      $region77: #{tpu_custom_call.1} parent=5 // pred_check
        %p2585 = pneg %p2584
      $region78: #{tpu_custom_call.1} parent=5 // pred_check_branch
        %2587 = sbr.rel (%p2585) target = $region80
      $region79: #{tpu_custom_call.1} parent=5 // pred_region
        %s2588 = ssub.s32 %s29, 2
        // Predicated region
        $region81: #{tpu_custom_call.1} parent=79 // pred_check
          %p2589 = pneg %p184
        $region82: #{tpu_custom_call.1} parent=79 // pred_check_branch
          %2591 = sbr.rel (%p2589) target = $region84
        $region83: #{tpu_custom_call.1} parent=79 // pred_region
          %s2592 = sand.u32 %s169, 1
          %s2593 = scalar_lea.sflag [#allocation7], %s2592
          %s2594 = sand.u32 %s169, 1
          %s2595 = smul.addr %s2594, 64
          %s2596 = scalar_lea.vmem [#allocation13], %s2595
          %2597 = dma.done %s2593, 1024
        $region84: #{tpu_custom_call.1} parent=79 // pred_fallthru
          _
        // Predicated region
        $region85: #{tpu_custom_call.1} parent=79 // pred_check
          %p2598 = pneg %p212
        $region86: #{tpu_custom_call.1} parent=79 // pred_check_branch
          %2600 = sbr.rel (%p2598) target = $region88
        $region87: #{tpu_custom_call.1} parent=79 // pred_region
          %s2601 = sand.u32 %s35, 1
          %s2602 = scalar_lea.sflag [#allocation15], %s2601
          %s2603 = sand.u32 %s197, 1
          %s2604 = smul.addr %s2603, 64
          %s2605 = scalar_lea.vmem [#allocation14], %s2604
          %2606 = dma.done %s2602, 1024
        $region88: #{tpu_custom_call.1} parent=79 // pred_fallthru
          _
        // Predicated region
        $region89: #{tpu_custom_call.1} parent=79 // pred_check
          %p2607 = pneg %p238
        $region90: #{tpu_custom_call.1} parent=79 // pred_check_branch
          %2609 = sbr.rel (%p2607) target = $region92
        $region91: #{tpu_custom_call.1} parent=79 // pred_region
          %s2610 = sand.u32 %s35, 1
          %s2611 = scalar_lea.sflag [#allocation15], %s2610
          %s2612 = sand.u32 %s223, 1
          %s2613 = smul.addr %s2612, 8
          %s2614 = scalar_lea.vmem [#allocation16], %s2613
          %2615 = dma.done %s2611, 128
        $region92: #{tpu_custom_call.1} parent=79 // pred_fallthru
          _
        // Predicated region
        $region93: #{tpu_custom_call.1} parent=79 // pred_check
          %p2616 = pneg %p264
        $region94: #{tpu_custom_call.1} parent=79 // pred_check_branch
          %2618 = sbr.rel (%p2616) target = $region96
        $region95: #{tpu_custom_call.1} parent=79 // pred_region
          %s2619 = sand.u32 %s249, 1
          %s2620 = scalar_lea.sflag [#allocation18], %s2619
          %s2621 = sand.u32 %s249, 1
          %s2622 = smul.addr %s2621, 8
          %s2623 = scalar_lea.vmem [#allocation17], %s2622
          %2624 = dma.done %s2620, 128
        $region96: #{tpu_custom_call.1} parent=79 // pred_fallthru
          _
      $region80: #{tpu_custom_call.1} parent=5 // pred_fallthru
        _
    $region6: #{tpu_custom_call.1} parent=1 // loop_footer
      %s33 = sadd.s32 1, %s29
    $region7: #{tpu_custom_call.1} parent=1 // loop_footer_branch
      %28 = sbr.rel target = $region3
    $region8: #{tpu_custom_call.1} parent=1 // loop_exit
      _
    %2625 = vsyncpa [#allocation6], 1
    %s2626 = scalar_lea.sflag [#allocation6], 1
    %2627 = vsyncpa %s2626, 1
    %2628 = vsyncpa [#allocation9], 1
    %2629 = vsyncpa [#allocation12], 1
    %2630 = vsyncpa [#allocation7], 1
    %s2631 = scalar_lea.sflag [#allocation7], 1
    %2632 = vsyncpa %s2631, 1
    %2633 = vsyncpa [#allocation15], 1
    %s2634 = scalar_lea.sflag [#allocation15], 1
    %2635 = vsyncpa %s2634, 1
    %2636 = vsyncpa [#allocation18], 1
    %s2637 = scalar_lea.sflag [#allocation18], 1
    %2638 = vsyncpa %s2637, 1

</llo_original>
